<compile_context>
chip_gen: v5e
topology: v5e:2x2
jax: 0.10.0
libtpu: 0.0.40
codegen_flags: <defaults>
</compile_context>

<pallas_src>
import functools

import jax
import jax.numpy as jnp
from jax.experimental import pallas as pl
from jax.experimental.pallas import tpu as pltpu

K_SIZE = 4
LRELU_SLOPE = 0.2
BN_EPS = 1e-5

# ConvTranspose2d(k=4, stride=2, pad=1): output parity `a` and input offset
# `dy` select kernel tap kh (same table applies to columns / kw).
_KH_OF = {(0, 0): 1, (0, -1): 3, (1, 0): 2, (1, 1): 0}


def _cpad(c):
    """Pad a channel count so that 4*c_pad is a multiple of 128 lanes."""
    return max(32, ((c + 31) // 32) * 32)


def _zero_map(ndim):
    zeros = (0,) * ndim
    return lambda i: zeros


def _full_specs(*shapes):
    return [pl.BlockSpec(s, _zero_map(len(s))) for s in shapes]


# ---------------------------------------------------------------------------
# Kernels
# ---------------------------------------------------------------------------
def _initial_kernel(z_ref, w_ref, g_ref, b_ref, o_ref, *, c0p, count, eps,
                    neg_slope):
    """Fused inital_1 + inital_2 + channel concat + BatchNorm + LeakyReLU.

    z_ref : (B, nz+num_classes) bf16
    w_ref : (nz+num_classes, 16*c0p) bf16, column = (kh*4+kw)*c0p + oc
    g_ref, b_ref : (1, c0p) f32
    o_ref : (B, 16*c0p) bf16
    """
    y = jnp.dot(z_ref[...], w_ref[...], preferred_element_type=jnp.float32)
    # Batch statistics per real channel: sum over batch rows and the 16
    # spatial column blocks.
    s1 = jnp.sum(y, axis=0, keepdims=True)
    s2 = jnp.sum(y * y, axis=0, keepdims=True)
    s1c = s1[:, 0:c0p]
    s2c = s2[:, 0:c0p]
    for p in range(1, 16):
        s1c = s1c + s1[:, p * c0p:(p + 1) * c0p]
        s2c = s2c + s2[:, p * c0p:(p + 1) * c0p]
    inv_n = 1.0 / count
    mean = s1c * inv_n
    var = jnp.maximum(s2c * inv_n - mean * mean, 0.0)
    scale = g_ref[...] * jax.lax.rsqrt(var + eps)
    bias = b_ref[...] - mean * scale
    scale_t = jnp.concatenate([scale] * 16, axis=-1)
    bias_t = jnp.concatenate([bias] * 16, axis=-1)
    y = y * scale_t + bias_t
    y = jnp.where(y >= 0.0, y, neg_slope * y)
    o_ref[...] = y.astype(o_ref.dtype)


def _up_bn_kernel(x_ref, w_ref, g_ref, b_ref, o_ref, *, coutp, count, eps,
                  neg_slope):
    """ConvTranspose2d(4,2,1) (K-folded) + BatchNorm + LeakyReLU, fused.

    x_ref : (M, 9*cinp) bf16   im2col of the zero-padded input grid
    w_ref : (9*cinp, 4*coutp) bf16  tap-stacked, phase-blocked weights
    g_ref, b_ref : (1, coutp) f32
    o_ref : (M, 4*coutp) bf16  phase-blocked output
    """
    y = jnp.dot(x_ref[...], w_ref[...], preferred_element_type=jnp.float32)
    s1 = jnp.sum(y, axis=0, keepdims=True)
    s2 = jnp.sum(y * y, axis=0, keepdims=True)
    s1c = s1[:, 0:coutp]
    s2c = s2[:, 0:coutp]
    for p in range(1, 4):
        s1c = s1c + s1[:, p * coutp:(p + 1) * coutp]
        s2c = s2c + s2[:, p * coutp:(p + 1) * coutp]
    inv_n = 1.0 / count
    mean = s1c * inv_n
    var = jnp.maximum(s2c * inv_n - mean * mean, 0.0)
    scale = g_ref[...] * jax.lax.rsqrt(var + eps)
    bias = b_ref[...] - mean * scale
    scale_t = jnp.concatenate([scale] * 4, axis=-1)
    bias_t = jnp.concatenate([bias] * 4, axis=-1)
    y = y * scale_t + bias_t
    y = jnp.where(y >= 0.0, y, neg_slope * y)
    o_ref[...] = y.astype(o_ref.dtype)


def _up_tanh_kernel(x_ref, w_ref, o_ref):
    """Final ConvTranspose2d(4,2,1) (K-folded) + Tanh, row-tiled grid."""
    y = jnp.dot(x_ref[...], w_ref[...], preferred_element_type=jnp.float32)
    o_ref[...] = jnp.tanh(y).astype(o_ref.dtype)


# ---------------------------------------------------------------------------
# One-time weight packing (hoisted out of the forward path)
# ---------------------------------------------------------------------------
def _build_initial_weight(w1, w2, c0p):
    """(nz+ncls, 16*c0p) matrix for the fused initial block."""
    nz, c1 = w1.shape[0], w1.shape[1]
    cols = []
    for kh in range(K_SIZE):
        for kw in range(K_SIZE):
            blk = jnp.zeros((nz + w2.shape[0], c0p), jnp.float32)
            blk = blk.at[:nz, :c1].set(w1[:, :, kh, kw])
            blk = blk.at[nz:, c1:c1 + w2.shape[1]].set(w2[:, :, kh, kw])
            cols.append(blk)
    return jnp.concatenate(cols, axis=1).astype(jnp.bfloat16)


def _build_flat_weight(w, cinp, coutp):
    """(9*cinp, 4*coutp) tap-stacked, phase-blocked weight (K-folded)."""
    cin, cout = w.shape[0], w.shape[1]
    taps = []
    for dy in (-1, 0, 1):
        for dx in (-1, 0, 1):
            blocks = []
            for a in (0, 1):
                for b in (0, 1):
                    kh = _KH_OF.get((a, dy))
                    kw = _KH_OF.get((b, dx))
                    if kh is None or kw is None:
                        blocks.append(jnp.zeros((cinp, coutp), jnp.float32))
                    else:
                        blocks.append(jnp.pad(
                            w[:, :, kh, kw],
                            ((0, cinp - cin), (0, coutp - cout))))
            taps.append(jnp.concatenate(blocks, axis=1))
    return jnp.concatenate(taps, axis=0).astype(jnp.bfloat16)


def pack_params(params):
    """Pack raw DCGAN params into MXU-friendly bf16 matrices (done once)."""
    w1, w2 = params["w_init1"], params["w_init2"]
    c1, c2 = w1.shape[1], w2.shape[1]
    c0 = c1 + c2
    c0p = _cpad(c0)
    packed = {
        "w0": _build_initial_weight(w1, w2, c0p),
        "g0": jnp.pad(jnp.concatenate([params["g_init1"], params["g_init2"]]),
                      (0, c0p - c0)).reshape(1, c0p),
        "b0": jnp.pad(jnp.concatenate([params["b_init1"], params["b_init2"]]),
                      (0, c0p - c0)).reshape(1, c0p),
    }
    cinp = c0p
    for name in ("ct1", "ct2", "ct3", "out"):
        w = params[f"w_{name}"]
        cout = w.shape[1]
        coutp = _cpad(cout)
        packed[f"w_{name}"] = _build_flat_weight(w, cinp, coutp)
        if name != "out":
            packed[f"g_{name}"] = jnp.pad(params[f"g_{name}"],
                                          (0, coutp - cout)).reshape(1, coutp)
            packed[f"b_{name}"] = jnp.pad(params[f"b_{name}"],
                                          (0, coutp - cout)).reshape(1, coutp)
        cinp = coutp
    return packed


# ---------------------------------------------------------------------------
# Layout glue (small XLA ops between pallas_calls)
# ---------------------------------------------------------------------------
def _im2col(h):
    """(B, H, W, C) -> (B*H*W, 9*C): 3x3 window of the 1-zero-padded grid."""
    B, H, W, c = h.shape
    xpad = jnp.pad(h, ((0, 0), (1, 1), (1, 1), (0, 0)))
    cols = [xpad[:, 1 + dy:1 + dy + H, 1 + dx:1 + dx + W, :]
            for dy in (-1, 0, 1) for dx in (-1, 0, 1)]
    return jnp.concatenate(cols, axis=-1).reshape(B * H * W, 9 * c)


def _depth_to_space(y, B, H, W, coutp):
    """Phase-blocked (B*H*W, 4*coutp) -> NHWC (B, 2H, 2W, coutp)."""
    y = y.reshape(B, H, W, 2, 2, coutp)
    y = y.transpose(0, 1, 3, 2, 4, 5)
    return y.reshape(B, 2 * H, 2 * W, coutp)


# ---------------------------------------------------------------------------
# Block wrappers
# ---------------------------------------------------------------------------
def _initial_block(zcat, w0, g0, b0, c0p):
    B, kin = zcat.shape
    n = 16 * c0p
    kernel = functools.partial(_initial_kernel, c0p=c0p, count=float(B * 16),
                               eps=BN_EPS, neg_slope=LRELU_SLOPE)
    y = pl.pallas_call(
        kernel,
        out_shape=jax.ShapeDtypeStruct((B, n), jnp.bfloat16),
        grid=(1,),
        in_specs=_full_specs((B, kin), (kin, n), (1, c0p), (1, c0p)),
        out_specs=pl.BlockSpec((B, n), _zero_map(2)),
        compiler_params=pltpu.CompilerParams(
            dimension_semantics=("arbitrary",)),
    )(zcat.astype(jnp.bfloat16), w0, g0, b0)
    return y.reshape(B, K_SIZE, K_SIZE, c0p)


def _up_block_bn(h, w_flat, gamma, beta):
    B, H, W, _ = h.shape
    kdim, n = w_flat.shape
    coutp = n // 4
    M = B * H * W
    lhs = _im2col(h.astype(jnp.bfloat16))
    kernel = functools.partial(_up_bn_kernel, coutp=coutp,
                               count=float(4 * M), eps=BN_EPS,
                               neg_slope=LRELU_SLOPE)
    y = pl.pallas_call(
        kernel,
        out_shape=jax.ShapeDtypeStruct((M, n), jnp.bfloat16),
        grid=(1,),
        in_specs=_full_specs((M, kdim), (kdim, n), (1, coutp), (1, coutp)),
        out_specs=pl.BlockSpec((M, n), _zero_map(2)),
        compiler_params=pltpu.CompilerParams(
            dimension_semantics=("arbitrary",)),
    )(lhs, w_flat, gamma, beta)
    return _depth_to_space(y, B, H, W, coutp)


def _up_block_tanh(h, w_flat):
    B, H, W, _ = h.shape
    kdim, n = w_flat.shape
    coutp = n // 4
    M = B * H * W
    lhs = _im2col(h.astype(jnp.bfloat16))
    tm = M
    for cand in (512, 256, 128, 64, 32, 16, 8):
        if M % cand == 0:
            tm = cand
            break
    y = pl.pallas_call(
        _up_tanh_kernel,
        out_shape=jax.ShapeDtypeStruct((M, n), jnp.bfloat16),
        grid=(M // tm,),
        in_specs=[pl.BlockSpec((tm, kdim), lambda i: (i, 0)),
                  pl.BlockSpec((kdim, n), lambda i: (0, 0))],
        out_specs=pl.BlockSpec((tm, n), lambda i: (i, 0)),
        compiler_params=pltpu.CompilerParams(
            dimension_semantics=("parallel",)),
    )(lhs, w_flat)
    return _depth_to_space(y, B, H, W, coutp)


# ---------------------------------------------------------------------------
# Full generator forward pass
# ---------------------------------------------------------------------------
def init_params(key, nz, nc, ngf, num_classes):
    ks = jax.random.split(key, 6)

    def w(k, cin, cout):   # deterministic DCGAN-style init, N(0, 0.02)
        return 0.02 * jax.random.normal(k, (cin, cout, K_SIZE, K_SIZE),
                                        jnp.float32)

    p = {
        "w_init1": w(ks[0], nz, ngf * 4),
        "w_init2": w(ks[1], num_classes, ngf * 4),
        "w_ct1": w(ks[2], ngf * 8, ngf * 4),
        "w_ct2": w(ks[3], ngf * 4, ngf * 2),
        "w_ct3": w(ks[4], ngf * 2, ngf),
        "w_out": w(ks[5], ngf, nc),
    }
    # BatchNorm2d default init: weight=1, bias=0
    for name, c in (("init1", ngf * 4), ("init2", ngf * 4), ("ct1", ngf * 4),
                    ("ct2", ngf * 2), ("ct3", ngf)):
        p[f"g_{name}"] = jnp.ones((c,), jnp.float32)
        p[f"b_{name}"] = jnp.zeros((c,), jnp.float32)
    return p


def cnet_g1_forward(packed, input_nchw, label_nchw, *, nc):
    B = input_nchw.shape[0]
    nz = input_nchw.shape[1]
    ncls = label_nchw.shape[1]
    c0p = packed["w0"].shape[1] // 16

    z = input_nchw.reshape(B, nz).astype(jnp.float32)
    lab = label_nchw.reshape(B, ncls).astype(jnp.float32)
    zcat = jnp.concatenate([z, lab], axis=-1)

    # Fused inital_1 + inital_2 + cat + BN + LeakyReLU  ->  (B, 4, 4, c0p)
    h = _initial_block(zcat, packed["w0"], packed["g0"], packed["b0"], c0p)

    h = _up_block_bn(h, packed["w_ct1"], packed["g_ct1"], packed["b_ct1"])
    h = _up_block_bn(h, packed["w_ct2"], packed["g_ct2"], packed["b_ct2"])
    h = _up_block_bn(h, packed["w_ct3"], packed["g_ct3"], packed["b_ct3"])

    # Final ConvTranspose2d + Tanh (no BN): row-tiled parallel grid,
    # bf16 writeback, real channels sliced afterwards.
    out = _up_block_tanh(h, packed["w_out"])            # (B, 64, 64, coutp)
    out = out[..., :nc]                                 # (B, 64, 64, nc)
    return jnp.transpose(out, (0, 3, 1, 2)).astype(jnp.float32)   # NCHW f32


if __name__ == "__main__":
    # Small but consistent shapes: batch=2, nz=8, num_classes=4, ngf=8, nc=3
    B, NZ, NC, NGF, NUM_CLASSES = 2, 8, 3, 8, 4

    key = jax.random.PRNGKey(0)
    k_params, k_in, k_lab = jax.random.split(key, 3)

    params = init_params(k_params, NZ, NC, NGF, NUM_CLASSES)
    packed = pack_params(params)     # one-time weight packing (outside jit)

    z = jax.random.normal(k_in, (B, NZ, 1, 1), jnp.float32)
    label = jax.random.normal(k_lab, (B, NUM_CLASSES, 1, 1), jnp.float32)

    fwd = jax.jit(functools.partial(cnet_g1_forward, nc=NC))
    out = fwd(packed, z, label)
    jax.block_until_ready(out)

    assert out.shape == (B, NC, 64, 64), out.shape
    assert bool(jnp.all(jnp.isfinite(out)))
    print("KERNEL_OK")
</pallas_src>

<mosaic_0001>
module attributes {stable_mosaic.version = 11 : i64} {
  func.func @_initial_kernel(%arg0: i32, %arg1: memref<2x12xbf16, #tpu.memory_space<vmem>>, %arg2: memref<12x1024xbf16, #tpu.memory_space<vmem>>, %arg3: memref<1x64xf32, #tpu.memory_space<vmem>>, %arg4: memref<1x64xf32, #tpu.memory_space<vmem>>, %arg5: memref<2x1024xbf16, #tpu.memory_space<vmem>>) attributes {dimension_semantics = [#tpu.dimension_semantics<arbitrary>], iteration_bounds = array<i64: 1>, scalar_prefetch = 0 : i64, scratch_operands = 0 : i64, tpu.core_type = #tpu.core_type<tc>, window_params = [{pipeline_mode = #tpu.pipeline_mode<synchronous>, transform_indices = @transform_0, window_bounds = array<i64: 2, 12>}, {pipeline_mode = #tpu.pipeline_mode<synchronous>, transform_indices = @transform_1, window_bounds = array<i64: 12, 1024>}, {pipeline_mode = #tpu.pipeline_mode<synchronous>, transform_indices = @transform_2, window_bounds = array<i64: 1, 64>}, {pipeline_mode = #tpu.pipeline_mode<synchronous>, transform_indices = @transform_3, window_bounds = array<i64: 1, 64>}, {pipeline_mode = #tpu.pipeline_mode<synchronous>, transform_indices = @transform_4, window_bounds = array<i64: 2, 1024>}]} {
    %c0 = arith.constant 0 : index
    %c0_0 = arith.constant 0 : index
    %0 = vector.load %arg1[%c0, %c0_0] : memref<2x12xbf16, #tpu.memory_space<vmem>>, vector<2x12xbf16>
    %c0_1 = arith.constant 0 : index
    %c0_2 = arith.constant 0 : index
    %1 = vector.load %arg2[%c0_1, %c0_2] : memref<12x1024xbf16, #tpu.memory_space<vmem>>, vector<12x1024xbf16>
    %cst = arith.constant dense<0.000000e+00> : vector<2x1024xf32>
    %2 = tpu.matmul %0, %1, %cst {dimension_numbers = #tpu.dot_dimension_numbers<[1], [0], [0], [1], [0, 0, 1, 1], [], []>} : vector<2x12xbf16>, vector<12x1024xbf16>, vector<2x1024xf32> -> vector<2x1024xf32>
    %cst_3 = arith.constant dense<0.000000e+00> : vector<1024xf32>
    %3 = vector.multi_reduction <add>, %2, %cst_3 [0] : vector<2x1024xf32> to vector<1024xf32>
    %4 = vector.shape_cast %3 : vector<1024xf32> to vector<1x1024xf32>
    %5 = arith.mulf %2, %2 : vector<2x1024xf32>
    %cst_4 = arith.constant dense<0.000000e+00> : vector<1024xf32>
    %6 = vector.multi_reduction <add>, %5, %cst_4 [0] : vector<2x1024xf32> to vector<1024xf32>
    %7 = vector.shape_cast %6 : vector<1024xf32> to vector<1x1024xf32>
    %8 = vector.extract_strided_slice %4 {offsets = [0, 0], sizes = [1, 64], strides = [1, 1]} : vector<1x1024xf32> to vector<1x64xf32>
    %9 = vector.extract_strided_slice %7 {offsets = [0, 0], sizes = [1, 64], strides = [1, 1]} : vector<1x1024xf32> to vector<1x64xf32>
    %10 = vector.extract_strided_slice %4 {offsets = [0, 64], sizes = [1, 64], strides = [1, 1]} : vector<1x1024xf32> to vector<1x64xf32>
    %11 = arith.addf %8, %10 : vector<1x64xf32>
    %12 = vector.extract_strided_slice %7 {offsets = [0, 64], sizes = [1, 64], strides = [1, 1]} : vector<1x1024xf32> to vector<1x64xf32>
    %13 = arith.addf %9, %12 : vector<1x64xf32>
    %14 = vector.extract_strided_slice %4 {offsets = [0, 128], sizes = [1, 64], strides = [1, 1]} : vector<1x1024xf32> to vector<1x64xf32>
    %15 = arith.addf %11, %14 : vector<1x64xf32>
    %16 = vector.extract_strided_slice %7 {offsets = [0, 128], sizes = [1, 64], strides = [1, 1]} : vector<1x1024xf32> to vector<1x64xf32>
    %17 = arith.addf %13, %16 : vector<1x64xf32>
    %18 = vector.extract_strided_slice %4 {offsets = [0, 192], sizes = [1, 64], strides = [1, 1]} : vector<1x1024xf32> to vector<1x64xf32>
    %19 = arith.addf %15, %18 : vector<1x64xf32>
    %20 = vector.extract_strided_slice %7 {offsets = [0, 192], sizes = [1, 64], strides = [1, 1]} : vector<1x1024xf32> to vector<1x64xf32>
    %21 = arith.addf %17, %20 : vector<1x64xf32>
    %22 = vector.extract_strided_slice %4 {offsets = [0, 256], sizes = [1, 64], strides = [1, 1]} : vector<1x1024xf32> to vector<1x64xf32>
    %23 = arith.addf %19, %22 : vector<1x64xf32>
    %24 = vector.extract_strided_slice %7 {offsets = [0, 256], sizes = [1, 64], strides = [1, 1]} : vector<1x1024xf32> to vector<1x64xf32>
    %25 = arith.addf %21, %24 : vector<1x64xf32>
    %26 = vector.extract_strided_slice %4 {offsets = [0, 320], sizes = [1, 64], strides = [1, 1]} : vector<1x1024xf32> to vector<1x64xf32>
    %27 = arith.addf %23, %26 : vector<1x64xf32>
    %28 = vector.extract_strided_slice %7 {offsets = [0, 320], sizes = [1, 64], strides = [1, 1]} : vector<1x1024xf32> to vector<1x64xf32>
    %29 = arith.addf %25, %28 : vector<1x64xf32>
    %30 = vector.extract_strided_slice %4 {offsets = [0, 384], sizes = [1, 64], strides = [1, 1]} : vector<1x1024xf32> to vector<1x64xf32>
    %31 = arith.addf %27, %30 : vector<1x64xf32>
    %32 = vector.extract_strided_slice %7 {offsets = [0, 384], sizes = [1, 64], strides = [1, 1]} : vector<1x1024xf32> to vector<1x64xf32>
    %33 = arith.addf %29, %32 : vector<1x64xf32>
    %34 = vector.extract_strided_slice %4 {offsets = [0, 448], sizes = [1, 64], strides = [1, 1]} : vector<1x1024xf32> to vector<1x64xf32>
    %35 = arith.addf %31, %34 : vector<1x64xf32>
    %36 = vector.extract_strided_slice %7 {offsets = [0, 448], sizes = [1, 64], strides = [1, 1]} : vector<1x1024xf32> to vector<1x64xf32>
    %37 = arith.addf %33, %36 : vector<1x64xf32>
    %38 = vector.extract_strided_slice %4 {offsets = [0, 512], sizes = [1, 64], strides = [1, 1]} : vector<1x1024xf32> to vector<1x64xf32>
    %39 = arith.addf %35, %38 : vector<1x64xf32>
    %40 = vector.extract_strided_slice %7 {offsets = [0, 512], sizes = [1, 64], strides = [1, 1]} : vector<1x1024xf32> to vector<1x64xf32>
    %41 = arith.addf %37, %40 : vector<1x64xf32>
    %42 = vector.extract_strided_slice %4 {offsets = [0, 576], sizes = [1, 64], strides = [1, 1]} : vector<1x1024xf32> to vector<1x64xf32>
    %43 = arith.addf %39, %42 : vector<1x64xf32>
    %44 = vector.extract_strided_slice %7 {offsets = [0, 576], sizes = [1, 64], strides = [1, 1]} : vector<1x1024xf32> to vector<1x64xf32>
    %45 = arith.addf %41, %44 : vector<1x64xf32>
    %46 = vector.extract_strided_slice %4 {offsets = [0, 640], sizes = [1, 64], strides = [1, 1]} : vector<1x1024xf32> to vector<1x64xf32>
    %47 = arith.addf %43, %46 : vector<1x64xf32>
    %48 = vector.extract_strided_slice %7 {offsets = [0, 640], sizes = [1, 64], strides = [1, 1]} : vector<1x1024xf32> to vector<1x64xf32>
    %49 = arith.addf %45, %48 : vector<1x64xf32>
    %50 = vector.extract_strided_slice %4 {offsets = [0, 704], sizes = [1, 64], strides = [1, 1]} : vector<1x1024xf32> to vector<1x64xf32>
    %51 = arith.addf %47, %50 : vector<1x64xf32>
    %52 = vector.extract_strided_slice %7 {offsets = [0, 704], sizes = [1, 64], strides = [1, 1]} : vector<1x1024xf32> to vector<1x64xf32>
    %53 = arith.addf %49, %52 : vector<1x64xf32>
    %54 = vector.extract_strided_slice %4 {offsets = [0, 768], sizes = [1, 64], strides = [1, 1]} : vector<1x1024xf32> to vector<1x64xf32>
    %55 = arith.addf %51, %54 : vector<1x64xf32>
    %56 = vector.extract_strided_slice %7 {offsets = [0, 768], sizes = [1, 64], strides = [1, 1]} : vector<1x1024xf32> to vector<1x64xf32>
    %57 = arith.addf %53, %56 : vector<1x64xf32>
    %58 = vector.extract_strided_slice %4 {offsets = [0, 832], sizes = [1, 64], strides = [1, 1]} : vector<1x1024xf32> to vector<1x64xf32>
    %59 = arith.addf %55, %58 : vector<1x64xf32>
    %60 = vector.extract_strided_slice %7 {offsets = [0, 832], sizes = [1, 64], strides = [1, 1]} : vector<1x1024xf32> to vector<1x64xf32>
    %61 = arith.addf %57, %60 : vector<1x64xf32>
    %62 = vector.extract_strided_slice %4 {offsets = [0, 896], sizes = [1, 64], strides = [1, 1]} : vector<1x1024xf32> to vector<1x64xf32>
    %63 = arith.addf %59, %62 : vector<1x64xf32>
    %64 = vector.extract_strided_slice %7 {offsets = [0, 896], sizes = [1, 64], strides = [1, 1]} : vector<1x1024xf32> to vector<1x64xf32>
    %65 = arith.addf %61, %64 : vector<1x64xf32>
    %66 = vector.extract_strided_slice %4 {offsets = [0, 960], sizes = [1, 64], strides = [1, 1]} : vector<1x1024xf32> to vector<1x64xf32>
    %67 = arith.addf %63, %66 : vector<1x64xf32>
    %68 = vector.extract_strided_slice %7 {offsets = [0, 960], sizes = [1, 64], strides = [1, 1]} : vector<1x1024xf32> to vector<1x64xf32>
    %69 = arith.addf %65, %68 : vector<1x64xf32>
    %cst_5 = arith.constant 3.125000e-02 : f32
    %70 = vector.broadcast %cst_5 : f32 to vector<1x64xf32>
    %71 = arith.mulf %67, %70 : vector<1x64xf32>
    %cst_6 = arith.constant 3.125000e-02 : f32
    %72 = vector.broadcast %cst_6 : f32 to vector<1x64xf32>
    %73 = arith.mulf %69, %72 : vector<1x64xf32>
    %74 = arith.mulf %71, %71 : vector<1x64xf32>
    %75 = arith.subf %73, %74 : vector<1x64xf32>
    %cst_7 = arith.constant 0.000000e+00 : f32
    %76 = vector.broadcast %cst_7 : f32 to vector<1x64xf32>
    %77 = arith.maximumf %75, %76 : vector<1x64xf32>
    %c0_8 = arith.constant 0 : index
    %c0_9 = arith.constant 0 : index
    %78 = vector.load %arg3[%c0_8, %c0_9] : memref<1x64xf32, #tpu.memory_space<vmem>>, vector<1x64xf32>
    %cst_10 = arith.constant 9.99999974E-6 : f32
    %79 = vector.broadcast %cst_10 : f32 to vector<1x64xf32>
    %80 = arith.addf %77, %79 : vector<1x64xf32>
    %81 = math.rsqrt %80 : vector<1x64xf32>
    %82 = arith.mulf %78, %81 : vector<1x64xf32>
    %c0_11 = arith.constant 0 : index
    %c0_12 = arith.constant 0 : index
    %83 = vector.load %arg4[%c0_11, %c0_12] : memref<1x64xf32, #tpu.memory_space<vmem>>, vector<1x64xf32>
    %84 = arith.mulf %71, %82 : vector<1x64xf32>
    %85 = arith.subf %83, %84 : vector<1x64xf32>
    %86 = tpu.concatenate %82, %82, %82, %82, %82, %82, %82, %82, %82, %82, %82, %82, %82, %82, %82, %82 in 1 : vector<1x64xf32>, vector<1x64xf32>, vector<1x64xf32>, vector<1x64xf32>, vector<1x64xf32>, vector<1x64xf32>, vector<1x64xf32>, vector<1x64xf32>, vector<1x64xf32>, vector<1x64xf32>, vector<1x64xf32>, vector<1x64xf32>, vector<1x64xf32>, vector<1x64xf32>, vector<1x64xf32>, vector<1x64xf32> -> vector<1x1024xf32>
    %87 = tpu.concatenate %85, %85, %85, %85, %85, %85, %85, %85, %85, %85, %85, %85, %85, %85, %85, %85 in 1 : vector<1x64xf32>, vector<1x64xf32>, vector<1x64xf32>, vector<1x64xf32>, vector<1x64xf32>, vector<1x64xf32>, vector<1x64xf32>, vector<1x64xf32>, vector<1x64xf32>, vector<1x64xf32>, vector<1x64xf32>, vector<1x64xf32>, vector<1x64xf32>, vector<1x64xf32>, vector<1x64xf32>, vector<1x64xf32> -> vector<1x1024xf32>
    %88 = vector.broadcast %86 : vector<1x1024xf32> to vector<2x1024xf32>
    %89 = arith.mulf %2, %88 : vector<2x1024xf32>
    %90 = vector.broadcast %87 : vector<1x1024xf32> to vector<2x1024xf32>
    %91 = arith.addf %89, %90 : vector<2x1024xf32>
    %cst_13 = arith.constant 0.000000e+00 : f32
    %92 = vector.broadcast %cst_13 : f32 to vector<2x1024xf32>
    %93 = arith.cmpf oge, %91, %92 : vector<2x1024xf32>
    %cst_14 = arith.constant 2.000000e-01 : f32
    %94 = vector.broadcast %cst_14 : f32 to vector<2x1024xf32>
    %95 = arith.mulf %94, %91 : vector<2x1024xf32>
    %96 = arith.select %93, %91, %95 : vector<2x1024xi1>, vector<2x1024xf32>
    %97 = arith.truncf %96 : vector<2x1024xf32> to vector<2x1024xbf16>
    %c0_15 = arith.constant 0 : index
    %c0_16 = arith.constant 0 : index
    %98 = vector.load %arg5[%c0_15, %c0_16] : memref<2x1024xbf16, #tpu.memory_space<vmem>>, vector<2x1024xbf16>
    tpu.vector_store %arg5[%c0_15, %c0_16], %97 {strides = array<i32>} : memref<2x1024xbf16, #tpu.memory_space<vmem>>, vector<2x1024xbf16>,
    return
  }
  func.func @transform_0(%arg0: i32) -> (i32, i32) {
    %c0_i32 = arith.constant 0 : i32
    %c0_i32_0 = arith.constant 0 : i32
    %c0_i32_1 = arith.constant 0 : i32
    return %c0_i32, %c0_i32_0 : i32, i32
  }
  func.func @transform_1(%arg0: i32) -> (i32, i32) {
    %c0_i32 = arith.constant 0 : i32
    %c0_i32_0 = arith.constant 0 : i32
    %c0_i32_1 = arith.constant 0 : i32
    return %c0_i32, %c0_i32_0 : i32, i32
  }
  func.func @transform_2(%arg0: i32) -> (i32, i32) {
    %c0_i32 = arith.constant 0 : i32
    %c0_i32_0 = arith.constant 0 : i32
    %c0_i32_1 = arith.constant 0 : i32
    return %c0_i32, %c0_i32_0 : i32, i32
  }
  func.func @transform_3(%arg0: i32) -> (i32, i32) {
    %c0_i32 = arith.constant 0 : i32
    %c0_i32_0 = arith.constant 0 : i32
    %c0_i32_1 = arith.constant 0 : i32
    return %c0_i32, %c0_i32_0 : i32, i32
  }
  func.func @transform_4(%arg0: i32) -> (i32, i32) {
    %c0_i32 = arith.constant 0 : i32
    %c0_i32_0 = arith.constant 0 : i32
    %c0_i32_1 = arith.constant 0 : i32
    return %c0_i32, %c0_i32_0 : i32, i32
  }
}

module attributes {stable_mosaic.version = 11 : i64} {
  func.func @_up_bn_kernel(%arg0: i32, %arg1: memref<32x576xbf16, #tpu.memory_space<vmem>>, %arg2: memref<576x128xbf16, #tpu.memory_space<vmem>>, %arg3: memref<1x32xf32, #tpu.memory_space<vmem>>, %arg4: memref<1x32xf32, #tpu.memory_space<vmem>>, %arg5: memref<32x128xbf16, #tpu.memory_space<vmem>>) attributes {dimension_semantics = [#tpu.dimension_semantics<arbitrary>], iteration_bounds = array<i64: 1>, scalar_prefetch = 0 : i64, scratch_operands = 0 : i64, tpu.core_type = #tpu.core_type<tc>, window_params = [{pipeline_mode = #tpu.pipeline_mode<synchronous>, transform_indices = @transform_0, window_bounds = array<i64: 32, 576>}, {pipeline_mode = #tpu.pipeline_mode<synchronous>, transform_indices = @transform_1, window_bounds = array<i64: 576, 128>}, {pipeline_mode = #tpu.pipeline_mode<synchronous>, transform_indices = @transform_2, window_bounds = array<i64: 1, 32>}, {pipeline_mode = #tpu.pipeline_mode<synchronous>, transform_indices = @transform_3, window_bounds = array<i64: 1, 32>}, {pipeline_mode = #tpu.pipeline_mode<synchronous>, transform_indices = @transform_4, window_bounds = array<i64: 32, 128>}]} {
    %c0 = arith.constant 0 : index
    %c0_0 = arith.constant 0 : index
    %0 = vector.load %arg1[%c0, %c0_0] : memref<32x576xbf16, #tpu.memory_space<vmem>>, vector<32x576xbf16>
    %c0_1 = arith.constant 0 : index
    %c0_2 = arith.constant 0 : index
    %1 = vector.load %arg2[%c0_1, %c0_2] : memref<576x128xbf16, #tpu.memory_space<vmem>>, vector<576x128xbf16>
    %cst = arith.constant dense<0.000000e+00> : vector<32x128xf32>
    %2 = tpu.matmul %0, %1, %cst {dimension_numbers = #tpu.dot_dimension_numbers<[1], [0], [0], [1], [0, 0, 1, 1], [], []>} : vector<32x576xbf16>, vector<576x128xbf16>, vector<32x128xf32> -> vector<32x128xf32>
    %cst_3 = arith.constant dense<0.000000e+00> : vector<128xf32>
    %3 = vector.multi_reduction <add>, %2, %cst_3 [0] : vector<32x128xf32> to vector<128xf32>
    %4 = vector.shape_cast %3 : vector<128xf32> to vector<1x128xf32>
    %5 = arith.mulf %2, %2 : vector<32x128xf32>
    %cst_4 = arith.constant dense<0.000000e+00> : vector<128xf32>
    %6 = vector.multi_reduction <add>, %5, %cst_4 [0] : vector<32x128xf32> to vector<128xf32>
    %7 = vector.shape_cast %6 : vector<128xf32> to vector<1x128xf32>
    %8 = vector.extract_strided_slice %4 {offsets = [0, 0], sizes = [1, 32], strides = [1, 1]} : vector<1x128xf32> to vector<1x32xf32>
    %9 = vector.extract_strided_slice %7 {offsets = [0, 0], sizes = [1, 32], strides = [1, 1]} : vector<1x128xf32> to vector<1x32xf32>
    %10 = vector.extract_strided_slice %4 {offsets = [0, 32], sizes = [1, 32], strides = [1, 1]} : vector<1x128xf32> to vector<1x32xf32>
    %11 = arith.addf %8, %10 : vector<1x32xf32>
    %12 = vector.extract_strided_slice %7 {offsets = [0, 32], sizes = [1, 32], strides = [1, 1]} : vector<1x128xf32> to vector<1x32xf32>
    %13 = arith.addf %9, %12 : vector<1x32xf32>
    %14 = vector.extract_strided_slice %4 {offsets = [0, 64], sizes = [1, 32], strides = [1, 1]} : vector<1x128xf32> to vector<1x32xf32>
    %15 = arith.addf %11, %14 : vector<1x32xf32>
    %16 = vector.extract_strided_slice %7 {offsets = [0, 64], sizes = [1, 32], strides = [1, 1]} : vector<1x128xf32> to vector<1x32xf32>
    %17 = arith.addf %13, %16 : vector<1x32xf32>
    %18 = vector.extract_strided_slice %4 {offsets = [0, 96], sizes = [1, 32], strides = [1, 1]} : vector<1x128xf32> to vector<1x32xf32>
    %19 = arith.addf %15, %18 : vector<1x32xf32>
    %20 = vector.extract_strided_slice %7 {offsets = [0, 96], sizes = [1, 32], strides = [1, 1]} : vector<1x128xf32> to vector<1x32xf32>
    %21 = arith.addf %17, %20 : vector<1x32xf32>
    %cst_5 = arith.constant 7.812500e-03 : f32
    %22 = vector.broadcast %cst_5 : f32 to vector<1x32xf32>
    %23 = arith.mulf %19, %22 : vector<1x32xf32>
    %cst_6 = arith.constant 7.812500e-03 : f32
    %24 = vector.broadcast %cst_6 : f32 to vector<1x32xf32>
    %25 = arith.mulf %21, %24 : vector<1x32xf32>
    %26 = arith.mulf %23, %23 : vector<1x32xf32>
    %27 = arith.subf %25, %26 : vector<1x32xf32>
    %cst_7 = arith.constant 0.000000e+00 : f32
    %28 = vector.broadcast %cst_7 : f32 to vector<1x32xf32>
    %29 = arith.maximumf %27, %28 : vector<1x32xf32>
    %c0_8 = arith.constant 0 : index
    %c0_9 = arith.constant 0 : index
    %30 = vector.load %arg3[%c0_8, %c0_9] : memref<1x32xf32, #tpu.memory_space<vmem>>, vector<1x32xf32>
    %cst_10 = arith.constant 9.99999974E-6 : f32
    %31 = vector.broadcast %cst_10 : f32 to vector<1x32xf32>
    %32 = arith.addf %29, %31 : vector<1x32xf32>
    %33 = math.rsqrt %32 : vector<1x32xf32>
    %34 = arith.mulf %30, %33 : vector<1x32xf32>
    %c0_11 = arith.constant 0 : index
    %c0_12 = arith.constant 0 : index
    %35 = vector.load %arg4[%c0_11, %c0_12] : memref<1x32xf32, #tpu.memory_space<vmem>>, vector<1x32xf32>
    %36 = arith.mulf %23, %34 : vector<1x32xf32>
    %37 = arith.subf %35, %36 : vector<1x32xf32>
    %38 = tpu.concatenate %34, %34, %34, %34 in 1 : vector<1x32xf32>, vector<1x32xf32>, vector<1x32xf32>, vector<1x32xf32> -> vector<1x128xf32>
    %39 = tpu.concatenate %37, %37, %37, %37 in 1 : vector<1x32xf32>, vector<1x32xf32>, vector<1x32xf32>, vector<1x32xf32> -> vector<1x128xf32>
    %40 = vector.broadcast %38 : vector<1x128xf32> to vector<32x128xf32>
    %41 = arith.mulf %2, %40 : vector<32x128xf32>
    %42 = vector.broadcast %39 : vector<1x128xf32> to vector<32x128xf32>
    %43 = arith.addf %41, %42 : vector<32x128xf32>
    %cst_13 = arith.constant 0.000000e+00 : f32
    %44 = vector.broadcast %cst_13 : f32 to vector<32x128xf32>
    %45 = arith.cmpf oge, %43, %44 : vector<32x128xf32>
    %cst_14 = arith.constant 2.000000e-01 : f32
    %46 = vector.broadcast %cst_14 : f32 to vector<32x128xf32>
    %47 = arith.mulf %46, %43 : vector<32x128xf32>
    %48 = arith.select %45, %43, %47 : vector<32x128xi1>, vector<32x128xf32>
    %49 = arith.truncf %48 : vector<32x128xf32> to vector<32x128xbf16>
    %c0_15 = arith.constant 0 : index
    %c0_16 = arith.constant 0 : index
    %50 = vector.load %arg5[%c0_15, %c0_16] : memref<32x128xbf16, #tpu.memory_space<vmem>>, vector<32x128xbf16>
    tpu.vector_store %arg5[%c0_15, %c0_16], %49 {strides = array<i32>} : memref<32x128xbf16, #tpu.memory_space<vmem>>, vector<32x128xbf16>,
    return
  }
  func.func @transform_0(%arg0: i32) -> (i32, i32) {
    %c0_i32 = arith.constant 0 : i32
    %c0_i32_0 = arith.constant 0 : i32
    %c0_i32_1 = arith.constant 0 : i32
    return %c0_i32, %c0_i32_0 : i32, i32
  }
  func.func @transform_1(%arg0: i32) -> (i32, i32) {
    %c0_i32 = arith.constant 0 : i32
    %c0_i32_0 = arith.constant 0 : i32
    %c0_i32_1 = arith.constant 0 : i32
    return %c0_i32, %c0_i32_0 : i32, i32
  }
  func.func @transform_2(%arg0: i32) -> (i32, i32) {
    %c0_i32 = arith.constant 0 : i32
    %c0_i32_0 = arith.constant 0 : i32
    %c0_i32_1 = arith.constant 0 : i32
    return %c0_i32, %c0_i32_0 : i32, i32
  }
  func.func @transform_3(%arg0: i32) -> (i32, i32) {
    %c0_i32 = arith.constant 0 : i32
    %c0_i32_0 = arith.constant 0 : i32
    %c0_i32_1 = arith.constant 0 : i32
    return %c0_i32, %c0_i32_0 : i32, i32
  }
  func.func @transform_4(%arg0: i32) -> (i32, i32) {
    %c0_i32 = arith.constant 0 : i32
    %c0_i32_0 = arith.constant 0 : i32
    %c0_i32_1 = arith.constant 0 : i32
    return %c0_i32, %c0_i32_0 : i32, i32
  }
}

module attributes {stable_mosaic.version = 11 : i64} {
  func.func @_up_bn_kernel(%arg0: i32, %arg1: memref<128x288xbf16, #tpu.memory_space<vmem>>, %arg2: memref<288x128xbf16, #tpu.memory_space<vmem>>, %arg3: memref<1x32xf32, #tpu.memory_space<vmem>>, %arg4: memref<1x32xf32, #tpu.memory_space<vmem>>, %arg5: memref<128x128xbf16, #tpu.memory_space<vmem>>) attributes {dimension_semantics = [#tpu.dimension_semantics<arbitrary>], iteration_bounds = array<i64: 1>, scalar_prefetch = 0 : i64, scratch_operands = 0 : i64, tpu.core_type = #tpu.core_type<tc>, window_params = [{pipeline_mode = #tpu.pipeline_mode<synchronous>, transform_indices = @transform_0, window_bounds = array<i64: 128, 288>}, {pipeline_mode = #tpu.pipeline_mode<synchronous>, transform_indices = @transform_1, window_bounds = array<i64: 288, 128>}, {pipeline_mode = #tpu.pipeline_mode<synchronous>, transform_indices = @transform_2, window_bounds = array<i64: 1, 32>}, {pipeline_mode = #tpu.pipeline_mode<synchronous>, transform_indices = @transform_3, window_bounds = array<i64: 1, 32>}, {pipeline_mode = #tpu.pipeline_mode<synchronous>, transform_indices = @transform_4, window_bounds = array<i64: 128, 128>}]} {
    %c0 = arith.constant 0 : index
    %c0_0 = arith.constant 0 : index
    %0 = vector.load %arg1[%c0, %c0_0] : memref<128x288xbf16, #tpu.memory_space<vmem>>, vector<128x288xbf16>
    %c0_1 = arith.constant 0 : index
    %c0_2 = arith.constant 0 : index
    %1 = vector.load %arg2[%c0_1, %c0_2] : memref<288x128xbf16, #tpu.memory_space<vmem>>, vector<288x128xbf16>
    %cst = arith.constant dense<0.000000e+00> : vector<128x128xf32>
    %2 = tpu.matmul %0, %1, %cst {dimension_numbers = #tpu.dot_dimension_numbers<[1], [0], [0], [1], [0, 0, 1, 1], [], []>} : vector<128x288xbf16>, vector<288x128xbf16>, vector<128x128xf32> -> vector<128x128xf32>
    %cst_3 = arith.constant dense<0.000000e+00> : vector<128xf32>
    %3 = vector.multi_reduction <add>, %2, %cst_3 [0] : vector<128x128xf32> to vector<128xf32>
    %4 = vector.shape_cast %3 : vector<128xf32> to vector<1x128xf32>
    %5 = arith.mulf %2, %2 : vector<128x128xf32>
    %cst_4 = arith.constant dense<0.000000e+00> : vector<128xf32>
    %6 = vector.multi_reduction <add>, %5, %cst_4 [0] : vector<128x128xf32> to vector<128xf32>
    %7 = vector.shape_cast %6 : vector<128xf32> to vector<1x128xf32>
    %8 = vector.extract_strided_slice %4 {offsets = [0, 0], sizes = [1, 32], strides = [1, 1]} : vector<1x128xf32> to vector<1x32xf32>
    %9 = vector.extract_strided_slice %7 {offsets = [0, 0], sizes = [1, 32], strides = [1, 1]} : vector<1x128xf32> to vector<1x32xf32>
    %10 = vector.extract_strided_slice %4 {offsets = [0, 32], sizes = [1, 32], strides = [1, 1]} : vector<1x128xf32> to vector<1x32xf32>
    %11 = arith.addf %8, %10 : vector<1x32xf32>
    %12 = vector.extract_strided_slice %7 {offsets = [0, 32], sizes = [1, 32], strides = [1, 1]} : vector<1x128xf32> to vector<1x32xf32>
    %13 = arith.addf %9, %12 : vector<1x32xf32>
    %14 = vector.extract_strided_slice %4 {offsets = [0, 64], sizes = [1, 32], strides = [1, 1]} : vector<1x128xf32> to vector<1x32xf32>
    %15 = arith.addf %11, %14 : vector<1x32xf32>
    %16 = vector.extract_strided_slice %7 {offsets = [0, 64], sizes = [1, 32], strides = [1, 1]} : vector<1x128xf32> to vector<1x32xf32>
    %17 = arith.addf %13, %16 : vector<1x32xf32>
    %18 = vector.extract_strided_slice %4 {offsets = [0, 96], sizes = [1, 32], strides = [1, 1]} : vector<1x128xf32> to vector<1x32xf32>
    %19 = arith.addf %15, %18 : vector<1x32xf32>
    %20 = vector.extract_strided_slice %7 {offsets = [0, 96], sizes = [1, 32], strides = [1, 1]} : vector<1x128xf32> to vector<1x32xf32>
    %21 = arith.addf %17, %20 : vector<1x32xf32>
    %cst_5 = arith.constant 0.001953125 : f32
    %22 = vector.broadcast %cst_5 : f32 to vector<1x32xf32>
    %23 = arith.mulf %19, %22 : vector<1x32xf32>
    %cst_6 = arith.constant 0.001953125 : f32
    %24 = vector.broadcast %cst_6 : f32 to vector<1x32xf32>
    %25 = arith.mulf %21, %24 : vector<1x32xf32>
    %26 = arith.mulf %23, %23 : vector<1x32xf32>
    %27 = arith.subf %25, %26 : vector<1x32xf32>
    %cst_7 = arith.constant 0.000000e+00 : f32
    %28 = vector.broadcast %cst_7 : f32 to vector<1x32xf32>
    %29 = arith.maximumf %27, %28 : vector<1x32xf32>
    %c0_8 = arith.constant 0 : index
    %c0_9 = arith.constant 0 : index
    %30 = vector.load %arg3[%c0_8, %c0_9] : memref<1x32xf32, #tpu.memory_space<vmem>>, vector<1x32xf32>
    %cst_10 = arith.constant 9.99999974E-6 : f32
    %31 = vector.broadcast %cst_10 : f32 to vector<1x32xf32>
    %32 = arith.addf %29, %31 : vector<1x32xf32>
    %33 = math.rsqrt %32 : vector<1x32xf32>
    %34 = arith.mulf %30, %33 : vector<1x32xf32>
    %c0_11 = arith.constant 0 : index
    %c0_12 = arith.constant 0 : index
    %35 = vector.load %arg4[%c0_11, %c0_12] : memref<1x32xf32, #tpu.memory_space<vmem>>, vector<1x32xf32>
    %36 = arith.mulf %23, %34 : vector<1x32xf32>
    %37 = arith.subf %35, %36 : vector<1x32xf32>
    %38 = tpu.concatenate %34, %34, %34, %34 in 1 : vector<1x32xf32>, vector<1x32xf32>, vector<1x32xf32>, vector<1x32xf32> -> vector<1x128xf32>
    %39 = tpu.concatenate %37, %37, %37, %37 in 1 : vector<1x32xf32>, vector<1x32xf32>, vector<1x32xf32>, vector<1x32xf32> -> vector<1x128xf32>
    %40 = vector.broadcast %38 : vector<1x128xf32> to vector<128x128xf32>
    %41 = arith.mulf %2, %40 : vector<128x128xf32>
    %42 = vector.broadcast %39 : vector<1x128xf32> to vector<128x128xf32>
    %43 = arith.addf %41, %42 : vector<128x128xf32>
    %cst_13 = arith.constant 0.000000e+00 : f32
    %44 = vector.broadcast %cst_13 : f32 to vector<128x128xf32>
    %45 = arith.cmpf oge, %43, %44 : vector<128x128xf32>
    %cst_14 = arith.constant 2.000000e-01 : f32
    %46 = vector.broadcast %cst_14 : f32 to vector<128x128xf32>
    %47 = arith.mulf %46, %43 : vector<128x128xf32>
    %48 = arith.select %45, %43, %47 : vector<128x128xi1>, vector<128x128xf32>
    %49 = arith.truncf %48 : vector<128x128xf32> to vector<128x128xbf16>
    %c0_15 = arith.constant 0 : index
    %c0_16 = arith.constant 0 : index
    %50 = vector.load %arg5[%c0_15, %c0_16] : memref<128x128xbf16, #tpu.memory_space<vmem>>, vector<128x128xbf16>
    tpu.vector_store %arg5[%c0_15, %c0_16], %49 {strides = array<i32>} : memref<128x128xbf16, #tpu.memory_space<vmem>>, vector<128x128xbf16>,
    return
  }
  func.func @transform_0(%arg0: i32) -> (i32, i32) {
    %c0_i32 = arith.constant 0 : i32
    %c0_i32_0 = arith.constant 0 : i32
    %c0_i32_1 = arith.constant 0 : i32
    return %c0_i32, %c0_i32_0 : i32, i32
  }
  func.func @transform_1(%arg0: i32) -> (i32, i32) {
    %c0_i32 = arith.constant 0 : i32
    %c0_i32_0 = arith.constant 0 : i32
    %c0_i32_1 = arith.constant 0 : i32
    return %c0_i32, %c0_i32_0 : i32, i32
  }
  func.func @transform_2(%arg0: i32) -> (i32, i32) {
    %c0_i32 = arith.constant 0 : i32
    %c0_i32_0 = arith.constant 0 : i32
    %c0_i32_1 = arith.constant 0 : i32
    return %c0_i32, %c0_i32_0 : i32, i32
  }
  func.func @transform_3(%arg0: i32) -> (i32, i32) {
    %c0_i32 = arith.constant 0 : i32
    %c0_i32_0 = arith.constant 0 : i32
    %c0_i32_1 = arith.constant 0 : i32
    return %c0_i32, %c0_i32_0 : i32, i32
  }
  func.func @transform_4(%arg0: i32) -> (i32, i32) {
    %c0_i32 = arith.constant 0 : i32
    %c0_i32_0 = arith.constant 0 : i32
    %c0_i32_1 = arith.constant 0 : i32
    return %c0_i32, %c0_i32_0 : i32, i32
  }
}

module attributes {stable_mosaic.version = 11 : i64} {
  func.func @_up_bn_kernel(%arg0: i32, %arg1: memref<512x288xbf16, #tpu.memory_space<vmem>>, %arg2: memref<288x128xbf16, #tpu.memory_space<vmem>>, %arg3: memref<1x32xf32, #tpu.memory_space<vmem>>, %arg4: memref<1x32xf32, #tpu.memory_space<vmem>>, %arg5: memref<512x128xbf16, #tpu.memory_space<vmem>>) attributes {dimension_semantics = [#tpu.dimension_semantics<arbitrary>], iteration_bounds = array<i64: 1>, scalar_prefetch = 0 : i64, scratch_operands = 0 : i64, tpu.core_type = #tpu.core_type<tc>, window_params = [{pipeline_mode = #tpu.pipeline_mode<synchronous>, transform_indices = @transform_0, window_bounds = array<i64: 512, 288>}, {pipeline_mode = #tpu.pipeline_mode<synchronous>, transform_indices = @transform_1, window_bounds = array<i64: 288, 128>}, {pipeline_mode = #tpu.pipeline_mode<synchronous>, transform_indices = @transform_2, window_bounds = array<i64: 1, 32>}, {pipeline_mode = #tpu.pipeline_mode<synchronous>, transform_indices = @transform_3, window_bounds = array<i64: 1, 32>}, {pipeline_mode = #tpu.pipeline_mode<synchronous>, transform_indices = @transform_4, window_bounds = array<i64: 512, 128>}]} {
    %c0 = arith.constant 0 : index
    %c0_0 = arith.constant 0 : index
    %0 = vector.load %arg1[%c0, %c0_0] : memref<512x288xbf16, #tpu.memory_space<vmem>>, vector<512x288xbf16>
    %c0_1 = arith.constant 0 : index
    %c0_2 = arith.constant 0 : index
    %1 = vector.load %arg2[%c0_1, %c0_2] : memref<288x128xbf16, #tpu.memory_space<vmem>>, vector<288x128xbf16>
    %cst = arith.constant dense<0.000000e+00> : vector<512x128xf32>
    %2 = tpu.matmul %0, %1, %cst {dimension_numbers = #tpu.dot_dimension_numbers<[1], [0], [0], [1], [0, 0, 1, 1], [], []>} : vector<512x288xbf16>, vector<288x128xbf16>, vector<512x128xf32> -> vector<512x128xf32>
    %cst_3 = arith.constant dense<0.000000e+00> : vector<128xf32>
    %3 = vector.multi_reduction <add>, %2, %cst_3 [0] : vector<512x128xf32> to vector<128xf32>
    %4 = vector.shape_cast %3 : vector<128xf32> to vector<1x128xf32>
    %5 = arith.mulf %2, %2 : vector<512x128xf32>
    %cst_4 = arith.constant dense<0.000000e+00> : vector<128xf32>
    %6 = vector.multi_reduction <add>, %5, %cst_4 [0] : vector<512x128xf32> to vector<128xf32>
    %7 = vector.shape_cast %6 : vector<128xf32> to vector<1x128xf32>
    %8 = vector.extract_strided_slice %4 {offsets = [0, 0], sizes = [1, 32], strides = [1, 1]} : vector<1x128xf32> to vector<1x32xf32>
    %9 = vector.extract_strided_slice %7 {offsets = [0, 0], sizes = [1, 32], strides = [1, 1]} : vector<1x128xf32> to vector<1x32xf32>
    %10 = vector.extract_strided_slice %4 {offsets = [0, 32], sizes = [1, 32], strides = [1, 1]} : vector<1x128xf32> to vector<1x32xf32>
    %11 = arith.addf %8, %10 : vector<1x32xf32>
    %12 = vector.extract_strided_slice %7 {offsets = [0, 32], sizes = [1, 32], strides = [1, 1]} : vector<1x128xf32> to vector<1x32xf32>
    %13 = arith.addf %9, %12 : vector<1x32xf32>
    %14 = vector.extract_strided_slice %4 {offsets = [0, 64], sizes = [1, 32], strides = [1, 1]} : vector<1x128xf32> to vector<1x32xf32>
    %15 = arith.addf %11, %14 : vector<1x32xf32>
    %16 = vector.extract_strided_slice %7 {offsets = [0, 64], sizes = [1, 32], strides = [1, 1]} : vector<1x128xf32> to vector<1x32xf32>
    %17 = arith.addf %13, %16 : vector<1x32xf32>
    %18 = vector.extract_strided_slice %4 {offsets = [0, 96], sizes = [1, 32], strides = [1, 1]} : vector<1x128xf32> to vector<1x32xf32>
    %19 = arith.addf %15, %18 : vector<1x32xf32>
    %20 = vector.extract_strided_slice %7 {offsets = [0, 96], sizes = [1, 32], strides = [1, 1]} : vector<1x128xf32> to vector<1x32xf32>
    %21 = arith.addf %17, %20 : vector<1x32xf32>
    %cst_5 = arith.constant 4.8828125E-4 : f32
    %22 = vector.broadcast %cst_5 : f32 to vector<1x32xf32>
    %23 = arith.mulf %19, %22 : vector<1x32xf32>
    %cst_6 = arith.constant 4.8828125E-4 : f32
    %24 = vector.broadcast %cst_6 : f32 to vector<1x32xf32>
    %25 = arith.mulf %21, %24 : vector<1x32xf32>
    %26 = arith.mulf %23, %23 : vector<1x32xf32>
    %27 = arith.subf %25, %26 : vector<1x32xf32>
    %cst_7 = arith.constant 0.000000e+00 : f32
    %28 = vector.broadcast %cst_7 : f32 to vector<1x32xf32>
    %29 = arith.maximumf %27, %28 : vector<1x32xf32>
    %c0_8 = arith.constant 0 : index
    %c0_9 = arith.constant 0 : index
    %30 = vector.load %arg3[%c0_8, %c0_9] : memref<1x32xf32, #tpu.memory_space<vmem>>, vector<1x32xf32>
    %cst_10 = arith.constant 9.99999974E-6 : f32
    %31 = vector.broadcast %cst_10 : f32 to vector<1x32xf32>
    %32 = arith.addf %29, %31 : vector<1x32xf32>
    %33 = math.rsqrt %32 : vector<1x32xf32>
    %34 = arith.mulf %30, %33 : vector<1x32xf32>
    %c0_11 = arith.constant 0 : index
    %c0_12 = arith.constant 0 : index
    %35 = vector.load %arg4[%c0_11, %c0_12] : memref<1x32xf32, #tpu.memory_space<vmem>>, vector<1x32xf32>
    %36 = arith.mulf %23, %34 : vector<1x32xf32>
    %37 = arith.subf %35, %36 : vector<1x32xf32>
    %38 = tpu.concatenate %34, %34, %34, %34 in 1 : vector<1x32xf32>, vector<1x32xf32>, vector<1x32xf32>, vector<1x32xf32> -> vector<1x128xf32>
    %39 = tpu.concatenate %37, %37, %37, %37 in 1 : vector<1x32xf32>, vector<1x32xf32>, vector<1x32xf32>, vector<1x32xf32> -> vector<1x128xf32>
    %40 = vector.broadcast %38 : vector<1x128xf32> to vector<512x128xf32>
    %41 = arith.mulf %2, %40 : vector<512x128xf32>
    %42 = vector.broadcast %39 : vector<1x128xf32> to vector<512x128xf32>
    %43 = arith.addf %41, %42 : vector<512x128xf32>
    %cst_13 = arith.constant 0.000000e+00 : f32
    %44 = vector.broadcast %cst_13 : f32 to vector<512x128xf32>
    %45 = arith.cmpf oge, %43, %44 : vector<512x128xf32>
    %cst_14 = arith.constant 2.000000e-01 : f32
    %46 = vector.broadcast %cst_14 : f32 to vector<512x128xf32>
    %47 = arith.mulf %46, %43 : vector<512x128xf32>
    %48 = arith.select %45, %43, %47 : vector<512x128xi1>, vector<512x128xf32>
    %49 = arith.truncf %48 : vector<512x128xf32> to vector<512x128xbf16>
    %c0_15 = arith.constant 0 : index
    %c0_16 = arith.constant 0 : index
    %50 = vector.load %arg5[%c0_15, %c0_16] : memref<512x128xbf16, #tpu.memory_space<vmem>>, vector<512x128xbf16>
    tpu.vector_store %arg5[%c0_15, %c0_16], %49 {strides = array<i32>} : memref<512x128xbf16, #tpu.memory_space<vmem>>, vector<512x128xbf16>,
    return
  }
  func.func @transform_0(%arg0: i32) -> (i32, i32) {
    %c0_i32 = arith.constant 0 : i32
    %c0_i32_0 = arith.constant 0 : i32
    %c0_i32_1 = arith.constant 0 : i32
    return %c0_i32, %c0_i32_0 : i32, i32
  }
  func.func @transform_1(%arg0: i32) -> (i32, i32) {
    %c0_i32 = arith.constant 0 : i32
    %c0_i32_0 = arith.constant 0 : i32
    %c0_i32_1 = arith.constant 0 : i32
    return %c0_i32, %c0_i32_0 : i32, i32
  }
  func.func @transform_2(%arg0: i32) -> (i32, i32) {
    %c0_i32 = arith.constant 0 : i32
    %c0_i32_0 = arith.constant 0 : i32
    %c0_i32_1 = arith.constant 0 : i32
    return %c0_i32, %c0_i32_0 : i32, i32
  }
  func.func @transform_3(%arg0: i32) -> (i32, i32) {
    %c0_i32 = arith.constant 0 : i32
    %c0_i32_0 = arith.constant 0 : i32
    %c0_i32_1 = arith.constant 0 : i32
    return %c0_i32, %c0_i32_0 : i32, i32
  }
  func.func @transform_4(%arg0: i32) -> (i32, i32) {
    %c0_i32 = arith.constant 0 : i32
    %c0_i32_0 = arith.constant 0 : i32
    %c0_i32_1 = arith.constant 0 : i32
    return %c0_i32, %c0_i32_0 : i32, i32
  }
}

module attributes {stable_mosaic.version = 11 : i64} {
  func.func @_up_tanh_kernel(%arg0: i32, %arg1: memref<512x288xbf16, #tpu.memory_space<vmem>>, %arg2: memref<288x128xbf16, #tpu.memory_space<vmem>>, %arg3: memref<512x128xbf16, #tpu.memory_space<vmem>>) attributes {dimension_semantics = [#tpu.dimension_semantics<parallel>], iteration_bounds = array<i64: 4>, scalar_prefetch = 0 : i64, scratch_operands = 0 : i64, tpu.core_type = #tpu.core_type<tc>, window_params = [{transform_indices = @transform_0, window_bounds = array<i64: 512, 288>}, {pipeline_mode = #tpu.pipeline_mode<synchronous>, transform_indices = @transform_1, window_bounds = array<i64: 288, 128>}, {transform_indices = @transform_2, window_bounds = array<i64: 512, 128>}]} {
    %c0 = arith.constant 0 : index
    %c0_0 = arith.constant 0 : index
    %0 = vector.load %arg1[%c0, %c0_0] : memref<512x288xbf16, #tpu.memory_space<vmem>>, vector<512x288xbf16>
    %c0_1 = arith.constant 0 : index
    %c0_2 = arith.constant 0 : index
    %1 = vector.load %arg2[%c0_1, %c0_2] : memref<288x128xbf16, #tpu.memory_space<vmem>>, vector<288x128xbf16>
    %cst = arith.constant dense<0.000000e+00> : vector<512x128xf32>
    %2 = tpu.matmul %0, %1, %cst {dimension_numbers = #tpu.dot_dimension_numbers<[1], [0], [0], [1], [0, 0, 1, 1], [], []>} : vector<512x288xbf16>, vector<288x128xbf16>, vector<512x128xf32> -> vector<512x128xf32>
    %3 = math.tanh %2 : vector<512x128xf32>
    %4 = arith.truncf %3 : vector<512x128xf32> to vector<512x128xbf16>
    %c0_3 = arith.constant 0 : index
    %c0_4 = arith.constant 0 : index
    %5 = vector.load %arg3[%c0_3, %c0_4] : memref<512x128xbf16, #tpu.memory_space<vmem>>, vector<512x128xbf16>
    tpu.vector_store %arg3[%c0_3, %c0_4], %4 {strides = array<i32>} : memref<512x128xbf16, #tpu.memory_space<vmem>>, vector<512x128xbf16>,
    return
  }
  func.func @transform_0(%arg0: i32) -> (i32, i32) {
    %c0_i32 = arith.constant 0 : i32
    %c0_i32_0 = arith.constant 0 : i32
    return %arg0, %c0_i32 : i32, i32
  }
  func.func @transform_1(%arg0: i32) -> (i32, i32) {
    %c0_i32 = arith.constant 0 : i32
    %c0_i32_0 = arith.constant 0 : i32
    %c0_i32_1 = arith.constant 0 : i32
    return %c0_i32, %c0_i32_0 : i32, i32
  }
  func.func @transform_2(%arg0: i32) -> (i32, i32) {
    %c0_i32 = arith.constant 0 : i32
    %c0_i32_0 = arith.constant 0 : i32
    return %arg0, %c0_i32 : i32, i32
  }
}

</mosaic_0001>

<llo_original>
// kernel: cnet_g1_forward.5
$region0: #{cnet_g1_forward.5}
  #allocation0 [shape = 'u32[]', space=smem, size = 0x4, offset = 0x4, fixed_abs, tag = 'smem constant byte address 0x4 - core index']
  #allocation1 [shape = 'u32[72,128]{1,0:T(1,128)}', space=vmem, size = 0x9000, scoped, tag = 'internal scratch']
  %s0 = inlined_call_operand.vmem [shape: bf16[2,12], index: 0, kind: input, shape index: {}]
  %s1 = inlined_call_operand.hbm [shape: bf16[12,1024], index: 1, kind: input, shape index: {}]
  %s2 = inlined_call_operand.hbm [shape: f32[1,64], index: 2, kind: input, shape index: {}]
  %s3 = inlined_call_operand.hbm [shape: f32[1,64], index: 3, kind: input, shape index: {}]
  %s4 = inlined_call_operand.vmem [shape: bf16[2,1024], index: 4, kind: output, shape index: {}]
  %s5 = sld [smem:[#allocation0]]
  $region38: #{cnet_g1_forward.5} parent=0
    _
  %s7 = ssub.s32 1, %s5
  %s8 = scalar_select 0, %s7, %s5
  $region1: #{cnet_g1_forward.5} parent=0
    #allocation2 [shape = 'u8[32768]{0}', space=vmem, size = 0x8000, scoped, tag = 'input window, operand 1, single buffered']
    #allocation3 [shape = 's32[1]{0}', space=sflag, size = 0x4, scoped, tag = 'scoped memory for cnet_g1_forward.5']
    #allocation4 [shape = 'u8[512]{0}', space=vmem, size = 0x400, scoped, tag = 'input window, operand 2, single buffered']
    #allocation5 [shape = 's32[1]{0}', space=sflag, size = 0x4, scoped, tag = 'scoped memory for cnet_g1_forward.5']
    #allocation6 [shape = 'u8[512]{0}', space=vmem, size = 0x400, scoped, tag = 'input window, operand 3, single buffered']
    %9 = vsyncpa [#allocation3], 0
    %10 = vsyncpa [#allocation5], 0
    // Predicated region
    $region2: #{cnet_g1_forward.5} parent=1 // pred_check
      _
    $region3: #{cnet_g1_forward.5} parent=1 // pred_check_branch
      %12 = sbr.rel (0) target = $region5
    $region4: #{cnet_g1_forward.5} parent=1 // pred_region
      _
    $region5: #{cnet_g1_forward.5} parent=1 // pred_fallthru
      _
    // Predicated region
    $region6: #{cnet_g1_forward.5} parent=1 // pred_check
      _
    $region7: #{cnet_g1_forward.5} parent=1 // pred_check_branch
      %14 = sbr.rel (0) target = $region9
    $region8: #{cnet_g1_forward.5} parent=1 // pred_region
      %16 = vsyncadd [#allocation3], 0
      %s17 = sshll.u32 %s1, 4
      %s18 = int_to_ptr.hbm [resolvable:$true] %s17
      %s19 = sshll.u32 [#allocation2], 4
      %s20 = int_to_ptr.vmem [resolvable:$true] %s19
      %25 = dma.hbm_to_vmem [thread:$0]  %s18, 1024, %s20, [#allocation3], 512, 512, 32
    $region9: #{cnet_g1_forward.5} parent=1 // pred_fallthru
      _
    // Predicated region
    $region10: #{cnet_g1_forward.5} parent=1 // pred_check
      _
    $region11: #{cnet_g1_forward.5} parent=1 // pred_check_branch
      %27 = sbr.rel (0) target = $region13
    $region12: #{cnet_g1_forward.5} parent=1 // pred_region
      %29 = vsyncadd [#allocation5], 0
      %s31 = sshll.u32 %s2, 4
      %s32 = int_to_ptr.hbm [resolvable:$true] %s31
      %s33 = sshll.u32 [#allocation4], 4
      %s34 = int_to_ptr.vmem [resolvable:$true] %s33
      %36 = dma.hbm_to_vmem [thread:$0]  %s32, 16, %s34, [#allocation5]
    $region13: #{cnet_g1_forward.5} parent=1 // pred_fallthru
      _
    // Predicated region
    $region14: #{cnet_g1_forward.5} parent=1 // pred_check
      _
    $region15: #{cnet_g1_forward.5} parent=1 // pred_check_branch
      %38 = sbr.rel (0) target = $region17
    $region16: #{cnet_g1_forward.5} parent=1 // pred_region
      %40 = vsyncadd [#allocation5], 0
      %s42 = sshll.u32 %s3, 4
      %s43 = int_to_ptr.hbm [resolvable:$true] %s42
      %s44 = sshll.u32 [#allocation6], 4
      %s45 = int_to_ptr.vmem [resolvable:$true] %s44
      %47 = dma.hbm_to_vmem [thread:$0]  %s43, 16, %s45, [#allocation5]
    $region17: #{cnet_g1_forward.5} parent=1 // pred_fallthru
      _
    // Predicated region
    $region18: #{cnet_g1_forward.5} parent=1 // pred_check
      _
    $region19: #{cnet_g1_forward.5} parent=1 // pred_check_branch
      %49 = sbr.rel (0) target = $region21
    $region20: #{cnet_g1_forward.5} parent=1 // pred_region
      %51 = dma.done [#allocation3], 1024
    $region21: #{cnet_g1_forward.5} parent=1 // pred_fallthru
      _
    // Predicated region
    $region22: #{cnet_g1_forward.5} parent=1 // pred_check
      _
    $region23: #{cnet_g1_forward.5} parent=1 // pred_check_branch
      %53 = sbr.rel (0) target = $region25
    $region24: #{cnet_g1_forward.5} parent=1 // pred_region
      %55 = dma.done [#allocation5], 16
    $region25: #{cnet_g1_forward.5} parent=1 // pred_fallthru
      _
    // Predicated region
    $region26: #{cnet_g1_forward.5} parent=1 // pred_check
      _
    $region27: #{cnet_g1_forward.5} parent=1 // pred_check_branch
      %57 = sbr.rel (0) target = $region29
    $region28: #{cnet_g1_forward.5} parent=1 // pred_region
      %59 = dma.done [#allocation5], 16
    $region29: #{cnet_g1_forward.5} parent=1 // pred_fallthru
      _
    %v61 = vld [vmem:[%s0] sm:$0x1]
    %v62 = vld [vmem:[#allocation2] sm:$0xff]
    %v63 = vld [vmem:[#allocation2 + $0x8] sm:$0xff]
    %v64 = vld [vmem:[#allocation2 + $0x10] sm:$0xff]
    %v65 = vld [vmem:[#allocation2 + $0x18] sm:$0xff]
    %v66 = vld [vmem:[#allocation2 + $0x20] sm:$0x33]
    %v67 = vld [vmem:[#allocation2 + $0x28] sm:$0x33]
    %v68 = vld [vmem:[#allocation2 + $0x30] sm:$0x33]
    %v69 = vld [vmem:[#allocation2 + $0x38] sm:$0x33]
    %v78 = vunpack.c.l.b16 %v62
    %v79 = vunpack.c.h.b16 %v62
    %v80 = vunpack.c.l.b16 %v63
    %v81 = vunpack.c.h.b16 %v63
    %v82 = vunpack.c.l.b16 %v64
    %v83 = vunpack.c.h.b16 %v64
    %v84 = vunpack.c.l.b16 %v65
    %v85 = vunpack.c.h.b16 %v65
    %v86 = vunpack.c.l.b16 %v66
    %v87 = vunpack.c.h.b16 %v66
    %v88 = vunpack.c.l.b16 %v67
    %v89 = vunpack.c.h.b16 %v67
    %v90 = vunpack.c.l.b16 %v68
    %v91 = vunpack.c.h.b16 %v68
    %v92 = vunpack.c.l.b16 %v69
    %v93 = vunpack.c.h.b16 %v69
    %v94 = vpack.c.b16 %v86, %v78
    %v95 = vpack.c.b16 %v87, %v79
    %v96 = vpack.c.b16 %v88, %v80
    %v97 = vpack.c.b16 %v89, %v81
    %v98 = vpack.c.b16 %v90, %v82
    %v99 = vpack.c.b16 %v91, %v83
    %v100 = vpack.c.b16 %v92, %v84
    %v101 = vpack.c.b16 %v93, %v85
    %vm102 = vcmask 97280
    %v104 = vsel %vm102, %v61, 0
    %vm106 = vcmask 1045504
    %v108 = vsel %vm106, %v94, 0
    %v111 = vsel %vm106, %v95, 0
    %v114 = vsel %vm106, %v96, 0
    %v117 = vsel %vm106, %v97, 0
    %v120 = vsel %vm106, %v98, 0
    %v123 = vsel %vm106, %v99, 0
    %v126 = vsel %vm106, %v100, 0
    %v129 = vsel %vm106, %v101, 0
    %131 = vmatpush.bf16.msra.mxu0 0
    %132 = vmatpush.bf16.msra.mxu0 0
    %133 = vmatpush.bf16.msra.mxu0 0
    %134 = vmatpush.bf16.msra.mxu0 0
    %135 = vmatpush.bf16.msra.mxu0 0
    %136 = vmatpush.bf16.msra.mxu0 0
    %137 = vmatpush.bf16.msra.mxu0 0
    %138 = vmatpush.bf16.msra.mxu0 %v108
    %139 = vmatmul.bf16.gmra.mxu0 %v104
    %v140 = vpop.f32.mrf.mxu0
    %v141 = vadd.f32 0.0, %v140
    %v142 = vpop.f32.mrf.mxu0
    %143 = vdwg.mxu0
    %144 = vmatpush.bf16.msra.mxu0 0
    %145 = vmatpush.bf16.msra.mxu0 0
    %146 = vmatpush.bf16.msra.mxu0 0
    %147 = vmatpush.bf16.msra.mxu0 0
    %148 = vmatpush.bf16.msra.mxu0 0
    %149 = vmatpush.bf16.msra.mxu0 0
    %150 = vmatpush.bf16.msra.mxu0 0
    %151 = vmatpush.bf16.msra.mxu0 %v111
    %152 = vmatmul.bf16.gmra.mxu0 %v104
    %v153 = vpop.f32.mrf.mxu0
    %v154 = vadd.f32 0.0, %v153
    %v155 = vpop.f32.mrf.mxu0
    %156 = vdwg.mxu0
    %157 = vmatpush.bf16.msra.mxu0 0
    %158 = vmatpush.bf16.msra.mxu0 0
    %159 = vmatpush.bf16.msra.mxu0 0
    %160 = vmatpush.bf16.msra.mxu0 0
    %161 = vmatpush.bf16.msra.mxu0 0
    %162 = vmatpush.bf16.msra.mxu0 0
    %163 = vmatpush.bf16.msra.mxu0 0
    %164 = vmatpush.bf16.msra.mxu0 %v114
    %165 = vmatmul.bf16.gmra.mxu0 %v104
    %v166 = vpop.f32.mrf.mxu0
    %v167 = vadd.f32 0.0, %v166
    %v168 = vpop.f32.mrf.mxu0
    %169 = vdwg.mxu0
    %170 = vmatpush.bf16.msra.mxu0 0
    %171 = vmatpush.bf16.msra.mxu0 0
    %172 = vmatpush.bf16.msra.mxu0 0
    %173 = vmatpush.bf16.msra.mxu0 0
    %174 = vmatpush.bf16.msra.mxu0 0
    %175 = vmatpush.bf16.msra.mxu0 0
    %176 = vmatpush.bf16.msra.mxu0 0
    %177 = vmatpush.bf16.msra.mxu0 %v117
    %178 = vmatmul.bf16.gmra.mxu0 %v104
    %v179 = vpop.f32.mrf.mxu0
    %v180 = vadd.f32 0.0, %v179
    %v181 = vpop.f32.mrf.mxu0
    %182 = vdwg.mxu0
    %183 = vmatpush.bf16.msra.mxu0 0
    %184 = vmatpush.bf16.msra.mxu0 0
    %185 = vmatpush.bf16.msra.mxu0 0
    %186 = vmatpush.bf16.msra.mxu0 0
    %187 = vmatpush.bf16.msra.mxu0 0
    %188 = vmatpush.bf16.msra.mxu0 0
    %189 = vmatpush.bf16.msra.mxu0 0
    %190 = vmatpush.bf16.msra.mxu0 %v120
    %191 = vmatmul.bf16.gmra.mxu0 %v104
    %v192 = vpop.f32.mrf.mxu0
    %v193 = vadd.f32 0.0, %v192
    %v194 = vpop.f32.mrf.mxu0
    %195 = vdwg.mxu0
    %196 = vmatpush.bf16.msra.mxu0 0
    %197 = vmatpush.bf16.msra.mxu0 0
    %198 = vmatpush.bf16.msra.mxu0 0
    %199 = vmatpush.bf16.msra.mxu0 0
    %200 = vmatpush.bf16.msra.mxu0 0
    %201 = vmatpush.bf16.msra.mxu0 0
    %202 = vmatpush.bf16.msra.mxu0 0
    %203 = vmatpush.bf16.msra.mxu0 %v123
    %204 = vmatmul.bf16.gmra.mxu0 %v104
    %v205 = vpop.f32.mrf.mxu0
    %v206 = vadd.f32 0.0, %v205
    %v207 = vpop.f32.mrf.mxu0
    %208 = vdwg.mxu0
    %209 = vmatpush.bf16.msra.mxu0 0
    %210 = vmatpush.bf16.msra.mxu0 0
    %211 = vmatpush.bf16.msra.mxu0 0
    %212 = vmatpush.bf16.msra.mxu0 0
    %213 = vmatpush.bf16.msra.mxu0 0
    %214 = vmatpush.bf16.msra.mxu0 0
    %215 = vmatpush.bf16.msra.mxu0 0
    %216 = vmatpush.bf16.msra.mxu0 %v126
    %217 = vmatmul.bf16.gmra.mxu0 %v104
    %v218 = vpop.f32.mrf.mxu0
    %v219 = vadd.f32 0.0, %v218
    %v220 = vpop.f32.mrf.mxu0
    %221 = vdwg.mxu0
    %222 = vmatpush.bf16.msra.mxu0 0
    %223 = vmatpush.bf16.msra.mxu0 0
    %224 = vmatpush.bf16.msra.mxu0 0
    %225 = vmatpush.bf16.msra.mxu0 0
    %226 = vmatpush.bf16.msra.mxu0 0
    %227 = vmatpush.bf16.msra.mxu0 0
    %228 = vmatpush.bf16.msra.mxu0 0
    %229 = vmatpush.bf16.msra.mxu0 %v129
    %230 = vmatmul.bf16.gmra.mxu0 %v104
    %v231 = vpop.f32.mrf.mxu0
    %v232 = vadd.f32 0.0, %v231
    %v233 = vpop.f32.mrf.mxu0
    %234 = vdwg.mxu0
    %vm235 = vcmask 1041408
    %v236 = vsel %vm235, %v141, 0.0
    %v237 = vrot.slane %v236, 4
    %v238 = vadd.f32 %v236, %v237
    %v239 = vrot.slane %v238, 2
    %v240 = vadd.f32 %v238, %v239
    %v241 = vrot.slane %v240, 1
    %v242 = vadd.f32 %v240, %v241
    %v243 = vsel %vm235, %v154, 0.0
    %v244 = vrot.slane %v243, 4
    %v245 = vadd.f32 %v243, %v244
    %v246 = vrot.slane %v245, 2
    %v247 = vadd.f32 %v245, %v246
    %v248 = vrot.slane %v247, 1
    %v249 = vadd.f32 %v247, %v248
    %v250 = vsel %vm235, %v167, 0.0
    %v251 = vrot.slane %v250, 4
    %v252 = vadd.f32 %v250, %v251
    %v253 = vrot.slane %v252, 2
    %v254 = vadd.f32 %v252, %v253
    %v255 = vrot.slane %v254, 1
    %v256 = vadd.f32 %v254, %v255
    %v257 = vsel %vm235, %v180, 0.0
    %v258 = vrot.slane %v257, 4
    %v259 = vadd.f32 %v257, %v258
    %v260 = vrot.slane %v259, 2
    %v261 = vadd.f32 %v259, %v260
    %v262 = vrot.slane %v261, 1
    %v263 = vadd.f32 %v261, %v262
    %v264 = vsel %vm235, %v193, 0.0
    %v265 = vrot.slane %v264, 4
    %v266 = vadd.f32 %v264, %v265
    %v267 = vrot.slane %v266, 2
    %v268 = vadd.f32 %v266, %v267
    %v269 = vrot.slane %v268, 1
    %v270 = vadd.f32 %v268, %v269
    %v271 = vsel %vm235, %v206, 0.0
    %v272 = vrot.slane %v271, 4
    %v273 = vadd.f32 %v271, %v272
    %v274 = vrot.slane %v273, 2
    %v275 = vadd.f32 %v273, %v274
    %v276 = vrot.slane %v275, 1
    %v277 = vadd.f32 %v275, %v276
    %v278 = vsel %vm235, %v219, 0.0
    %v279 = vrot.slane %v278, 4
    %v280 = vadd.f32 %v278, %v279
    %v281 = vrot.slane %v280, 2
    %v282 = vadd.f32 %v280, %v281
    %v283 = vrot.slane %v282, 1
    %v284 = vadd.f32 %v282, %v283
    %v285 = vsel %vm235, %v232, 0.0
    %v286 = vrot.slane %v285, 4
    %v287 = vadd.f32 %v285, %v286
    %v288 = vrot.slane %v287, 2
    %v289 = vadd.f32 %v287, %v288
    %v290 = vrot.slane %v289, 1
    %v291 = vadd.f32 %v289, %v290
    %v292 = vmul.f32 %v141, %v141
    %v293 = vmul.f32 %v154, %v154
    %v294 = vmul.f32 %v167, %v167
    %v295 = vmul.f32 %v180, %v180
    %v296 = vmul.f32 %v193, %v193
    %v297 = vmul.f32 %v206, %v206
    %v298 = vmul.f32 %v219, %v219
    %v299 = vmul.f32 %v232, %v232
    %v300 = vsel %vm235, %v292, 0.0
    %v301 = vrot.slane %v300, 4
    %v302 = vadd.f32 %v300, %v301
    %v303 = vrot.slane %v302, 2
    %v304 = vadd.f32 %v302, %v303
    %v305 = vrot.slane %v304, 1
    %v306 = vadd.f32 %v304, %v305
    %v307 = vsel %vm235, %v293, 0.0
    %v308 = vrot.slane %v307, 4
    %v309 = vadd.f32 %v307, %v308
    %v310 = vrot.slane %v309, 2
    %v311 = vadd.f32 %v309, %v310
    %v312 = vrot.slane %v311, 1
    %v313 = vadd.f32 %v311, %v312
    %v314 = vsel %vm235, %v294, 0.0
    %v315 = vrot.slane %v314, 4
    %v316 = vadd.f32 %v314, %v315
    %v317 = vrot.slane %v316, 2
    %v318 = vadd.f32 %v316, %v317
    %v319 = vrot.slane %v318, 1
    %v320 = vadd.f32 %v318, %v319
    %v321 = vsel %vm235, %v295, 0.0
    %v322 = vrot.slane %v321, 4
    %v323 = vadd.f32 %v321, %v322
    %v324 = vrot.slane %v323, 2
    %v325 = vadd.f32 %v323, %v324
    %v326 = vrot.slane %v325, 1
    %v327 = vadd.f32 %v325, %v326
    %v328 = vsel %vm235, %v296, 0.0
    %v329 = vrot.slane %v328, 4
    %v330 = vadd.f32 %v328, %v329
    %v331 = vrot.slane %v330, 2
    %v332 = vadd.f32 %v330, %v331
    %v333 = vrot.slane %v332, 1
    %v334 = vadd.f32 %v332, %v333
    %v335 = vsel %vm235, %v297, 0.0
    %v336 = vrot.slane %v335, 4
    %v337 = vadd.f32 %v335, %v336
    %v338 = vrot.slane %v337, 2
    %v339 = vadd.f32 %v337, %v338
    %v340 = vrot.slane %v339, 1
    %v341 = vadd.f32 %v339, %v340
    %v342 = vsel %vm235, %v298, 0.0
    %v343 = vrot.slane %v342, 4
    %v344 = vadd.f32 %v342, %v343
    %v345 = vrot.slane %v344, 2
    %v346 = vadd.f32 %v344, %v345
    %v347 = vrot.slane %v346, 1
    %v348 = vadd.f32 %v346, %v347
    %v349 = vsel %vm235, %v299, 0.0
    %v350 = vrot.slane %v349, 4
    %v351 = vadd.f32 %v349, %v350
    %v352 = vrot.slane %v351, 2
    %v353 = vadd.f32 %v351, %v352
    %v354 = vrot.slane %v353, 1
    %v355 = vadd.f32 %v353, %v354
    %357 = vrot.lane.b32.xlu0 %v242, 64
    %v358 = vpop.permute.xlu0 %357
    %v360 = vadd.f32 %v242, %v358
    %362 = vrot.lane.b32.xlu0 %v306, 64
    %v363 = vpop.permute.xlu0 %362
    %v365 = vadd.f32 %v306, %v363
    %v366 = vadd.f32 %v360, %v249
    %v367 = vadd.f32 %v365, %v313
    %369 = vrot.lane.b32.xlu0 %v249, 64
    %v370 = vpop.permute.xlu0 %369
    %v372 = vadd.f32 %v366, %v370
    %374 = vrot.lane.b32.xlu0 %v313, 64
    %v375 = vpop.permute.xlu0 %374
    %v377 = vadd.f32 %v367, %v375
    %v378 = vadd.f32 %v372, %v256
    %v379 = vadd.f32 %v377, %v320
    %381 = vrot.lane.b32.xlu0 %v256, 64
    %v382 = vpop.permute.xlu0 %381
    %v384 = vadd.f32 %v378, %v382
    %386 = vrot.lane.b32.xlu0 %v320, 64
    %v387 = vpop.permute.xlu0 %386
    %v389 = vadd.f32 %v379, %v387
    %v390 = vadd.f32 %v384, %v263
    %v391 = vadd.f32 %v389, %v327
    %393 = vrot.lane.b32.xlu0 %v263, 64
    %v394 = vpop.permute.xlu0 %393
    %v396 = vadd.f32 %v390, %v394
    %398 = vrot.lane.b32.xlu0 %v327, 64
    %v399 = vpop.permute.xlu0 %398
    %v401 = vadd.f32 %v391, %v399
    %v402 = vadd.f32 %v396, %v270
    %v403 = vadd.f32 %v401, %v334
    %405 = vrot.lane.b32.xlu0 %v270, 64
    %v406 = vpop.permute.xlu0 %405
    %v408 = vadd.f32 %v402, %v406
    %410 = vrot.lane.b32.xlu0 %v334, 64
    %v411 = vpop.permute.xlu0 %410
    %v413 = vadd.f32 %v403, %v411
    %v414 = vadd.f32 %v408, %v277
    %v415 = vadd.f32 %v413, %v341
    %417 = vrot.lane.b32.xlu0 %v277, 64
    %v418 = vpop.permute.xlu0 %417
    %v420 = vadd.f32 %v414, %v418
    %422 = vrot.lane.b32.xlu0 %v341, 64
    %v423 = vpop.permute.xlu0 %422
    %v425 = vadd.f32 %v415, %v423
    %v426 = vadd.f32 %v420, %v284
    %v427 = vadd.f32 %v425, %v348
    %429 = vrot.lane.b32.xlu0 %v284, 64
    %v430 = vpop.permute.xlu0 %429
    %v432 = vadd.f32 %v426, %v430
    %434 = vrot.lane.b32.xlu0 %v348, 64
    %v435 = vpop.permute.xlu0 %434
    %v437 = vadd.f32 %v427, %v435
    %v438 = vadd.f32 %v432, %v291
    %v439 = vadd.f32 %v437, %v355
    %441 = vrot.lane.b32.xlu0 %v291, 64
    %v442 = vpop.permute.xlu0 %441
    %v444 = vadd.f32 %v438, %v442
    %446 = vrot.lane.b32.xlu0 %v355, 64
    %v447 = vpop.permute.xlu0 %446
    %v449 = vadd.f32 %v439, %v447
    %v450 = vmul.f32 %v444, 0.03125
    %v451 = vmul.f32 %v449, 0.03125
    %v452 = vmul.f32 %v450, %v450
    %v453 = vsub.f32 %v451, %v452
    %v454 = vmax.f32 %v453, 0.0
    %v455 = vld [vmem:[#allocation4] sm:$0x1]
    %v456 = vadd.f32 %v454, 1e-05
    %v457 = vrsqrt.pop %v456
    %v458 = vmul.f32 %v457, %v456
    %v459 = vmul.f32 %v458, %v457
    %v460 = vmul.f32 0.5, %v459
    %v461 = vsub.f32 1.5, %v460
    %v462 = vmul.f32 %v457, %v461
    %vm463 = vweird.f32 %v456
    %vm464 = vweird.f32 %v457
    %vm465 = vmor %vm463, %vm464
    %v466 = vsel %vm465, %v457, %v462
    %v467 = vmul.f32 %v455, %v466
    %v468 = vld [vmem:[#allocation6] sm:$0x1]
    %v469 = vmul.f32 %v450, %v467
    %v470 = vsub.f32 %v468, %v469
    %v472 = vperm.slane %v467, 0
    %473 = vrot.lane.b32.xlu0 %v472, 64
    %v474 = vpop.permute.xlu0 %473
    %vm476 = vcmask 523264
    %v477 = vsel %vm476, %v467, %v474
    %v479 = vperm.slane %v470, 0
    %480 = vrot.lane.b32.xlu0 %v479, 64
    %v481 = vpop.permute.xlu0 %480
    %v483 = vsel %vm476, %v470, %v481
    %v484 = vperm.slane %v477, 0
    %v485 = vmul.f32 %v141, %v484
    %v486 = vmul.f32 %v154, %v484
    %v487 = vmul.f32 %v167, %v484
    %v488 = vmul.f32 %v180, %v484
    %v489 = vmul.f32 %v193, %v484
    %v490 = vmul.f32 %v206, %v484
    %v491 = vmul.f32 %v219, %v484
    %v492 = vmul.f32 %v232, %v484
    %v493 = vperm.slane %v483, 0
    %v494 = vadd.f32 %v485, %v493
    %v495 = vadd.f32 %v486, %v493
    %v496 = vadd.f32 %v487, %v493
    %v497 = vadd.f32 %v488, %v493
    %v498 = vadd.f32 %v489, %v493
    %v499 = vadd.f32 %v490, %v493
    %v500 = vadd.f32 %v491, %v493
    %v501 = vadd.f32 %v492, %v493
    %vm502 = vcmp.ge.f32.partialorder %v494, 0.0
    %vm503 = vcmp.ge.f32.partialorder %v495, 0.0
    %vm504 = vcmp.ge.f32.partialorder %v496, 0.0
    %vm505 = vcmp.ge.f32.partialorder %v497, 0.0
    %vm506 = vcmp.ge.f32.partialorder %v498, 0.0
    %vm507 = vcmp.ge.f32.partialorder %v499, 0.0
    %vm508 = vcmp.ge.f32.partialorder %v500, 0.0
    %vm509 = vcmp.ge.f32.partialorder %v501, 0.0
    %v510 = vmul.f32 %v494, 0.2
    %v511 = vmul.f32 %v495, 0.2
    %v512 = vmul.f32 %v496, 0.2
    %v513 = vmul.f32 %v497, 0.2
    %v514 = vmul.f32 %v498, 0.2
    %v515 = vmul.f32 %v499, 0.2
    %v516 = vmul.f32 %v500, 0.2
    %v517 = vmul.f32 %v501, 0.2
    %v518 = vsel %vm502, %v494, %v510
    %v519 = vsel %vm503, %v495, %v511
    %v520 = vsel %vm504, %v496, %v512
    %v521 = vsel %vm505, %v497, %v513
    %v522 = vsel %vm506, %v498, %v514
    %v523 = vsel %vm507, %v499, %v515
    %v524 = vsel %vm508, %v500, %v516
    %v525 = vsel %vm509, %v501, %v517
    %v526 = vpack.c.bf16 %v519, %v518
    %v527 = vpack.c.bf16 %v521, %v520
    %v528 = vpack.c.bf16 %v523, %v522
    %v529 = vpack.c.bf16 %v525, %v524
    %v534 = vrot.slane %v526, 3
    %v535 = vrot.slane %v527, 6
    %v536 = vrot.slane %v527, 1
    %v537 = vrot.slane %v528, 4
    %v538 = vrot.slane %v528, 7
    %v539 = vrot.slane %v529, 2
    %v540 = vrot.slane %v529, 5
    %vm541 = vcmask 1040384
    %v544 = vsel %vm541, %v526, %v534
    %vm545 = vcmask 1042434
    %v548 = vsel %vm545, %v535, %v536
    %v549 = vsel %vm235, %v544, %v548
    %vm550 = vcmask 1044484
    %v553 = vsel %vm550, %v537, %v538
    %vm554 = vcmask 1046534
    %v557 = vsel %vm554, %v539, %v540
    %vm558 = vcmask 1045508
    %v559 = vsel %vm558, %v553, %v557
    %vm560 = vcmask 1043456
    %v561 = vsel %vm560, %v549, %v559
    %563 = vst [vmem:[%s4] sm:$0xff] %v561
    // Predicated region
    $region30: #{cnet_g1_forward.5} parent=1 // pred_check
      _
    $region31: #{cnet_g1_forward.5} parent=1 // pred_check_branch
      %565 = sbr.rel (0) target = $region33
    $region32: #{cnet_g1_forward.5} parent=1 // pred_region
      _
    $region33: #{cnet_g1_forward.5} parent=1 // pred_fallthru
      _
    // Predicated region
    $region34: #{cnet_g1_forward.5} parent=1 // pred_check
      _
    $region35: #{cnet_g1_forward.5} parent=1 // pred_check_branch
      %567 = sbr.rel (0) target = $region37
    $region36: #{cnet_g1_forward.5} parent=1 // pred_region
      _
    $region37: #{cnet_g1_forward.5} parent=1 // pred_fallthru
      _
    %568 = vsyncpa [#allocation3], 1
    %569 = vsyncpa [#allocation5], 1

// kernel: cnet_g1_forward.6
$region0: #{cnet_g1_forward.6}
  #allocation0 [shape = 'u32[]', space=smem, size = 0x4, offset = 0x4, fixed_abs, tag = 'smem constant byte address 0x4 - core index']
  #allocation1 [shape = 'u32[72,128]{1,0:T(1,128)}', space=vmem, size = 0x9000, scoped, tag = 'internal scratch']
  %s0 = inlined_call_operand.vmem [shape: bf16[32,576], index: 0, kind: input, shape index: {}]
  %s1 = inlined_call_operand.hbm [shape: bf16[576,128], index: 1, kind: input, shape index: {}]
  %s2 = inlined_call_operand.hbm [shape: f32[1,32], index: 2, kind: input, shape index: {}]
  %s3 = inlined_call_operand.hbm [shape: f32[1,32], index: 3, kind: input, shape index: {}]
  %s4 = inlined_call_operand.vmem [shape: bf16[32,128], index: 4, kind: output, shape index: {}]
  %s5 = sld [smem:[#allocation0]]
  $region38: #{cnet_g1_forward.6} parent=0
    _
  %s7 = ssub.s32 1, %s5
  %s8 = scalar_select 0, %s7, %s5
  $region1: #{cnet_g1_forward.6} parent=0
    #allocation2 [shape = 'u8[147456]{0}', space=vmem, size = 0x24000, scoped, tag = 'input window, operand 1, single buffered']
    #allocation3 [shape = 's32[1]{0}', space=sflag, size = 0x4, scoped, tag = 'scoped memory for cnet_g1_forward.6']
    #allocation4 [shape = 'u8[512]{0}', space=vmem, size = 0x400, scoped, tag = 'input window, operand 2, single buffered']
    #allocation5 [shape = 's32[1]{0}', space=sflag, size = 0x4, scoped, tag = 'scoped memory for cnet_g1_forward.6']
    #allocation6 [shape = 'u8[512]{0}', space=vmem, size = 0x400, scoped, tag = 'input window, operand 3, single buffered']
    %9 = vsyncpa [#allocation3], 0
    %10 = vsyncpa [#allocation5], 0
    // Predicated region
    $region2: #{cnet_g1_forward.6} parent=1 // pred_check
      _
    $region3: #{cnet_g1_forward.6} parent=1 // pred_check_branch
      %12 = sbr.rel (0) target = $region5
    $region4: #{cnet_g1_forward.6} parent=1 // pred_region
      _
    $region5: #{cnet_g1_forward.6} parent=1 // pred_fallthru
      _
    // Predicated region
    $region6: #{cnet_g1_forward.6} parent=1 // pred_check
      _
    $region7: #{cnet_g1_forward.6} parent=1 // pred_check_branch
      %14 = sbr.rel (0) target = $region9
    $region8: #{cnet_g1_forward.6} parent=1 // pred_region
      %16 = vsyncadd [#allocation3], 0
      %s17 = sshll.u32 %s1, 4
      %s18 = int_to_ptr.hbm [resolvable:$true] %s17
      %s19 = sshll.u32 [#allocation2], 4
      %s20 = int_to_ptr.vmem [resolvable:$true] %s19
      %25 = dma.hbm_to_vmem [thread:$0]  %s18, 4608, %s20, [#allocation3], 64, 64, 4
    $region9: #{cnet_g1_forward.6} parent=1 // pred_fallthru
      _
    // Predicated region
    $region10: #{cnet_g1_forward.6} parent=1 // pred_check
      _
    $region11: #{cnet_g1_forward.6} parent=1 // pred_check_branch
      %27 = sbr.rel (0) target = $region13
    $region12: #{cnet_g1_forward.6} parent=1 // pred_region
      %29 = vsyncadd [#allocation5], 0
      %s31 = sshll.u32 %s2, 4
      %s32 = int_to_ptr.hbm [resolvable:$true] %s31
      %s33 = sshll.u32 [#allocation4], 4
      %s34 = int_to_ptr.vmem [resolvable:$true] %s33
      %36 = dma.hbm_to_vmem [thread:$0]  %s32, 16, %s34, [#allocation5]
    $region13: #{cnet_g1_forward.6} parent=1 // pred_fallthru
      _
    // Predicated region
    $region14: #{cnet_g1_forward.6} parent=1 // pred_check
      _
    $region15: #{cnet_g1_forward.6} parent=1 // pred_check_branch
      %38 = sbr.rel (0) target = $region17
    $region16: #{cnet_g1_forward.6} parent=1 // pred_region
      %40 = vsyncadd [#allocation5], 0
      %s42 = sshll.u32 %s3, 4
      %s43 = int_to_ptr.hbm [resolvable:$true] %s42
      %s44 = sshll.u32 [#allocation6], 4
      %s45 = int_to_ptr.vmem [resolvable:$true] %s44
      %47 = dma.hbm_to_vmem [thread:$0]  %s43, 16, %s45, [#allocation5]
    $region17: #{cnet_g1_forward.6} parent=1 // pred_fallthru
      _
    // Predicated region
    $region18: #{cnet_g1_forward.6} parent=1 // pred_check
      _
    $region19: #{cnet_g1_forward.6} parent=1 // pred_check_branch
      %49 = sbr.rel (0) target = $region21
    $region20: #{cnet_g1_forward.6} parent=1 // pred_region
      %51 = dma.done [#allocation3], 4608
    $region21: #{cnet_g1_forward.6} parent=1 // pred_fallthru
      _
    // Predicated region
    $region22: #{cnet_g1_forward.6} parent=1 // pred_check
      _
    $region23: #{cnet_g1_forward.6} parent=1 // pred_check_branch
      %53 = sbr.rel (0) target = $region25
    $region24: #{cnet_g1_forward.6} parent=1 // pred_region
      %55 = dma.done [#allocation5], 16
    $region25: #{cnet_g1_forward.6} parent=1 // pred_fallthru
      _
    // Predicated region
    $region26: #{cnet_g1_forward.6} parent=1 // pred_check
      _
    $region27: #{cnet_g1_forward.6} parent=1 // pred_check_branch
      %57 = sbr.rel (0) target = $region29
    $region28: #{cnet_g1_forward.6} parent=1 // pred_region
      %59 = dma.done [#allocation5], 16
    $region29: #{cnet_g1_forward.6} parent=1 // pred_fallthru
      _
    %v61 = vld [vmem:[%s0] sm:$0xff]
    %v62 = vld [vmem:[%s0 + $0x8] sm:$0xff]
    %v63 = vld [vmem:[%s0 + $0x10] sm:$0xf]
    %v64 = vld [vmem:[%s0 + $0x14] sm:$0xff]
    %v65 = vld [vmem:[%s0 + $0x1c] sm:$0xff]
    %v66 = vld [vmem:[%s0 + $0x24] sm:$0xf]
    %v67 = vld [vmem:[%s0 + $0x28] sm:$0xff]
    %v68 = vld [vmem:[%s0 + $0x30] sm:$0xff]
    %v69 = vld [vmem:[%s0 + $0x38] sm:$0xf]
    %v70 = vld [vmem:[%s0 + $0x3c] sm:$0xff]
    %v71 = vld [vmem:[%s0 + $0x44] sm:$0xff]
    %v72 = vld [vmem:[%s0 + $0x4c] sm:$0xf]
    %v73 = vld [vmem:[#allocation2] sm:$0xf]
    %v74 = vld [vmem:[#allocation2 + $0x4] sm:$0xf]
    %v75 = vld [vmem:[#allocation2 + $0x8] sm:$0xf]
    %v76 = vld [vmem:[#allocation2 + $0xc] sm:$0xf]
    %v77 = vld [vmem:[#allocation2 + $0x10] sm:$0xf]
    %v78 = vld [vmem:[#allocation2 + $0x14] sm:$0xf]
    %v79 = vld [vmem:[#allocation2 + $0x18] sm:$0xf]
    %v80 = vld [vmem:[#allocation2 + $0x1c] sm:$0xf]
    %v81 = vld [vmem:[#allocation2 + $0x20] sm:$0xf]
    %v82 = vld [vmem:[#allocation2 + $0x24] sm:$0xf]
    %v83 = vld [vmem:[#allocation2 + $0x28] sm:$0xf]
    %v84 = vld [vmem:[#allocation2 + $0x2c] sm:$0xf]
    %v85 = vld [vmem:[#allocation2 + $0x30] sm:$0xf]
    %v86 = vld [vmem:[#allocation2 + $0x34] sm:$0xf]
    %v87 = vld [vmem:[#allocation2 + $0x38] sm:$0xf]
    %v88 = vld [vmem:[#allocation2 + $0x3c] sm:$0xf]
    %v89 = vld [vmem:[#allocation2 + $0x40] sm:$0xf]
    %v90 = vld [vmem:[#allocation2 + $0x44] sm:$0xf]
    %v91 = vld [vmem:[#allocation2 + $0x48] sm:$0xf]
    %v92 = vld [vmem:[#allocation2 + $0x4c] sm:$0xf]
    %v93 = vld [vmem:[#allocation2 + $0x50] sm:$0xf]
    %v94 = vld [vmem:[#allocation2 + $0x54] sm:$0xf]
    %v95 = vld [vmem:[#allocation2 + $0x58] sm:$0xf]
    %v96 = vld [vmem:[#allocation2 + $0x5c] sm:$0xf]
    %v97 = vld [vmem:[#allocation2 + $0x60] sm:$0xf]
    %v98 = vld [vmem:[#allocation2 + $0x64] sm:$0xf]
    %v99 = vld [vmem:[#allocation2 + $0x68] sm:$0xf]
    %v100 = vld [vmem:[#allocation2 + $0x6c] sm:$0xf]
    %v101 = vld [vmem:[#allocation2 + $0x70] sm:$0xf]
    %v102 = vld [vmem:[#allocation2 + $0x74] sm:$0xf]
    %v103 = vld [vmem:[#allocation2 + $0x78] sm:$0xf]
    %v104 = vld [vmem:[#allocation2 + $0x7c] sm:$0xf]
    %v105 = vld [vmem:[#allocation2 + $0x80] sm:$0xf]
    %v106 = vld [vmem:[#allocation2 + $0x84] sm:$0xf]
    %v107 = vld [vmem:[#allocation2 + $0x88] sm:$0xf]
    %v108 = vld [vmem:[#allocation2 + $0x8c] sm:$0xf]
    %v109 = vld [vmem:[#allocation2 + $0x90] sm:$0xf]
    %v110 = vld [vmem:[#allocation2 + $0x94] sm:$0xf]
    %v111 = vld [vmem:[#allocation2 + $0x98] sm:$0xf]
    %v112 = vld [vmem:[#allocation2 + $0x9c] sm:$0xf]
    %v113 = vld [vmem:[#allocation2 + $0xa0] sm:$0xf]
    %v114 = vld [vmem:[#allocation2 + $0xa4] sm:$0xf]
    %v115 = vld [vmem:[#allocation2 + $0xa8] sm:$0xf]
    %v116 = vld [vmem:[#allocation2 + $0xac] sm:$0xf]
    %v117 = vld [vmem:[#allocation2 + $0xb0] sm:$0xf]
    %v118 = vld [vmem:[#allocation2 + $0xb4] sm:$0xf]
    %v119 = vld [vmem:[#allocation2 + $0xb8] sm:$0xf]
    %v120 = vld [vmem:[#allocation2 + $0xbc] sm:$0xf]
    %v121 = vld [vmem:[#allocation2 + $0xc0] sm:$0xf]
    %v122 = vld [vmem:[#allocation2 + $0xc4] sm:$0xf]
    %v123 = vld [vmem:[#allocation2 + $0xc8] sm:$0xf]
    %v124 = vld [vmem:[#allocation2 + $0xcc] sm:$0xf]
    %v125 = vld [vmem:[#allocation2 + $0xd0] sm:$0xf]
    %v126 = vld [vmem:[#allocation2 + $0xd4] sm:$0xf]
    %v127 = vld [vmem:[#allocation2 + $0xd8] sm:$0xf]
    %v128 = vld [vmem:[#allocation2 + $0xdc] sm:$0xf]
    %v129 = vld [vmem:[#allocation2 + $0xe0] sm:$0xf]
    %v130 = vld [vmem:[#allocation2 + $0xe4] sm:$0xf]
    %v131 = vld [vmem:[#allocation2 + $0xe8] sm:$0xf]
    %v132 = vld [vmem:[#allocation2 + $0xec] sm:$0xf]
    %v133 = vld [vmem:[#allocation2 + $0xf0] sm:$0xf]
    %v134 = vld [vmem:[#allocation2 + $0xf4] sm:$0xf]
    %v135 = vld [vmem:[#allocation2 + $0xf8] sm:$0xf]
    %v136 = vld [vmem:[#allocation2 + $0xfc] sm:$0xf]
    %v137 = vld [vmem:[#allocation2 + $0x100] sm:$0xf]
    %v138 = vld [vmem:[#allocation2 + $0x104] sm:$0xf]
    %v139 = vld [vmem:[#allocation2 + $0x108] sm:$0xf]
    %v140 = vld [vmem:[#allocation2 + $0x10c] sm:$0xf]
    %v141 = vld [vmem:[#allocation2 + $0x110] sm:$0xf]
    %v142 = vld [vmem:[#allocation2 + $0x114] sm:$0xf]
    %v143 = vld [vmem:[#allocation2 + $0x118] sm:$0xf]
    %v144 = vld [vmem:[#allocation2 + $0x11c] sm:$0xf]
    %v157 = vunpack.c.l.b16 %v61
    %v158 = vunpack.c.h.b16 %v61
    %v159 = vunpack.c.l.b16 %v62
    %v160 = vunpack.c.h.b16 %v62
    %v161 = vunpack.c.l.b16 %v63
    %v162 = vunpack.c.l.b16 %v64
    %v163 = vunpack.c.h.b16 %v64
    %v164 = vunpack.c.l.b16 %v65
    %v165 = vunpack.c.h.b16 %v65
    %v166 = vunpack.c.l.b16 %v66
    %v167 = vunpack.c.l.b16 %v67
    %v168 = vunpack.c.h.b16 %v67
    %v169 = vunpack.c.l.b16 %v68
    %v170 = vunpack.c.h.b16 %v68
    %v171 = vunpack.c.l.b16 %v69
    %v172 = vunpack.c.l.b16 %v70
    %v173 = vunpack.c.h.b16 %v70
    %v174 = vunpack.c.l.b16 %v71
    %v175 = vunpack.c.h.b16 %v71
    %v176 = vunpack.c.l.b16 %v72
    %v177 = vpack.c.b16 %v162, %v157
    %v178 = vpack.c.b16 %v163, %v158
    %v179 = vpack.c.b16 %v164, %v159
    %v180 = vpack.c.b16 %v165, %v160
    %v181 = vpack.c.b16 %v166, %v161
    %v182 = vpack.c.b16 %v172, %v167
    %v183 = vpack.c.b16 %v173, %v168
    %v184 = vpack.c.b16 %v174, %v169
    %v185 = vpack.c.b16 %v175, %v170
    %v186 = vpack.c.b16 %v176, %v171
    %v267 = vunpack.c.l.b16 %v73
    %v268 = vunpack.c.l.b16 %v74
    %v269 = vunpack.c.l.b16 %v75
    %v270 = vunpack.c.l.b16 %v76
    %v271 = vunpack.c.l.b16 %v77
    %v272 = vunpack.c.l.b16 %v78
    %v273 = vunpack.c.l.b16 %v79
    %v274 = vunpack.c.l.b16 %v80
    %v275 = vunpack.c.l.b16 %v81
    %v276 = vunpack.c.l.b16 %v82
    %v277 = vunpack.c.l.b16 %v83
    %v278 = vunpack.c.l.b16 %v84
    %v279 = vunpack.c.l.b16 %v85
    %v280 = vunpack.c.l.b16 %v86
    %v281 = vunpack.c.l.b16 %v87
    %v282 = vunpack.c.l.b16 %v88
    %v283 = vunpack.c.l.b16 %v89
    %v284 = vunpack.c.l.b16 %v90
    %v285 = vunpack.c.l.b16 %v91
    %v286 = vunpack.c.l.b16 %v92
    %v287 = vunpack.c.l.b16 %v93
    %v288 = vunpack.c.l.b16 %v94
    %v289 = vunpack.c.l.b16 %v95
    %v290 = vunpack.c.l.b16 %v96
    %v291 = vunpack.c.l.b16 %v97
    %v292 = vunpack.c.l.b16 %v98
    %v293 = vunpack.c.l.b16 %v99
    %v294 = vunpack.c.l.b16 %v100
    %v295 = vunpack.c.l.b16 %v101
    %v296 = vunpack.c.l.b16 %v102
    %v297 = vunpack.c.l.b16 %v103
    %v298 = vunpack.c.l.b16 %v104
    %v299 = vunpack.c.l.b16 %v105
    %v300 = vunpack.c.l.b16 %v106
    %v301 = vunpack.c.l.b16 %v107
    %v302 = vunpack.c.l.b16 %v108
    %v303 = vunpack.c.l.b16 %v109
    %v304 = vunpack.c.l.b16 %v110
    %v305 = vunpack.c.l.b16 %v111
    %v306 = vunpack.c.l.b16 %v112
    %v307 = vunpack.c.l.b16 %v113
    %v308 = vunpack.c.l.b16 %v114
    %v309 = vunpack.c.l.b16 %v115
    %v310 = vunpack.c.l.b16 %v116
    %v311 = vunpack.c.l.b16 %v117
    %v312 = vunpack.c.l.b16 %v118
    %v313 = vunpack.c.l.b16 %v119
    %v314 = vunpack.c.l.b16 %v120
    %v315 = vunpack.c.l.b16 %v121
    %v316 = vunpack.c.l.b16 %v122
    %v317 = vunpack.c.l.b16 %v123
    %v318 = vunpack.c.l.b16 %v124
    %v319 = vunpack.c.l.b16 %v125
    %v320 = vunpack.c.l.b16 %v126
    %v321 = vunpack.c.l.b16 %v127
    %v322 = vunpack.c.l.b16 %v128
    %v323 = vunpack.c.l.b16 %v129
    %v324 = vunpack.c.l.b16 %v130
    %v325 = vunpack.c.l.b16 %v131
    %v326 = vunpack.c.l.b16 %v132
    %v327 = vunpack.c.l.b16 %v133
    %v328 = vunpack.c.l.b16 %v134
    %v329 = vunpack.c.l.b16 %v135
    %v330 = vunpack.c.l.b16 %v136
    %v331 = vunpack.c.l.b16 %v137
    %v332 = vunpack.c.l.b16 %v138
    %v333 = vunpack.c.l.b16 %v139
    %v334 = vunpack.c.l.b16 %v140
    %v335 = vunpack.c.l.b16 %v141
    %v336 = vunpack.c.l.b16 %v142
    %v337 = vunpack.c.l.b16 %v143
    %v338 = vunpack.c.l.b16 %v144
    %v339 = vpack.c.b16 %v268, %v267
    %v340 = vpack.c.b16 %v270, %v269
    %v341 = vpack.c.b16 %v272, %v271
    %v342 = vpack.c.b16 %v274, %v273
    %v343 = vpack.c.b16 %v276, %v275
    %v344 = vpack.c.b16 %v278, %v277
    %v345 = vpack.c.b16 %v280, %v279
    %v346 = vpack.c.b16 %v282, %v281
    %v347 = vpack.c.b16 %v284, %v283
    %v348 = vpack.c.b16 %v286, %v285
    %v349 = vpack.c.b16 %v288, %v287
    %v350 = vpack.c.b16 %v290, %v289
    %v351 = vpack.c.b16 %v292, %v291
    %v352 = vpack.c.b16 %v294, %v293
    %v353 = vpack.c.b16 %v296, %v295
    %v354 = vpack.c.b16 %v298, %v297
    %v355 = vpack.c.b16 %v300, %v299
    %v356 = vpack.c.b16 %v302, %v301
    %v357 = vpack.c.b16 %v304, %v303
    %v358 = vpack.c.b16 %v306, %v305
    %v359 = vpack.c.b16 %v308, %v307
    %v360 = vpack.c.b16 %v310, %v309
    %v361 = vpack.c.b16 %v312, %v311
    %v362 = vpack.c.b16 %v314, %v313
    %v363 = vpack.c.b16 %v316, %v315
    %v364 = vpack.c.b16 %v318, %v317
    %v365 = vpack.c.b16 %v320, %v319
    %v366 = vpack.c.b16 %v322, %v321
    %v367 = vpack.c.b16 %v324, %v323
    %v368 = vpack.c.b16 %v326, %v325
    %v369 = vpack.c.b16 %v328, %v327
    %v370 = vpack.c.b16 %v330, %v329
    %v371 = vpack.c.b16 %v332, %v331
    %v372 = vpack.c.b16 %v334, %v333
    %v373 = vpack.c.b16 %v336, %v335
    %v374 = vpack.c.b16 %v338, %v337
    %vm411 = vcmask 523264
    %v413 = vsel %vm411, %v181, 0
    %v416 = vsel %vm411, %v186, 0
    %418 = vmatpush.bf16.msra.mxu0 %v346
    %419 = vmatpush.bf16.msra.mxu0 %v345
    %420 = vmatpush.bf16.msra.mxu0 %v344
    %421 = vmatpush.bf16.msra.mxu0 %v343
    %422 = vmatpush.bf16.msra.mxu0 %v342
    %423 = vmatpush.bf16.msra.mxu0 %v341
    %424 = vmatpush.bf16.msra.mxu0 %v340
    %425 = vmatpush.bf16.msra.mxu0 %v339
    %426 = vmatmul.bf16.gmra.mxu0 %v177
    %v427 = vpop.f32.mrf.mxu0
    %v428 = vadd.f32 0.0, %v427
    %v429 = vpop.f32.mrf.mxu0
    %v430 = vadd.f32 0.0, %v429
    %431 = vmatmul.bf16.gmra.mxu0 %v182
    %v432 = vpop.f32.mrf.mxu0
    %v433 = vadd.f32 0.0, %v432
    %v434 = vpop.f32.mrf.mxu0
    %v435 = vadd.f32 0.0, %v434
    %436 = vdwg.mxu0
    %437 = vmatpush.bf16.msra.mxu0 %v354
    %438 = vmatpush.bf16.msra.mxu0 %v353
    %439 = vmatpush.bf16.msra.mxu0 %v352
    %440 = vmatpush.bf16.msra.mxu0 %v351
    %441 = vmatpush.bf16.msra.mxu0 %v350
    %442 = vmatpush.bf16.msra.mxu0 %v349
    %443 = vmatpush.bf16.msra.mxu0 %v348
    %444 = vmatpush.bf16.msra.mxu0 %v347
    %445 = vmatmul.bf16.gmra.mxu0 %v178
    %v446 = vpop.f32.mrf.mxu0
    %v447 = vadd.f32 %v428, %v446
    %v448 = vpop.f32.mrf.mxu0
    %v449 = vadd.f32 %v430, %v448
    %450 = vmatmul.bf16.gmra.mxu0 %v183
    %v451 = vpop.f32.mrf.mxu0
    %v452 = vadd.f32 %v433, %v451
    %v453 = vpop.f32.mrf.mxu0
    %v454 = vadd.f32 %v435, %v453
    %455 = vdwg.mxu0
    %456 = vmatpush.bf16.msra.mxu0 %v362
    %457 = vmatpush.bf16.msra.mxu0 %v361
    %458 = vmatpush.bf16.msra.mxu0 %v360
    %459 = vmatpush.bf16.msra.mxu0 %v359
    %460 = vmatpush.bf16.msra.mxu0 %v358
    %461 = vmatpush.bf16.msra.mxu0 %v357
    %462 = vmatpush.bf16.msra.mxu0 %v356
    %463 = vmatpush.bf16.msra.mxu0 %v355
    %464 = vmatmul.bf16.gmra.mxu0 %v179
    %v465 = vpop.f32.mrf.mxu0
    %v466 = vadd.f32 %v447, %v465
    %v467 = vpop.f32.mrf.mxu0
    %v468 = vadd.f32 %v449, %v467
    %469 = vmatmul.bf16.gmra.mxu0 %v184
    %v470 = vpop.f32.mrf.mxu0
    %v471 = vadd.f32 %v452, %v470
    %v472 = vpop.f32.mrf.mxu0
    %v473 = vadd.f32 %v454, %v472
    %474 = vdwg.mxu0
    %475 = vmatpush.bf16.msra.mxu0 %v370
    %476 = vmatpush.bf16.msra.mxu0 %v369
    %477 = vmatpush.bf16.msra.mxu0 %v368
    %478 = vmatpush.bf16.msra.mxu0 %v367
    %479 = vmatpush.bf16.msra.mxu0 %v366
    %480 = vmatpush.bf16.msra.mxu0 %v365
    %481 = vmatpush.bf16.msra.mxu0 %v364
    %482 = vmatpush.bf16.msra.mxu0 %v363
    %483 = vmatmul.bf16.gmra.mxu0 %v180
    %v484 = vpop.f32.mrf.mxu0
    %v485 = vadd.f32 %v466, %v484
    %v486 = vpop.f32.mrf.mxu0
    %v487 = vadd.f32 %v468, %v486
    %488 = vmatmul.bf16.gmra.mxu0 %v185
    %v489 = vpop.f32.mrf.mxu0
    %v490 = vadd.f32 %v471, %v489
    %v491 = vpop.f32.mrf.mxu0
    %v492 = vadd.f32 %v473, %v491
    %493 = vdwg.mxu0
    %494 = vmatpush.bf16.msra.mxu0 0
    %495 = vmatpush.bf16.msra.mxu0 0
    %496 = vmatpush.bf16.msra.mxu0 0
    %497 = vmatpush.bf16.msra.mxu0 0
    %498 = vmatpush.bf16.msra.mxu0 %v374
    %499 = vmatpush.bf16.msra.mxu0 %v373
    %500 = vmatpush.bf16.msra.mxu0 %v372
    %501 = vmatpush.bf16.msra.mxu0 %v371
    %502 = vmatmul.bf16.gmra.mxu0 %v413
    %v503 = vpop.f32.mrf.mxu0
    %v504 = vadd.f32 %v485, %v503
    %v505 = vpop.f32.mrf.mxu0
    %v506 = vadd.f32 %v487, %v505
    %507 = vmatmul.bf16.gmra.mxu0 %v416
    %v508 = vpop.f32.mrf.mxu0
    %v509 = vadd.f32 %v490, %v508
    %v510 = vpop.f32.mrf.mxu0
    %v511 = vadd.f32 %v492, %v510
    %512 = vdwg.mxu0
    %v513 = vadd.f32 %v504, %v506
    %v514 = vadd.f32 %v513, %v509
    %v515 = vadd.f32 %v514, %v511
    %v516 = vrot.slane %v515, 4
    %v517 = vadd.f32 %v515, %v516
    %v518 = vrot.slane %v517, 2
    %v519 = vadd.f32 %v517, %v518
    %v520 = vrot.slane %v519, 1
    %v521 = vadd.f32 %v519, %v520
    %v522 = vmul.f32 %v504, %v504
    %v523 = vmul.f32 %v506, %v506
    %v524 = vmul.f32 %v509, %v509
    %v525 = vmul.f32 %v511, %v511
    %v526 = vadd.f32 %v522, %v523
    %v527 = vadd.f32 %v526, %v524
    %v528 = vadd.f32 %v527, %v525
    %v529 = vrot.slane %v528, 4
    %v530 = vadd.f32 %v528, %v529
    %v531 = vrot.slane %v530, 2
    %v532 = vadd.f32 %v530, %v531
    %v533 = vrot.slane %v532, 1
    %v534 = vadd.f32 %v532, %v533
    %536 = vrot.lane.b32.xlu0 %v521, 96
    %v537 = vpop.permute.xlu0 %536
    %v539 = vadd.f32 %v521, %v537
    %541 = vrot.lane.b32.xlu0 %v534, 96
    %v542 = vpop.permute.xlu0 %541
    %v544 = vadd.f32 %v534, %v542
    %545 = vrot.lane.b32.xlu0 %v521, 64
    %v546 = vpop.permute.xlu0 %545
    %v548 = vadd.f32 %v539, %v546
    %549 = vrot.lane.b32.xlu0 %v534, 64
    %v550 = vpop.permute.xlu0 %549
    %v552 = vadd.f32 %v544, %v550
    %553 = vrot.lane.b32.xlu0 %v521, 32
    %v554 = vpop.permute.xlu0 %553
    %v556 = vadd.f32 %v548, %v554
    %557 = vrot.lane.b32.xlu0 %v534, 32
    %v558 = vpop.permute.xlu0 %557
    %v560 = vadd.f32 %v552, %v558
    %v561 = vmul.f32 %v556, 0.0078125
    %v562 = vmul.f32 %v560, 0.0078125
    %v563 = vmul.f32 %v561, %v561
    %v564 = vsub.f32 %v562, %v563
    %v565 = vmax.f32 %v564, 0.0
    %v566 = vld [vmem:[#allocation4] sm:$0x1]
    %v567 = vadd.f32 %v565, 1e-05
    %v568 = vrsqrt.pop %v567
    %v569 = vmul.f32 %v568, %v567
    %v570 = vmul.f32 %v569, %v568
    %v571 = vmul.f32 0.5, %v570
    %v572 = vsub.f32 1.5, %v571
    %v573 = vmul.f32 %v568, %v572
    %vm574 = vweird.f32 %v567
    %vm575 = vweird.f32 %v568
    %vm576 = vmor %vm574, %vm575
    %v577 = vsel %vm576, %v568, %v573
    %v578 = vmul.f32 %v566, %v577
    %v579 = vld [vmem:[#allocation6] sm:$0x1]
    %v580 = vmul.f32 %v561, %v578
    %v581 = vsub.f32 %v579, %v580
    %v583 = vperm.slane %v578, 0
    %584 = vrot.lane.b32.xlu0 %v583, 32
    %v585 = vpop.permute.xlu0 %584
    %587 = vrot.lane.b32.xlu0 %v583, 64
    %v588 = vpop.permute.xlu0 %587
    %590 = vrot.lane.b32.xlu0 %v583, 96
    %v591 = vpop.permute.xlu0 %590
    %vm593 = vcmask 261120
    %v594 = vsel %vm593, %v578, %v585
    %v595 = vsel %vm411, %v594, %v588
    %vm596 = vcmask 785408
    %v597 = vsel %vm596, %v595, %v591
    %v599 = vperm.slane %v581, 0
    %600 = vrot.lane.b32.xlu0 %v599, 32
    %v601 = vpop.permute.xlu0 %600
    %603 = vrot.lane.b32.xlu0 %v599, 64
    %v604 = vpop.permute.xlu0 %603
    %606 = vrot.lane.b32.xlu0 %v599, 96
    %v607 = vpop.permute.xlu0 %606
    %v609 = vsel %vm593, %v581, %v601
    %v610 = vsel %vm411, %v609, %v604
    %v611 = vsel %vm596, %v610, %v607
    %v612 = vperm.slane %v597, 0
    %v613 = vmul.f32 %v504, %v612
    %v614 = vmul.f32 %v506, %v612
    %v615 = vmul.f32 %v509, %v612
    %v616 = vmul.f32 %v511, %v612
    %v617 = vperm.slane %v611, 0
    %v618 = vadd.f32 %v613, %v617
    %v619 = vadd.f32 %v614, %v617
    %v620 = vadd.f32 %v615, %v617
    %v621 = vadd.f32 %v616, %v617
    %vm622 = vcmp.ge.f32.partialorder %v618, 0.0
    %vm623 = vcmp.ge.f32.partialorder %v619, 0.0
    %vm624 = vcmp.ge.f32.partialorder %v620, 0.0
    %vm625 = vcmp.ge.f32.partialorder %v621, 0.0
    %v626 = vmul.f32 %v618, 0.2
    %v627 = vmul.f32 %v619, 0.2
    %v628 = vmul.f32 %v620, 0.2
    %v629 = vmul.f32 %v621, 0.2
    %v630 = vsel %vm622, %v618, %v626
    %v631 = vsel %vm623, %v619, %v627
    %v632 = vsel %vm624, %v620, %v628
    %v633 = vsel %vm625, %v621, %v629
    %v634 = vpack.c.bf16 %v630, %v630
    %v635 = vpack.c.bf16 %v631, %v631
    %v636 = vpack.c.bf16 %v632, %v632
    %v637 = vpack.c.bf16 %v633, %v633
    %638 = vst [vmem:[%s4] sm:$0xf] %v634
    %639 = vst [vmem:[%s4 + $0x4] sm:$0xf] %v635
    %640 = vst [vmem:[%s4 + $0x8] sm:$0xf] %v636
    %641 = vst [vmem:[%s4 + $0xc] sm:$0xf] %v637
    // Predicated region
    $region30: #{cnet_g1_forward.6} parent=1 // pred_check
      _
    $region31: #{cnet_g1_forward.6} parent=1 // pred_check_branch
      %643 = sbr.rel (0) target = $region33
    $region32: #{cnet_g1_forward.6} parent=1 // pred_region
      _
    $region33: #{cnet_g1_forward.6} parent=1 // pred_fallthru
      _
    // Predicated region
    $region34: #{cnet_g1_forward.6} parent=1 // pred_check
      _
    $region35: #{cnet_g1_forward.6} parent=1 // pred_check_branch
      %645 = sbr.rel (0) target = $region37
    $region36: #{cnet_g1_forward.6} parent=1 // pred_region
      _
    $region37: #{cnet_g1_forward.6} parent=1 // pred_fallthru
      _
    %646 = vsyncpa [#allocation3], 1
    %647 = vsyncpa [#allocation5], 1

// kernel: cnet_g1_forward.7
$region0: #{cnet_g1_forward.7}
  #allocation0 [shape = 'u32[]', space=smem, size = 0x4, offset = 0x4, fixed_abs, tag = 'smem constant byte address 0x4 - core index']
  #allocation1 [shape = 'u32[72,128]{1,0:T(1,128)}', space=vmem, size = 0x9000, scoped, tag = 'internal scratch']
  %s0 = inlined_call_operand.vmem [shape: bf16[128,288], index: 0, kind: input, shape index: {}]
  %s1 = inlined_call_operand.hbm [shape: bf16[288,128], index: 1, kind: input, shape index: {}]
  %s2 = inlined_call_operand.hbm [shape: f32[1,32], index: 2, kind: input, shape index: {}]
  %s3 = inlined_call_operand.hbm [shape: f32[1,32], index: 3, kind: input, shape index: {}]
  %s4 = inlined_call_operand.vmem [shape: bf16[128,128], index: 4, kind: output, shape index: {}]
  %s5 = sld [smem:[#allocation0]]
  $region38: #{cnet_g1_forward.7} parent=0
    _
  %s7 = ssub.s32 1, %s5
  %s8 = scalar_select 0, %s7, %s5
  $region1: #{cnet_g1_forward.7} parent=0
    #allocation2 [shape = 'u8[73728]{0}', space=vmem, size = 0x12000, scoped, tag = 'input window, operand 1, single buffered']
    #allocation3 [shape = 's32[1]{0}', space=sflag, size = 0x4, scoped, tag = 'scoped memory for cnet_g1_forward.7']
    #allocation4 [shape = 'u8[512]{0}', space=vmem, size = 0x400, scoped, tag = 'input window, operand 2, single buffered']
    #allocation5 [shape = 's32[1]{0}', space=sflag, size = 0x4, scoped, tag = 'scoped memory for cnet_g1_forward.7']
    #allocation6 [shape = 'u8[512]{0}', space=vmem, size = 0x400, scoped, tag = 'input window, operand 3, single buffered']
    %9 = vsyncpa [#allocation3], 0
    %10 = vsyncpa [#allocation5], 0
    // Predicated region
    $region2: #{cnet_g1_forward.7} parent=1 // pred_check
      _
    $region3: #{cnet_g1_forward.7} parent=1 // pred_check_branch
      %12 = sbr.rel (0) target = $region5
    $region4: #{cnet_g1_forward.7} parent=1 // pred_region
      _
    $region5: #{cnet_g1_forward.7} parent=1 // pred_fallthru
      _
    // Predicated region
    $region6: #{cnet_g1_forward.7} parent=1 // pred_check
      _
    $region7: #{cnet_g1_forward.7} parent=1 // pred_check_branch
      %14 = sbr.rel (0) target = $region9
    $region8: #{cnet_g1_forward.7} parent=1 // pred_region
      %16 = vsyncadd [#allocation3], 0
      %s17 = sshll.u32 %s1, 4
      %s18 = int_to_ptr.hbm [resolvable:$true] %s17
      %s19 = sshll.u32 [#allocation2], 4
      %s20 = int_to_ptr.vmem [resolvable:$true] %s19
      %25 = dma.hbm_to_vmem [thread:$0]  %s18, 2304, %s20, [#allocation3], 64, 64, 4
    $region9: #{cnet_g1_forward.7} parent=1 // pred_fallthru
      _
    // Predicated region
    $region10: #{cnet_g1_forward.7} parent=1 // pred_check
      _
    $region11: #{cnet_g1_forward.7} parent=1 // pred_check_branch
      %27 = sbr.rel (0) target = $region13
    $region12: #{cnet_g1_forward.7} parent=1 // pred_region
      %29 = vsyncadd [#allocation5], 0
      %s31 = sshll.u32 %s2, 4
      %s32 = int_to_ptr.hbm [resolvable:$true] %s31
      %s33 = sshll.u32 [#allocation4], 4
      %s34 = int_to_ptr.vmem [resolvable:$true] %s33
      %36 = dma.hbm_to_vmem [thread:$0]  %s32, 16, %s34, [#allocation5]
    $region13: #{cnet_g1_forward.7} parent=1 // pred_fallthru
      _
    // Predicated region
    $region14: #{cnet_g1_forward.7} parent=1 // pred_check
      _
    $region15: #{cnet_g1_forward.7} parent=1 // pred_check_branch
      %38 = sbr.rel (0) target = $region17
    $region16: #{cnet_g1_forward.7} parent=1 // pred_region
      %40 = vsyncadd [#allocation5], 0
      %s42 = sshll.u32 %s3, 4
      %s43 = int_to_ptr.hbm [resolvable:$true] %s42
      %s44 = sshll.u32 [#allocation6], 4
      %s45 = int_to_ptr.vmem [resolvable:$true] %s44
      %47 = dma.hbm_to_vmem [thread:$0]  %s43, 16, %s45, [#allocation5]
    $region17: #{cnet_g1_forward.7} parent=1 // pred_fallthru
      _
    // Predicated region
    $region18: #{cnet_g1_forward.7} parent=1 // pred_check
      _
    $region19: #{cnet_g1_forward.7} parent=1 // pred_check_branch
      %49 = sbr.rel (0) target = $region21
    $region20: #{cnet_g1_forward.7} parent=1 // pred_region
      %51 = dma.done [#allocation3], 2304
    $region21: #{cnet_g1_forward.7} parent=1 // pred_fallthru
      _
    // Predicated region
    $region22: #{cnet_g1_forward.7} parent=1 // pred_check
      _
    $region23: #{cnet_g1_forward.7} parent=1 // pred_check_branch
      %53 = sbr.rel (0) target = $region25
    $region24: #{cnet_g1_forward.7} parent=1 // pred_region
      %55 = dma.done [#allocation5], 16
    $region25: #{cnet_g1_forward.7} parent=1 // pred_fallthru
      _
    // Predicated region
    $region26: #{cnet_g1_forward.7} parent=1 // pred_check
      _
    $region27: #{cnet_g1_forward.7} parent=1 // pred_check_branch
      %57 = sbr.rel (0) target = $region29
    $region28: #{cnet_g1_forward.7} parent=1 // pred_region
      %59 = dma.done [#allocation5], 16
    $region29: #{cnet_g1_forward.7} parent=1 // pred_fallthru
      _
    %v61 = vld [vmem:[%s0] sm:$0xff]
    %v62 = vld [vmem:[%s0 + $0x8] sm:$0xf]
    %v63 = vld [vmem:[%s0 + $0xc] sm:$0xff]
    %v64 = vld [vmem:[%s0 + $0x14] sm:$0xf]
    %v65 = vld [vmem:[%s0 + $0x18] sm:$0xff]
    %v66 = vld [vmem:[%s0 + $0x20] sm:$0xf]
    %v67 = vld [vmem:[%s0 + $0x24] sm:$0xff]
    %v68 = vld [vmem:[%s0 + $0x2c] sm:$0xf]
    %v69 = vld [vmem:[%s0 + $0x30] sm:$0xff]
    %v70 = vld [vmem:[%s0 + $0x38] sm:$0xf]
    %v71 = vld [vmem:[%s0 + $0x3c] sm:$0xff]
    %v72 = vld [vmem:[%s0 + $0x44] sm:$0xf]
    %v73 = vld [vmem:[%s0 + $0x48] sm:$0xff]
    %v74 = vld [vmem:[%s0 + $0x50] sm:$0xf]
    %v75 = vld [vmem:[%s0 + $0x54] sm:$0xff]
    %v76 = vld [vmem:[%s0 + $0x5c] sm:$0xf]
    %v77 = vld [vmem:[%s0 + $0x60] sm:$0xff]
    %v78 = vld [vmem:[%s0 + $0x68] sm:$0xf]
    %v79 = vld [vmem:[%s0 + $0x6c] sm:$0xff]
    %v80 = vld [vmem:[%s0 + $0x74] sm:$0xf]
    %v81 = vld [vmem:[%s0 + $0x78] sm:$0xff]
    %v82 = vld [vmem:[%s0 + $0x80] sm:$0xf]
    %v83 = vld [vmem:[%s0 + $0x84] sm:$0xff]
    %v84 = vld [vmem:[%s0 + $0x8c] sm:$0xf]
    %v85 = vld [vmem:[%s0 + $0x90] sm:$0xff]
    %v86 = vld [vmem:[%s0 + $0x98] sm:$0xf]
    %v87 = vld [vmem:[%s0 + $0x9c] sm:$0xff]
    %v88 = vld [vmem:[%s0 + $0xa4] sm:$0xf]
    %v89 = vld [vmem:[%s0 + $0xa8] sm:$0xff]
    %v90 = vld [vmem:[%s0 + $0xb0] sm:$0xf]
    %v91 = vld [vmem:[%s0 + $0xb4] sm:$0xff]
    %v92 = vld [vmem:[%s0 + $0xbc] sm:$0xf]
    %v93 = vld [vmem:[#allocation2] sm:$0xf]
    %v94 = vld [vmem:[#allocation2 + $0x4] sm:$0xf]
    %v95 = vld [vmem:[#allocation2 + $0x8] sm:$0xf]
    %v96 = vld [vmem:[#allocation2 + $0xc] sm:$0xf]
    %v97 = vld [vmem:[#allocation2 + $0x10] sm:$0xf]
    %v98 = vld [vmem:[#allocation2 + $0x14] sm:$0xf]
    %v99 = vld [vmem:[#allocation2 + $0x18] sm:$0xf]
    %v100 = vld [vmem:[#allocation2 + $0x1c] sm:$0xf]
    %v101 = vld [vmem:[#allocation2 + $0x20] sm:$0xf]
    %v102 = vld [vmem:[#allocation2 + $0x24] sm:$0xf]
    %v103 = vld [vmem:[#allocation2 + $0x28] sm:$0xf]
    %v104 = vld [vmem:[#allocation2 + $0x2c] sm:$0xf]
    %v105 = vld [vmem:[#allocation2 + $0x30] sm:$0xf]
    %v106 = vld [vmem:[#allocation2 + $0x34] sm:$0xf]
    %v107 = vld [vmem:[#allocation2 + $0x38] sm:$0xf]
    %v108 = vld [vmem:[#allocation2 + $0x3c] sm:$0xf]
    %v109 = vld [vmem:[#allocation2 + $0x40] sm:$0xf]
    %v110 = vld [vmem:[#allocation2 + $0x44] sm:$0xf]
    %v111 = vld [vmem:[#allocation2 + $0x48] sm:$0xf]
    %v112 = vld [vmem:[#allocation2 + $0x4c] sm:$0xf]
    %v113 = vld [vmem:[#allocation2 + $0x50] sm:$0xf]
    %v114 = vld [vmem:[#allocation2 + $0x54] sm:$0xf]
    %v115 = vld [vmem:[#allocation2 + $0x58] sm:$0xf]
    %v116 = vld [vmem:[#allocation2 + $0x5c] sm:$0xf]
    %v117 = vld [vmem:[#allocation2 + $0x60] sm:$0xf]
    %v118 = vld [vmem:[#allocation2 + $0x64] sm:$0xf]
    %v119 = vld [vmem:[#allocation2 + $0x68] sm:$0xf]
    %v120 = vld [vmem:[#allocation2 + $0x6c] sm:$0xf]
    %v121 = vld [vmem:[#allocation2 + $0x70] sm:$0xf]
    %v122 = vld [vmem:[#allocation2 + $0x74] sm:$0xf]
    %v123 = vld [vmem:[#allocation2 + $0x78] sm:$0xf]
    %v124 = vld [vmem:[#allocation2 + $0x7c] sm:$0xf]
    %v125 = vld [vmem:[#allocation2 + $0x80] sm:$0xf]
    %v126 = vld [vmem:[#allocation2 + $0x84] sm:$0xf]
    %v127 = vld [vmem:[#allocation2 + $0x88] sm:$0xf]
    %v128 = vld [vmem:[#allocation2 + $0x8c] sm:$0xf]
    %v161 = vunpack.c.l.b16 %v61
    %v162 = vunpack.c.h.b16 %v61
    %v163 = vunpack.c.l.b16 %v62
    %v164 = vunpack.c.l.b16 %v63
    %v165 = vunpack.c.h.b16 %v63
    %v166 = vunpack.c.l.b16 %v64
    %v167 = vunpack.c.l.b16 %v65
    %v168 = vunpack.c.h.b16 %v65
    %v169 = vunpack.c.l.b16 %v66
    %v170 = vunpack.c.l.b16 %v67
    %v171 = vunpack.c.h.b16 %v67
    %v172 = vunpack.c.l.b16 %v68
    %v173 = vunpack.c.l.b16 %v69
    %v174 = vunpack.c.h.b16 %v69
    %v175 = vunpack.c.l.b16 %v70
    %v176 = vunpack.c.l.b16 %v71
    %v177 = vunpack.c.h.b16 %v71
    %v178 = vunpack.c.l.b16 %v72
    %v179 = vunpack.c.l.b16 %v73
    %v180 = vunpack.c.h.b16 %v73
    %v181 = vunpack.c.l.b16 %v74
    %v182 = vunpack.c.l.b16 %v75
    %v183 = vunpack.c.h.b16 %v75
    %v184 = vunpack.c.l.b16 %v76
    %v185 = vunpack.c.l.b16 %v77
    %v186 = vunpack.c.h.b16 %v77
    %v187 = vunpack.c.l.b16 %v78
    %v188 = vunpack.c.l.b16 %v79
    %v189 = vunpack.c.h.b16 %v79
    %v190 = vunpack.c.l.b16 %v80
    %v191 = vunpack.c.l.b16 %v81
    %v192 = vunpack.c.h.b16 %v81
    %v193 = vunpack.c.l.b16 %v82
    %v194 = vunpack.c.l.b16 %v83
    %v195 = vunpack.c.h.b16 %v83
    %v196 = vunpack.c.l.b16 %v84
    %v197 = vunpack.c.l.b16 %v85
    %v198 = vunpack.c.h.b16 %v85
    %v199 = vunpack.c.l.b16 %v86
    %v200 = vunpack.c.l.b16 %v87
    %v201 = vunpack.c.h.b16 %v87
    %v202 = vunpack.c.l.b16 %v88
    %v203 = vunpack.c.l.b16 %v89
    %v204 = vunpack.c.h.b16 %v89
    %v205 = vunpack.c.l.b16 %v90
    %v206 = vunpack.c.l.b16 %v91
    %v207 = vunpack.c.h.b16 %v91
    %v208 = vunpack.c.l.b16 %v92
    %v209 = vpack.c.b16 %v164, %v161
    %v210 = vpack.c.b16 %v165, %v162
    %v211 = vpack.c.b16 %v166, %v163
    %v212 = vpack.c.b16 %v170, %v167
    %v213 = vpack.c.b16 %v171, %v168
    %v214 = vpack.c.b16 %v172, %v169
    %v215 = vpack.c.b16 %v176, %v173
    %v216 = vpack.c.b16 %v177, %v174
    %v217 = vpack.c.b16 %v178, %v175
    %v218 = vpack.c.b16 %v182, %v179
    %v219 = vpack.c.b16 %v183, %v180
    %v220 = vpack.c.b16 %v184, %v181
    %v221 = vpack.c.b16 %v188, %v185
    %v222 = vpack.c.b16 %v189, %v186
    %v223 = vpack.c.b16 %v190, %v187
    %v224 = vpack.c.b16 %v194, %v191
    %v225 = vpack.c.b16 %v195, %v192
    %v226 = vpack.c.b16 %v196, %v193
    %v227 = vpack.c.b16 %v200, %v197
    %v228 = vpack.c.b16 %v201, %v198
    %v229 = vpack.c.b16 %v202, %v199
    %v230 = vpack.c.b16 %v206, %v203
    %v231 = vpack.c.b16 %v207, %v204
    %v232 = vpack.c.b16 %v208, %v205
    %v285 = vunpack.c.l.b16 %v93
    %v286 = vunpack.c.l.b16 %v94
    %v287 = vunpack.c.l.b16 %v95
    %v288 = vunpack.c.l.b16 %v96
    %v289 = vunpack.c.l.b16 %v97
    %v290 = vunpack.c.l.b16 %v98
    %v291 = vunpack.c.l.b16 %v99
    %v292 = vunpack.c.l.b16 %v100
    %v293 = vunpack.c.l.b16 %v101
    %v294 = vunpack.c.l.b16 %v102
    %v295 = vunpack.c.l.b16 %v103
    %v296 = vunpack.c.l.b16 %v104
    %v297 = vunpack.c.l.b16 %v105
    %v298 = vunpack.c.l.b16 %v106
    %v299 = vunpack.c.l.b16 %v107
    %v300 = vunpack.c.l.b16 %v108
    %v301 = vunpack.c.l.b16 %v109
    %v302 = vunpack.c.l.b16 %v110
    %v303 = vunpack.c.l.b16 %v111
    %v304 = vunpack.c.l.b16 %v112
    %v305 = vunpack.c.l.b16 %v113
    %v306 = vunpack.c.l.b16 %v114
    %v307 = vunpack.c.l.b16 %v115
    %v308 = vunpack.c.l.b16 %v116
    %v309 = vunpack.c.l.b16 %v117
    %v310 = vunpack.c.l.b16 %v118
    %v311 = vunpack.c.l.b16 %v119
    %v312 = vunpack.c.l.b16 %v120
    %v313 = vunpack.c.l.b16 %v121
    %v314 = vunpack.c.l.b16 %v122
    %v315 = vunpack.c.l.b16 %v123
    %v316 = vunpack.c.l.b16 %v124
    %v317 = vunpack.c.l.b16 %v125
    %v318 = vunpack.c.l.b16 %v126
    %v319 = vunpack.c.l.b16 %v127
    %v320 = vunpack.c.l.b16 %v128
    %v321 = vpack.c.b16 %v286, %v285
    %v322 = vpack.c.b16 %v288, %v287
    %v323 = vpack.c.b16 %v290, %v289
    %v324 = vpack.c.b16 %v292, %v291
    %v325 = vpack.c.b16 %v294, %v293
    %v326 = vpack.c.b16 %v296, %v295
    %v327 = vpack.c.b16 %v298, %v297
    %v328 = vpack.c.b16 %v300, %v299
    %v329 = vpack.c.b16 %v302, %v301
    %v330 = vpack.c.b16 %v304, %v303
    %v331 = vpack.c.b16 %v306, %v305
    %v332 = vpack.c.b16 %v308, %v307
    %v333 = vpack.c.b16 %v310, %v309
    %v334 = vpack.c.b16 %v312, %v311
    %v335 = vpack.c.b16 %v314, %v313
    %v336 = vpack.c.b16 %v316, %v315
    %v337 = vpack.c.b16 %v318, %v317
    %v338 = vpack.c.b16 %v320, %v319
    %vm357 = vcmask 261120
    %v359 = vsel %vm357, %v211, 0
    %v362 = vsel %vm357, %v214, 0
    %v365 = vsel %vm357, %v217, 0
    %v368 = vsel %vm357, %v220, 0
    %v371 = vsel %vm357, %v223, 0
    %v374 = vsel %vm357, %v226, 0
    %v377 = vsel %vm357, %v229, 0
    %v380 = vsel %vm357, %v232, 0
    %382 = vmatpush.bf16.msra.mxu0 %v328
    %383 = vmatpush.bf16.msra.mxu0 %v327
    %384 = vmatpush.bf16.msra.mxu0 %v326
    %385 = vmatpush.bf16.msra.mxu0 %v325
    %386 = vmatpush.bf16.msra.mxu0 %v324
    %387 = vmatpush.bf16.msra.mxu0 %v323
    %388 = vmatpush.bf16.msra.mxu0 %v322
    %389 = vmatpush.bf16.msra.mxu0 %v321
    %390 = vmatmul.bf16.gmra.mxu0 %v209
    %v391 = vpop.f32.mrf.mxu0
    %v392 = vadd.f32 0.0, %v391
    %v393 = vpop.f32.mrf.mxu0
    %v394 = vadd.f32 0.0, %v393
    %395 = vmatmul.bf16.gmra.mxu0 %v212
    %v396 = vpop.f32.mrf.mxu0
    %v397 = vadd.f32 0.0, %v396
    %v398 = vpop.f32.mrf.mxu0
    %v399 = vadd.f32 0.0, %v398
    %400 = vmatmul.bf16.gmra.mxu0 %v215
    %v401 = vpop.f32.mrf.mxu0
    %v402 = vadd.f32 0.0, %v401
    %v403 = vpop.f32.mrf.mxu0
    %v404 = vadd.f32 0.0, %v403
    %405 = vmatmul.bf16.gmra.mxu0 %v218
    %v406 = vpop.f32.mrf.mxu0
    %v407 = vadd.f32 0.0, %v406
    %v408 = vpop.f32.mrf.mxu0
    %v409 = vadd.f32 0.0, %v408
    %410 = vmatmul.bf16.gmra.mxu0 %v221
    %v411 = vpop.f32.mrf.mxu0
    %v412 = vadd.f32 0.0, %v411
    %v413 = vpop.f32.mrf.mxu0
    %v414 = vadd.f32 0.0, %v413
    %415 = vmatmul.bf16.gmra.mxu0 %v224
    %v416 = vpop.f32.mrf.mxu0
    %v417 = vadd.f32 0.0, %v416
    %v418 = vpop.f32.mrf.mxu0
    %v419 = vadd.f32 0.0, %v418
    %420 = vmatmul.bf16.gmra.mxu0 %v227
    %v421 = vpop.f32.mrf.mxu0
    %v422 = vadd.f32 0.0, %v421
    %v423 = vpop.f32.mrf.mxu0
    %v424 = vadd.f32 0.0, %v423
    %425 = vmatmul.bf16.gmra.mxu0 %v230
    %v426 = vpop.f32.mrf.mxu0
    %v427 = vadd.f32 0.0, %v426
    %v428 = vpop.f32.mrf.mxu0
    %v429 = vadd.f32 0.0, %v428
    %430 = vdwg.mxu0
    %431 = vmatpush.bf16.msra.mxu0 %v336
    %432 = vmatpush.bf16.msra.mxu0 %v335
    %433 = vmatpush.bf16.msra.mxu0 %v334
    %434 = vmatpush.bf16.msra.mxu0 %v333
    %435 = vmatpush.bf16.msra.mxu0 %v332
    %436 = vmatpush.bf16.msra.mxu0 %v331
    %437 = vmatpush.bf16.msra.mxu0 %v330
    %438 = vmatpush.bf16.msra.mxu0 %v329
    %439 = vmatmul.bf16.gmra.mxu0 %v210
    %v440 = vpop.f32.mrf.mxu0
    %v441 = vadd.f32 %v392, %v440
    %v442 = vpop.f32.mrf.mxu0
    %v443 = vadd.f32 %v394, %v442
    %444 = vmatmul.bf16.gmra.mxu0 %v213
    %v445 = vpop.f32.mrf.mxu0
    %v446 = vadd.f32 %v397, %v445
    %v447 = vpop.f32.mrf.mxu0
    %v448 = vadd.f32 %v399, %v447
    %449 = vmatmul.bf16.gmra.mxu0 %v216
    %v450 = vpop.f32.mrf.mxu0
    %v451 = vadd.f32 %v402, %v450
    %v452 = vpop.f32.mrf.mxu0
    %v453 = vadd.f32 %v404, %v452
    %454 = vmatmul.bf16.gmra.mxu0 %v219
    %v455 = vpop.f32.mrf.mxu0
    %v456 = vadd.f32 %v407, %v455
    %v457 = vpop.f32.mrf.mxu0
    %v458 = vadd.f32 %v409, %v457
    %459 = vmatmul.bf16.gmra.mxu0 %v222
    %v460 = vpop.f32.mrf.mxu0
    %v461 = vadd.f32 %v412, %v460
    %v462 = vpop.f32.mrf.mxu0
    %v463 = vadd.f32 %v414, %v462
    %464 = vmatmul.bf16.gmra.mxu0 %v225
    %v465 = vpop.f32.mrf.mxu0
    %v466 = vadd.f32 %v417, %v465
    %v467 = vpop.f32.mrf.mxu0
    %v468 = vadd.f32 %v419, %v467
    %469 = vmatmul.bf16.gmra.mxu0 %v228
    %v470 = vpop.f32.mrf.mxu0
    %v471 = vadd.f32 %v422, %v470
    %v472 = vpop.f32.mrf.mxu0
    %v473 = vadd.f32 %v424, %v472
    %474 = vmatmul.bf16.gmra.mxu0 %v231
    %v475 = vpop.f32.mrf.mxu0
    %v476 = vadd.f32 %v427, %v475
    %v477 = vpop.f32.mrf.mxu0
    %v478 = vadd.f32 %v429, %v477
    %479 = vdwg.mxu0
    %480 = vmatpush.bf16.msra.mxu0 0
    %481 = vmatpush.bf16.msra.mxu0 0
    %482 = vmatpush.bf16.msra.mxu0 0
    %483 = vmatpush.bf16.msra.mxu0 0
    %484 = vmatpush.bf16.msra.mxu0 0
    %485 = vmatpush.bf16.msra.mxu0 0
    %486 = vmatpush.bf16.msra.mxu0 %v338
    %487 = vmatpush.bf16.msra.mxu0 %v337
    %488 = vmatmul.bf16.gmra.mxu0 %v359
    %v489 = vpop.f32.mrf.mxu0
    %v490 = vadd.f32 %v441, %v489
    %v491 = vpop.f32.mrf.mxu0
    %v492 = vadd.f32 %v443, %v491
    %493 = vmatmul.bf16.gmra.mxu0 %v362
    %v494 = vpop.f32.mrf.mxu0
    %v495 = vadd.f32 %v446, %v494
    %v496 = vpop.f32.mrf.mxu0
    %v497 = vadd.f32 %v448, %v496
    %498 = vmatmul.bf16.gmra.mxu0 %v365
    %v499 = vpop.f32.mrf.mxu0
    %v500 = vadd.f32 %v451, %v499
    %v501 = vpop.f32.mrf.mxu0
    %v502 = vadd.f32 %v453, %v501
    %503 = vmatmul.bf16.gmra.mxu0 %v368
    %v504 = vpop.f32.mrf.mxu0
    %v505 = vadd.f32 %v456, %v504
    %v506 = vpop.f32.mrf.mxu0
    %v507 = vadd.f32 %v458, %v506
    %508 = vmatmul.bf16.gmra.mxu0 %v371
    %v509 = vpop.f32.mrf.mxu0
    %v510 = vadd.f32 %v461, %v509
    %v511 = vpop.f32.mrf.mxu0
    %v512 = vadd.f32 %v463, %v511
    %513 = vmatmul.bf16.gmra.mxu0 %v374
    %v514 = vpop.f32.mrf.mxu0
    %v515 = vadd.f32 %v466, %v514
    %v516 = vpop.f32.mrf.mxu0
    %v517 = vadd.f32 %v468, %v516
    %518 = vmatmul.bf16.gmra.mxu0 %v377
    %v519 = vpop.f32.mrf.mxu0
    %v520 = vadd.f32 %v471, %v519
    %v521 = vpop.f32.mrf.mxu0
    %v522 = vadd.f32 %v473, %v521
    %523 = vmatmul.bf16.gmra.mxu0 %v380
    %v524 = vpop.f32.mrf.mxu0
    %v525 = vadd.f32 %v476, %v524
    %v526 = vpop.f32.mrf.mxu0
    %v527 = vadd.f32 %v478, %v526
    %528 = vdwg.mxu0
    %v529 = vadd.f32 %v490, %v492
    %v530 = vadd.f32 %v529, %v495
    %v531 = vadd.f32 %v530, %v497
    %v532 = vadd.f32 %v531, %v500
    %v533 = vadd.f32 %v532, %v502
    %v534 = vadd.f32 %v533, %v505
    %v535 = vadd.f32 %v534, %v507
    %v536 = vadd.f32 %v535, %v510
    %v537 = vadd.f32 %v536, %v512
    %v538 = vadd.f32 %v537, %v515
    %v539 = vadd.f32 %v538, %v517
    %v540 = vadd.f32 %v539, %v520
    %v541 = vadd.f32 %v540, %v522
    %v542 = vadd.f32 %v541, %v525
    %v543 = vadd.f32 %v542, %v527
    %v544 = vrot.slane %v543, 4
    %v545 = vadd.f32 %v543, %v544
    %v546 = vrot.slane %v545, 2
    %v547 = vadd.f32 %v545, %v546
    %v548 = vrot.slane %v547, 1
    %v549 = vadd.f32 %v547, %v548
    %v550 = vmul.f32 %v490, %v490
    %v551 = vmul.f32 %v492, %v492
    %v552 = vmul.f32 %v495, %v495
    %v553 = vmul.f32 %v497, %v497
    %v554 = vmul.f32 %v500, %v500
    %v555 = vmul.f32 %v502, %v502
    %v556 = vmul.f32 %v505, %v505
    %v557 = vmul.f32 %v507, %v507
    %v558 = vmul.f32 %v510, %v510
    %v559 = vmul.f32 %v512, %v512
    %v560 = vmul.f32 %v515, %v515
    %v561 = vmul.f32 %v517, %v517
    %v562 = vmul.f32 %v520, %v520
    %v563 = vmul.f32 %v522, %v522
    %v564 = vmul.f32 %v525, %v525
    %v565 = vmul.f32 %v527, %v527
    %v566 = vadd.f32 %v550, %v551
    %v567 = vadd.f32 %v566, %v552
    %v568 = vadd.f32 %v567, %v553
    %v569 = vadd.f32 %v568, %v554
    %v570 = vadd.f32 %v569, %v555
    %v571 = vadd.f32 %v570, %v556
    %v572 = vadd.f32 %v571, %v557
    %v573 = vadd.f32 %v572, %v558
    %v574 = vadd.f32 %v573, %v559
    %v575 = vadd.f32 %v574, %v560
    %v576 = vadd.f32 %v575, %v561
    %v577 = vadd.f32 %v576, %v562
    %v578 = vadd.f32 %v577, %v563
    %v579 = vadd.f32 %v578, %v564
    %v580 = vadd.f32 %v579, %v565
    %v581 = vrot.slane %v580, 4
    %v582 = vadd.f32 %v580, %v581
    %v583 = vrot.slane %v582, 2
    %v584 = vadd.f32 %v582, %v583
    %v585 = vrot.slane %v584, 1
    %v586 = vadd.f32 %v584, %v585
    %588 = vrot.lane.b32.xlu0 %v549, 96
    %v589 = vpop.permute.xlu0 %588
    %v591 = vadd.f32 %v549, %v589
    %593 = vrot.lane.b32.xlu0 %v586, 96
    %v594 = vpop.permute.xlu0 %593
    %v596 = vadd.f32 %v586, %v594
    %597 = vrot.lane.b32.xlu0 %v549, 64
    %v598 = vpop.permute.xlu0 %597
    %v600 = vadd.f32 %v591, %v598
    %601 = vrot.lane.b32.xlu0 %v586, 64
    %v602 = vpop.permute.xlu0 %601
    %v604 = vadd.f32 %v596, %v602
    %605 = vrot.lane.b32.xlu0 %v549, 32
    %v606 = vpop.permute.xlu0 %605
    %v608 = vadd.f32 %v600, %v606
    %609 = vrot.lane.b32.xlu0 %v586, 32
    %v610 = vpop.permute.xlu0 %609
    %v612 = vadd.f32 %v604, %v610
    %v613 = vmul.f32 %v608, 0.001953125
    %v614 = vmul.f32 %v612, 0.001953125
    %v615 = vmul.f32 %v613, %v613
    %v616 = vsub.f32 %v614, %v615
    %v617 = vmax.f32 %v616, 0.0
    %v618 = vld [vmem:[#allocation4] sm:$0x1]
    %v619 = vadd.f32 %v617, 1e-05
    %v620 = vrsqrt.pop %v619
    %v621 = vmul.f32 %v620, %v619
    %v622 = vmul.f32 %v621, %v620
    %v623 = vmul.f32 0.5, %v622
    %v624 = vsub.f32 1.5, %v623
    %v625 = vmul.f32 %v620, %v624
    %vm626 = vweird.f32 %v619
    %vm627 = vweird.f32 %v620
    %vm628 = vmor %vm626, %vm627
    %v629 = vsel %vm628, %v620, %v625
    %v630 = vmul.f32 %v618, %v629
    %v631 = vld [vmem:[#allocation6] sm:$0x1]
    %v632 = vmul.f32 %v613, %v630
    %v633 = vsub.f32 %v631, %v632
    %v635 = vperm.slane %v630, 0
    %636 = vrot.lane.b32.xlu0 %v635, 32
    %v637 = vpop.permute.xlu0 %636
    %639 = vrot.lane.b32.xlu0 %v635, 64
    %v640 = vpop.permute.xlu0 %639
    %642 = vrot.lane.b32.xlu0 %v635, 96
    %v643 = vpop.permute.xlu0 %642
    %v645 = vsel %vm357, %v630, %v637
    %vm646 = vcmask 523264
    %v647 = vsel %vm646, %v645, %v640
    %vm648 = vcmask 785408
    %v649 = vsel %vm648, %v647, %v643
    %v651 = vperm.slane %v633, 0
    %652 = vrot.lane.b32.xlu0 %v651, 32
    %v653 = vpop.permute.xlu0 %652
    %655 = vrot.lane.b32.xlu0 %v651, 64
    %v656 = vpop.permute.xlu0 %655
    %658 = vrot.lane.b32.xlu0 %v651, 96
    %v659 = vpop.permute.xlu0 %658
    %v661 = vsel %vm357, %v633, %v653
    %v662 = vsel %vm646, %v661, %v656
    %v663 = vsel %vm648, %v662, %v659
    %v664 = vperm.slane %v649, 0
    %v665 = vmul.f32 %v490, %v664
    %v666 = vmul.f32 %v492, %v664
    %v667 = vmul.f32 %v495, %v664
    %v668 = vmul.f32 %v497, %v664
    %v669 = vmul.f32 %v500, %v664
    %v670 = vmul.f32 %v502, %v664
    %v671 = vmul.f32 %v505, %v664
    %v672 = vmul.f32 %v507, %v664
    %v673 = vmul.f32 %v510, %v664
    %v674 = vmul.f32 %v512, %v664
    %v675 = vmul.f32 %v515, %v664
    %v676 = vmul.f32 %v517, %v664
    %v677 = vmul.f32 %v520, %v664
    %v678 = vmul.f32 %v522, %v664
    %v679 = vmul.f32 %v525, %v664
    %v680 = vmul.f32 %v527, %v664
    %v681 = vperm.slane %v663, 0
    %v682 = vadd.f32 %v665, %v681
    %v683 = vadd.f32 %v666, %v681
    %v684 = vadd.f32 %v667, %v681
    %v685 = vadd.f32 %v668, %v681
    %v686 = vadd.f32 %v669, %v681
    %v687 = vadd.f32 %v670, %v681
    %v688 = vadd.f32 %v671, %v681
    %v689 = vadd.f32 %v672, %v681
    %v690 = vadd.f32 %v673, %v681
    %v691 = vadd.f32 %v674, %v681
    %v692 = vadd.f32 %v675, %v681
    %v693 = vadd.f32 %v676, %v681
    %v694 = vadd.f32 %v677, %v681
    %v695 = vadd.f32 %v678, %v681
    %v696 = vadd.f32 %v679, %v681
    %v697 = vadd.f32 %v680, %v681
    %vm698 = vcmp.ge.f32.partialorder %v682, 0.0
    %vm699 = vcmp.ge.f32.partialorder %v683, 0.0
    %vm700 = vcmp.ge.f32.partialorder %v684, 0.0
    %vm701 = vcmp.ge.f32.partialorder %v685, 0.0
    %vm702 = vcmp.ge.f32.partialorder %v686, 0.0
    %vm703 = vcmp.ge.f32.partialorder %v687, 0.0
    %vm704 = vcmp.ge.f32.partialorder %v688, 0.0
    %vm705 = vcmp.ge.f32.partialorder %v689, 0.0
    %vm706 = vcmp.ge.f32.partialorder %v690, 0.0
    %vm707 = vcmp.ge.f32.partialorder %v691, 0.0
    %vm708 = vcmp.ge.f32.partialorder %v692, 0.0
    %vm709 = vcmp.ge.f32.partialorder %v693, 0.0
    %vm710 = vcmp.ge.f32.partialorder %v694, 0.0
    %vm711 = vcmp.ge.f32.partialorder %v695, 0.0
    %vm712 = vcmp.ge.f32.partialorder %v696, 0.0
    %vm713 = vcmp.ge.f32.partialorder %v697, 0.0
    %v714 = vmul.f32 %v682, 0.2
    %v715 = vmul.f32 %v683, 0.2
    %v716 = vmul.f32 %v684, 0.2
    %v717 = vmul.f32 %v685, 0.2
    %v718 = vmul.f32 %v686, 0.2
    %v719 = vmul.f32 %v687, 0.2
    %v720 = vmul.f32 %v688, 0.2
    %v721 = vmul.f32 %v689, 0.2
    %v722 = vmul.f32 %v690, 0.2
    %v723 = vmul.f32 %v691, 0.2
    %v724 = vmul.f32 %v692, 0.2
    %v725 = vmul.f32 %v693, 0.2
    %v726 = vmul.f32 %v694, 0.2
    %v727 = vmul.f32 %v695, 0.2
    %v728 = vmul.f32 %v696, 0.2
    %v729 = vmul.f32 %v697, 0.2
    %v730 = vsel %vm698, %v682, %v714
    %v731 = vsel %vm699, %v683, %v715
    %v732 = vsel %vm700, %v684, %v716
    %v733 = vsel %vm701, %v685, %v717
    %v734 = vsel %vm702, %v686, %v718
    %v735 = vsel %vm703, %v687, %v719
    %v736 = vsel %vm704, %v688, %v720
    %v737 = vsel %vm705, %v689, %v721
    %v738 = vsel %vm706, %v690, %v722
    %v739 = vsel %vm707, %v691, %v723
    %v740 = vsel %vm708, %v692, %v724
    %v741 = vsel %vm709, %v693, %v725
    %v742 = vsel %vm710, %v694, %v726
    %v743 = vsel %vm711, %v695, %v727
    %v744 = vsel %vm712, %v696, %v728
    %v745 = vsel %vm713, %v697, %v729
    %v746 = vpack.c.bf16 %v730, %v730
    %v747 = vpack.c.bf16 %v731, %v731
    %v748 = vpack.c.bf16 %v732, %v732
    %v749 = vpack.c.bf16 %v733, %v733
    %v750 = vpack.c.bf16 %v734, %v734
    %v751 = vpack.c.bf16 %v735, %v735
    %v752 = vpack.c.bf16 %v736, %v736
    %v753 = vpack.c.bf16 %v737, %v737
    %v754 = vpack.c.bf16 %v738, %v738
    %v755 = vpack.c.bf16 %v739, %v739
    %v756 = vpack.c.bf16 %v740, %v740
    %v757 = vpack.c.bf16 %v741, %v741
    %v758 = vpack.c.bf16 %v742, %v742
    %v759 = vpack.c.bf16 %v743, %v743
    %v760 = vpack.c.bf16 %v744, %v744
    %v761 = vpack.c.bf16 %v745, %v745
    %762 = vst [vmem:[%s4] sm:$0xf] %v746
    %763 = vst [vmem:[%s4 + $0x4] sm:$0xf] %v747
    %764 = vst [vmem:[%s4 + $0x8] sm:$0xf] %v748
    %765 = vst [vmem:[%s4 + $0xc] sm:$0xf] %v749
    %766 = vst [vmem:[%s4 + $0x10] sm:$0xf] %v750
    %767 = vst [vmem:[%s4 + $0x14] sm:$0xf] %v751
    %768 = vst [vmem:[%s4 + $0x18] sm:$0xf] %v752
    %769 = vst [vmem:[%s4 + $0x1c] sm:$0xf] %v753
    %770 = vst [vmem:[%s4 + $0x20] sm:$0xf] %v754
    %771 = vst [vmem:[%s4 + $0x24] sm:$0xf] %v755
    %772 = vst [vmem:[%s4 + $0x28] sm:$0xf] %v756
    %773 = vst [vmem:[%s4 + $0x2c] sm:$0xf] %v757
    %774 = vst [vmem:[%s4 + $0x30] sm:$0xf] %v758
    %775 = vst [vmem:[%s4 + $0x34] sm:$0xf] %v759
    %776 = vst [vmem:[%s4 + $0x38] sm:$0xf] %v760
    %777 = vst [vmem:[%s4 + $0x3c] sm:$0xf] %v761
    // Predicated region
    $region30: #{cnet_g1_forward.7} parent=1 // pred_check
      _
    $region31: #{cnet_g1_forward.7} parent=1 // pred_check_branch
      %779 = sbr.rel (0) target = $region33
    $region32: #{cnet_g1_forward.7} parent=1 // pred_region
      _
    $region33: #{cnet_g1_forward.7} parent=1 // pred_fallthru
      _
    // Predicated region
    $region34: #{cnet_g1_forward.7} parent=1 // pred_check
      _
    $region35: #{cnet_g1_forward.7} parent=1 // pred_check_branch
      %781 = sbr.rel (0) target = $region37
    $region36: #{cnet_g1_forward.7} parent=1 // pred_region
      _
    $region37: #{cnet_g1_forward.7} parent=1 // pred_fallthru
      _
    %782 = vsyncpa [#allocation3], 1
    %783 = vsyncpa [#allocation5], 1

// kernel: cnet_g1_forward.8
$region0: #{cnet_g1_forward.8}
  #allocation0 [shape = 'u32[]', space=smem, size = 0x4, offset = 0x4, fixed_abs, tag = 'smem constant byte address 0x4 - core index']
  #allocation1 [shape = 'u32[72,128]{1,0:T(1,128)}', space=vmem, size = 0x9000, scoped, tag = 'internal scratch']
  %s0 = inlined_call_operand.vmem [shape: bf16[512,288], index: 0, kind: input, shape index: {}]
  %s1 = inlined_call_operand.vmem [shape: bf16[288,128], index: 1, kind: input, shape index: {}]
  %s2 = inlined_call_operand.vmem [shape: f32[1,32], index: 2, kind: input, shape index: {}]
  %s3 = inlined_call_operand.vmem [shape: f32[1,32], index: 3, kind: input, shape index: {}]
  %s4 = inlined_call_operand.vmem [shape: bf16[512,128], index: 4, kind: output, shape index: {}]
  %s5 = sld [smem:[#allocation0]]
  $region26: #{cnet_g1_forward.8} parent=0
    _
  %s7 = ssub.s32 1, %s5
  %s8 = scalar_select 0, %s7, %s5
  // Predicated region
  $region2: #{cnet_g1_forward.8} parent=0 // pred_check
    _
  $region3: #{cnet_g1_forward.8} parent=0 // pred_check_branch
    %10 = sbr.rel (0) target = $region5
  $region4: #{cnet_g1_forward.8} parent=0 // pred_region
    _
  $region5: #{cnet_g1_forward.8} parent=0 // pred_fallthru
    _
  // Predicated region
  $region6: #{cnet_g1_forward.8} parent=0 // pred_check
    _
  $region7: #{cnet_g1_forward.8} parent=0 // pred_check_branch
    %12 = sbr.rel (0) target = $region9
  $region8: #{cnet_g1_forward.8} parent=0 // pred_region
    _
  $region9: #{cnet_g1_forward.8} parent=0 // pred_fallthru
    _
  // Predicated region
  $region10: #{cnet_g1_forward.8} parent=0 // pred_check
    _
  $region11: #{cnet_g1_forward.8} parent=0 // pred_check_branch
    %14 = sbr.rel (0) target = $region13
  $region12: #{cnet_g1_forward.8} parent=0 // pred_region
    _
  $region13: #{cnet_g1_forward.8} parent=0 // pred_fallthru
    _
  // Predicated region
  $region14: #{cnet_g1_forward.8} parent=0 // pred_check
    _
  $region15: #{cnet_g1_forward.8} parent=0 // pred_check_branch
    %16 = sbr.rel (0) target = $region17
  $region16: #{cnet_g1_forward.8} parent=0 // pred_region
    _
  $region17: #{cnet_g1_forward.8} parent=0 // pred_fallthru
    _
  %v18 = vld [vmem:[%s0] sm:$0xff]
  %v19 = vld [vmem:[%s0 + $0x8] sm:$0xf]
  %v20 = vld [vmem:[%s0 + $0xc] sm:$0xff]
  %v21 = vld [vmem:[%s0 + $0x14] sm:$0xf]
  %v22 = vld [vmem:[%s0 + $0x18] sm:$0xff]
  %v23 = vld [vmem:[%s0 + $0x20] sm:$0xf]
  %v24 = vld [vmem:[%s0 + $0x24] sm:$0xff]
  %v25 = vld [vmem:[%s0 + $0x2c] sm:$0xf]
  %v26 = vld [vmem:[%s0 + $0x30] sm:$0xff]
  %v27 = vld [vmem:[%s0 + $0x38] sm:$0xf]
  %v28 = vld [vmem:[%s0 + $0x3c] sm:$0xff]
  %v29 = vld [vmem:[%s0 + $0x44] sm:$0xf]
  %v30 = vld [vmem:[%s0 + $0x48] sm:$0xff]
  %v31 = vld [vmem:[%s0 + $0x50] sm:$0xf]
  %v32 = vld [vmem:[%s0 + $0x54] sm:$0xff]
  %v33 = vld [vmem:[%s0 + $0x5c] sm:$0xf]
  %v34 = vld [vmem:[%s0 + $0x60] sm:$0xff]
  %v35 = vld [vmem:[%s0 + $0x68] sm:$0xf]
  %v36 = vld [vmem:[%s0 + $0x6c] sm:$0xff]
  %v37 = vld [vmem:[%s0 + $0x74] sm:$0xf]
  %v38 = vld [vmem:[%s0 + $0x78] sm:$0xff]
  %v39 = vld [vmem:[%s0 + $0x80] sm:$0xf]
  %v40 = vld [vmem:[%s0 + $0x84] sm:$0xff]
  %v41 = vld [vmem:[%s0 + $0x8c] sm:$0xf]
  %v42 = vld [vmem:[%s0 + $0x90] sm:$0xff]
  %v43 = vld [vmem:[%s0 + $0x98] sm:$0xf]
  %v44 = vld [vmem:[%s0 + $0x9c] sm:$0xff]
  %v45 = vld [vmem:[%s0 + $0xa4] sm:$0xf]
  %v46 = vld [vmem:[%s0 + $0xa8] sm:$0xff]
  %v47 = vld [vmem:[%s0 + $0xb0] sm:$0xf]
  %v48 = vld [vmem:[%s0 + $0xb4] sm:$0xff]
  %v49 = vld [vmem:[%s0 + $0xbc] sm:$0xf]
  %v50 = vld [vmem:[%s0 + $0xc0] sm:$0xff]
  %v51 = vld [vmem:[%s0 + $0xc8] sm:$0xf]
  %v52 = vld [vmem:[%s0 + $0xcc] sm:$0xff]
  %v53 = vld [vmem:[%s0 + $0xd4] sm:$0xf]
  %v54 = vld [vmem:[%s0 + $0xd8] sm:$0xff]
  %v55 = vld [vmem:[%s0 + $0xe0] sm:$0xf]
  %v56 = vld [vmem:[%s0 + $0xe4] sm:$0xff]
  %v57 = vld [vmem:[%s0 + $0xec] sm:$0xf]
  %v58 = vld [vmem:[%s0 + $0xf0] sm:$0xff]
  %v59 = vld [vmem:[%s0 + $0xf8] sm:$0xf]
  %v60 = vld [vmem:[%s0 + $0xfc] sm:$0xff]
  %v61 = vld [vmem:[%s0 + $0x104] sm:$0xf]
  %v62 = vld [vmem:[%s0 + $0x108] sm:$0xff]
  %v63 = vld [vmem:[%s0 + $0x110] sm:$0xf]
  %v64 = vld [vmem:[%s0 + $0x114] sm:$0xff]
  %v65 = vld [vmem:[%s0 + $0x11c] sm:$0xf]
  %v66 = vld [vmem:[%s0 + $0x120] sm:$0xff]
  %v67 = vld [vmem:[%s0 + $0x128] sm:$0xf]
  %v68 = vld [vmem:[%s0 + $0x12c] sm:$0xff]
  %v69 = vld [vmem:[%s0 + $0x134] sm:$0xf]
  %v70 = vld [vmem:[%s0 + $0x138] sm:$0xff]
  %v71 = vld [vmem:[%s0 + $0x140] sm:$0xf]
  %v72 = vld [vmem:[%s0 + $0x144] sm:$0xff]
  %v73 = vld [vmem:[%s0 + $0x14c] sm:$0xf]
  %v74 = vld [vmem:[%s0 + $0x150] sm:$0xff]
  %v75 = vld [vmem:[%s0 + $0x158] sm:$0xf]
  %v76 = vld [vmem:[%s0 + $0x15c] sm:$0xff]
  %v77 = vld [vmem:[%s0 + $0x164] sm:$0xf]
  %v78 = vld [vmem:[%s0 + $0x168] sm:$0xff]
  %v79 = vld [vmem:[%s0 + $0x170] sm:$0xf]
  %v80 = vld [vmem:[%s0 + $0x174] sm:$0xff]
  %v81 = vld [vmem:[%s0 + $0x17c] sm:$0xf]
  %v82 = vld [vmem:[%s0 + $0x180] sm:$0xff]
  %v83 = vld [vmem:[%s0 + $0x188] sm:$0xf]
  %v84 = vld [vmem:[%s0 + $0x18c] sm:$0xff]
  %v85 = vld [vmem:[%s0 + $0x194] sm:$0xf]
  %v86 = vld [vmem:[%s0 + $0x198] sm:$0xff]
  %v87 = vld [vmem:[%s0 + $0x1a0] sm:$0xf]
  %v88 = vld [vmem:[%s0 + $0x1a4] sm:$0xff]
  %v89 = vld [vmem:[%s0 + $0x1ac] sm:$0xf]
  %v90 = vld [vmem:[%s0 + $0x1b0] sm:$0xff]
  %v91 = vld [vmem:[%s0 + $0x1b8] sm:$0xf]
  %v92 = vld [vmem:[%s0 + $0x1bc] sm:$0xff]
  %v93 = vld [vmem:[%s0 + $0x1c4] sm:$0xf]
  %v94 = vld [vmem:[%s0 + $0x1c8] sm:$0xff]
  %v95 = vld [vmem:[%s0 + $0x1d0] sm:$0xf]
  %v96 = vld [vmem:[%s0 + $0x1d4] sm:$0xff]
  %v97 = vld [vmem:[%s0 + $0x1dc] sm:$0xf]
  %v98 = vld [vmem:[%s0 + $0x1e0] sm:$0xff]
  %v99 = vld [vmem:[%s0 + $0x1e8] sm:$0xf]
  %v100 = vld [vmem:[%s0 + $0x1ec] sm:$0xff]
  %v101 = vld [vmem:[%s0 + $0x1f4] sm:$0xf]
  %v102 = vld [vmem:[%s0 + $0x1f8] sm:$0xff]
  %v103 = vld [vmem:[%s0 + $0x200] sm:$0xf]
  %v104 = vld [vmem:[%s0 + $0x204] sm:$0xff]
  %v105 = vld [vmem:[%s0 + $0x20c] sm:$0xf]
  %v106 = vld [vmem:[%s0 + $0x210] sm:$0xff]
  %v107 = vld [vmem:[%s0 + $0x218] sm:$0xf]
  %v108 = vld [vmem:[%s0 + $0x21c] sm:$0xff]
  %v109 = vld [vmem:[%s0 + $0x224] sm:$0xf]
  %v110 = vld [vmem:[%s0 + $0x228] sm:$0xff]
  %v111 = vld [vmem:[%s0 + $0x230] sm:$0xf]
  %v112 = vld [vmem:[%s0 + $0x234] sm:$0xff]
  %v113 = vld [vmem:[%s0 + $0x23c] sm:$0xf]
  %v114 = vld [vmem:[%s0 + $0x240] sm:$0xff]
  %v115 = vld [vmem:[%s0 + $0x248] sm:$0xf]
  %v116 = vld [vmem:[%s0 + $0x24c] sm:$0xff]
  %v117 = vld [vmem:[%s0 + $0x254] sm:$0xf]
  %v118 = vld [vmem:[%s0 + $0x258] sm:$0xff]
  %v119 = vld [vmem:[%s0 + $0x260] sm:$0xf]
  %v120 = vld [vmem:[%s0 + $0x264] sm:$0xff]
  %v121 = vld [vmem:[%s0 + $0x26c] sm:$0xf]
  %v122 = vld [vmem:[%s0 + $0x270] sm:$0xff]
  %v123 = vld [vmem:[%s0 + $0x278] sm:$0xf]
  %v124 = vld [vmem:[%s0 + $0x27c] sm:$0xff]
  %v125 = vld [vmem:[%s0 + $0x284] sm:$0xf]
  %v126 = vld [vmem:[%s0 + $0x288] sm:$0xff]
  %v127 = vld [vmem:[%s0 + $0x290] sm:$0xf]
  %v128 = vld [vmem:[%s0 + $0x294] sm:$0xff]
  %v129 = vld [vmem:[%s0 + $0x29c] sm:$0xf]
  %v130 = vld [vmem:[%s0 + $0x2a0] sm:$0xff]
  %v131 = vld [vmem:[%s0 + $0x2a8] sm:$0xf]
  %v132 = vld [vmem:[%s0 + $0x2ac] sm:$0xff]
  %v133 = vld [vmem:[%s0 + $0x2b4] sm:$0xf]
  %v134 = vld [vmem:[%s0 + $0x2b8] sm:$0xff]
  %v135 = vld [vmem:[%s0 + $0x2c0] sm:$0xf]
  %v136 = vld [vmem:[%s0 + $0x2c4] sm:$0xff]
  %v137 = vld [vmem:[%s0 + $0x2cc] sm:$0xf]
  %v138 = vld [vmem:[%s0 + $0x2d0] sm:$0xff]
  %v139 = vld [vmem:[%s0 + $0x2d8] sm:$0xf]
  %v140 = vld [vmem:[%s0 + $0x2dc] sm:$0xff]
  %v141 = vld [vmem:[%s0 + $0x2e4] sm:$0xf]
  %v142 = vld [vmem:[%s0 + $0x2e8] sm:$0xff]
  %v143 = vld [vmem:[%s0 + $0x2f0] sm:$0xf]
  %v144 = vld [vmem:[%s0 + $0x2f4] sm:$0xff]
  %v145 = vld [vmem:[%s0 + $0x2fc] sm:$0xf]
  %v146 = vld [vmem:[%s1] sm:$0xf]
  %v147 = vld [vmem:[%s1 + $0x4] sm:$0xf]
  %v148 = vld [vmem:[%s1 + $0x8] sm:$0xf]
  %v149 = vld [vmem:[%s1 + $0xc] sm:$0xf]
  %v150 = vld [vmem:[%s1 + $0x10] sm:$0xf]
  %v151 = vld [vmem:[%s1 + $0x14] sm:$0xf]
  %v152 = vld [vmem:[%s1 + $0x18] sm:$0xf]
  %v153 = vld [vmem:[%s1 + $0x1c] sm:$0xf]
  %v154 = vld [vmem:[%s1 + $0x20] sm:$0xf]
  %v155 = vld [vmem:[%s1 + $0x24] sm:$0xf]
  %v156 = vld [vmem:[%s1 + $0x28] sm:$0xf]
  %v157 = vld [vmem:[%s1 + $0x2c] sm:$0xf]
  %v158 = vld [vmem:[%s1 + $0x30] sm:$0xf]
  %v159 = vld [vmem:[%s1 + $0x34] sm:$0xf]
  %v160 = vld [vmem:[%s1 + $0x38] sm:$0xf]
  %v161 = vld [vmem:[%s1 + $0x3c] sm:$0xf]
  %v162 = vld [vmem:[%s1 + $0x40] sm:$0xf]
  %v163 = vld [vmem:[%s1 + $0x44] sm:$0xf]
  %v164 = vld [vmem:[%s1 + $0x48] sm:$0xf]
  %v165 = vld [vmem:[%s1 + $0x4c] sm:$0xf]
  %v166 = vld [vmem:[%s1 + $0x50] sm:$0xf]
  %v167 = vld [vmem:[%s1 + $0x54] sm:$0xf]
  %v168 = vld [vmem:[%s1 + $0x58] sm:$0xf]
  %v169 = vld [vmem:[%s1 + $0x5c] sm:$0xf]
  %v170 = vld [vmem:[%s1 + $0x60] sm:$0xf]
  %v171 = vld [vmem:[%s1 + $0x64] sm:$0xf]
  %v172 = vld [vmem:[%s1 + $0x68] sm:$0xf]
  %v173 = vld [vmem:[%s1 + $0x6c] sm:$0xf]
  %v174 = vld [vmem:[%s1 + $0x70] sm:$0xf]
  %v175 = vld [vmem:[%s1 + $0x74] sm:$0xf]
  %v176 = vld [vmem:[%s1 + $0x78] sm:$0xf]
  %v177 = vld [vmem:[%s1 + $0x7c] sm:$0xf]
  %v178 = vld [vmem:[%s1 + $0x80] sm:$0xf]
  %v179 = vld [vmem:[%s1 + $0x84] sm:$0xf]
  %v180 = vld [vmem:[%s1 + $0x88] sm:$0xf]
  %v181 = vld [vmem:[%s1 + $0x8c] sm:$0xf]
  %v310 = vunpack.c.l.b16 %v18
  %v311 = vunpack.c.h.b16 %v18
  %v312 = vunpack.c.l.b16 %v19
  %v313 = vunpack.c.l.b16 %v20
  %v314 = vunpack.c.h.b16 %v20
  %v315 = vunpack.c.l.b16 %v21
  %v316 = vunpack.c.l.b16 %v22
  %v317 = vunpack.c.h.b16 %v22
  %v318 = vunpack.c.l.b16 %v23
  %v319 = vunpack.c.l.b16 %v24
  %v320 = vunpack.c.h.b16 %v24
  %v321 = vunpack.c.l.b16 %v25
  %v322 = vunpack.c.l.b16 %v26
  %v323 = vunpack.c.h.b16 %v26
  %v324 = vunpack.c.l.b16 %v27
  %v325 = vunpack.c.l.b16 %v28
  %v326 = vunpack.c.h.b16 %v28
  %v327 = vunpack.c.l.b16 %v29
  %v328 = vunpack.c.l.b16 %v30
  %v329 = vunpack.c.h.b16 %v30
  %v330 = vunpack.c.l.b16 %v31
  %v331 = vunpack.c.l.b16 %v32
  %v332 = vunpack.c.h.b16 %v32
  %v333 = vunpack.c.l.b16 %v33
  %v334 = vunpack.c.l.b16 %v34
  %v335 = vunpack.c.h.b16 %v34
  %v336 = vunpack.c.l.b16 %v35
  %v337 = vunpack.c.l.b16 %v36
  %v338 = vunpack.c.h.b16 %v36
  %v339 = vunpack.c.l.b16 %v37
  %v340 = vunpack.c.l.b16 %v38
  %v341 = vunpack.c.h.b16 %v38
  %v342 = vunpack.c.l.b16 %v39
  %v343 = vunpack.c.l.b16 %v40
  %v344 = vunpack.c.h.b16 %v40
  %v345 = vunpack.c.l.b16 %v41
  %v346 = vunpack.c.l.b16 %v42
  %v347 = vunpack.c.h.b16 %v42
  %v348 = vunpack.c.l.b16 %v43
  %v349 = vunpack.c.l.b16 %v44
  %v350 = vunpack.c.h.b16 %v44
  %v351 = vunpack.c.l.b16 %v45
  %v352 = vunpack.c.l.b16 %v46
  %v353 = vunpack.c.h.b16 %v46
  %v354 = vunpack.c.l.b16 %v47
  %v355 = vunpack.c.l.b16 %v48
  %v356 = vunpack.c.h.b16 %v48
  %v357 = vunpack.c.l.b16 %v49
  %v358 = vunpack.c.l.b16 %v50
  %v359 = vunpack.c.h.b16 %v50
  %v360 = vunpack.c.l.b16 %v51
  %v361 = vunpack.c.l.b16 %v52
  %v362 = vunpack.c.h.b16 %v52
  %v363 = vunpack.c.l.b16 %v53
  %v364 = vunpack.c.l.b16 %v54
  %v365 = vunpack.c.h.b16 %v54
  %v366 = vunpack.c.l.b16 %v55
  %v367 = vunpack.c.l.b16 %v56
  %v368 = vunpack.c.h.b16 %v56
  %v369 = vunpack.c.l.b16 %v57
  %v370 = vunpack.c.l.b16 %v58
  %v371 = vunpack.c.h.b16 %v58
  %v372 = vunpack.c.l.b16 %v59
  %v373 = vunpack.c.l.b16 %v60
  %v374 = vunpack.c.h.b16 %v60
  %v375 = vunpack.c.l.b16 %v61
  %v376 = vunpack.c.l.b16 %v62
  %v377 = vunpack.c.h.b16 %v62
  %v378 = vunpack.c.l.b16 %v63
  %v379 = vunpack.c.l.b16 %v64
  %v380 = vunpack.c.h.b16 %v64
  %v381 = vunpack.c.l.b16 %v65
  %v382 = vunpack.c.l.b16 %v66
  %v383 = vunpack.c.h.b16 %v66
  %v384 = vunpack.c.l.b16 %v67
  %v385 = vunpack.c.l.b16 %v68
  %v386 = vunpack.c.h.b16 %v68
  %v387 = vunpack.c.l.b16 %v69
  %v388 = vunpack.c.l.b16 %v70
  %v389 = vunpack.c.h.b16 %v70
  %v390 = vunpack.c.l.b16 %v71
  %v391 = vunpack.c.l.b16 %v72
  %v392 = vunpack.c.h.b16 %v72
  %v393 = vunpack.c.l.b16 %v73
  %v394 = vunpack.c.l.b16 %v74
  %v395 = vunpack.c.h.b16 %v74
  %v396 = vunpack.c.l.b16 %v75
  %v397 = vunpack.c.l.b16 %v76
  %v398 = vunpack.c.h.b16 %v76
  %v399 = vunpack.c.l.b16 %v77
  %v400 = vunpack.c.l.b16 %v78
  %v401 = vunpack.c.h.b16 %v78
  %v402 = vunpack.c.l.b16 %v79
  %v403 = vunpack.c.l.b16 %v80
  %v404 = vunpack.c.h.b16 %v80
  %v405 = vunpack.c.l.b16 %v81
  %v406 = vunpack.c.l.b16 %v82
  %v407 = vunpack.c.h.b16 %v82
  %v408 = vunpack.c.l.b16 %v83
  %v409 = vunpack.c.l.b16 %v84
  %v410 = vunpack.c.h.b16 %v84
  %v411 = vunpack.c.l.b16 %v85
  %v412 = vunpack.c.l.b16 %v86
  %v413 = vunpack.c.h.b16 %v86
  %v414 = vunpack.c.l.b16 %v87
  %v415 = vunpack.c.l.b16 %v88
  %v416 = vunpack.c.h.b16 %v88
  %v417 = vunpack.c.l.b16 %v89
  %v418 = vunpack.c.l.b16 %v90
  %v419 = vunpack.c.h.b16 %v90
  %v420 = vunpack.c.l.b16 %v91
  %v421 = vunpack.c.l.b16 %v92
  %v422 = vunpack.c.h.b16 %v92
  %v423 = vunpack.c.l.b16 %v93
  %v424 = vunpack.c.l.b16 %v94
  %v425 = vunpack.c.h.b16 %v94
  %v426 = vunpack.c.l.b16 %v95
  %v427 = vunpack.c.l.b16 %v96
  %v428 = vunpack.c.h.b16 %v96
  %v429 = vunpack.c.l.b16 %v97
  %v430 = vunpack.c.l.b16 %v98
  %v431 = vunpack.c.h.b16 %v98
  %v432 = vunpack.c.l.b16 %v99
  %v433 = vunpack.c.l.b16 %v100
  %v434 = vunpack.c.h.b16 %v100
  %v435 = vunpack.c.l.b16 %v101
  %v436 = vunpack.c.l.b16 %v102
  %v437 = vunpack.c.h.b16 %v102
  %v438 = vunpack.c.l.b16 %v103
  %v439 = vunpack.c.l.b16 %v104
  %v440 = vunpack.c.h.b16 %v104
  %v441 = vunpack.c.l.b16 %v105
  %v442 = vunpack.c.l.b16 %v106
  %v443 = vunpack.c.h.b16 %v106
  %v444 = vunpack.c.l.b16 %v107
  %v445 = vunpack.c.l.b16 %v108
  %v446 = vunpack.c.h.b16 %v108
  %v447 = vunpack.c.l.b16 %v109
  %v448 = vunpack.c.l.b16 %v110
  %v449 = vunpack.c.h.b16 %v110
  %v450 = vunpack.c.l.b16 %v111
  %v451 = vunpack.c.l.b16 %v112
  %v452 = vunpack.c.h.b16 %v112
  %v453 = vunpack.c.l.b16 %v113
  %v454 = vunpack.c.l.b16 %v114
  %v455 = vunpack.c.h.b16 %v114
  %v456 = vunpack.c.l.b16 %v115
  %v457 = vunpack.c.l.b16 %v116
  %v458 = vunpack.c.h.b16 %v116
  %v459 = vunpack.c.l.b16 %v117
  %v460 = vunpack.c.l.b16 %v118
  %v461 = vunpack.c.h.b16 %v118
  %v462 = vunpack.c.l.b16 %v119
  %v463 = vunpack.c.l.b16 %v120
  %v464 = vunpack.c.h.b16 %v120
  %v465 = vunpack.c.l.b16 %v121
  %v466 = vunpack.c.l.b16 %v122
  %v467 = vunpack.c.h.b16 %v122
  %v468 = vunpack.c.l.b16 %v123
  %v469 = vunpack.c.l.b16 %v124
  %v470 = vunpack.c.h.b16 %v124
  %v471 = vunpack.c.l.b16 %v125
  %v472 = vunpack.c.l.b16 %v126
  %v473 = vunpack.c.h.b16 %v126
  %v474 = vunpack.c.l.b16 %v127
  %v475 = vunpack.c.l.b16 %v128
  %v476 = vunpack.c.h.b16 %v128
  %v477 = vunpack.c.l.b16 %v129
  %v478 = vunpack.c.l.b16 %v130
  %v479 = vunpack.c.h.b16 %v130
  %v480 = vunpack.c.l.b16 %v131
  %v481 = vunpack.c.l.b16 %v132
  %v482 = vunpack.c.h.b16 %v132
  %v483 = vunpack.c.l.b16 %v133
  %v484 = vunpack.c.l.b16 %v134
  %v485 = vunpack.c.h.b16 %v134
  %v486 = vunpack.c.l.b16 %v135
  %v487 = vunpack.c.l.b16 %v136
  %v488 = vunpack.c.h.b16 %v136
  %v489 = vunpack.c.l.b16 %v137
  %v490 = vunpack.c.l.b16 %v138
  %v491 = vunpack.c.h.b16 %v138
  %v492 = vunpack.c.l.b16 %v139
  %v493 = vunpack.c.l.b16 %v140
  %v494 = vunpack.c.h.b16 %v140
  %v495 = vunpack.c.l.b16 %v141
  %v496 = vunpack.c.l.b16 %v142
  %v497 = vunpack.c.h.b16 %v142
  %v498 = vunpack.c.l.b16 %v143
  %v499 = vunpack.c.l.b16 %v144
  %v500 = vunpack.c.h.b16 %v144
  %v501 = vunpack.c.l.b16 %v145
  %v502 = vpack.c.b16 %v313, %v310
  %v503 = vpack.c.b16 %v314, %v311
  %v504 = vpack.c.b16 %v315, %v312
  %v505 = vpack.c.b16 %v319, %v316
  %v506 = vpack.c.b16 %v320, %v317
  %v507 = vpack.c.b16 %v321, %v318
  %v508 = vpack.c.b16 %v325, %v322
  %v509 = vpack.c.b16 %v326, %v323
  %v510 = vpack.c.b16 %v327, %v324
  %v511 = vpack.c.b16 %v331, %v328
  %v512 = vpack.c.b16 %v332, %v329
  %v513 = vpack.c.b16 %v333, %v330
  %v514 = vpack.c.b16 %v337, %v334
  %v515 = vpack.c.b16 %v338, %v335
  %v516 = vpack.c.b16 %v339, %v336
  %v517 = vpack.c.b16 %v343, %v340
  %v518 = vpack.c.b16 %v344, %v341
  %v519 = vpack.c.b16 %v345, %v342
  %v520 = vpack.c.b16 %v349, %v346
  %v521 = vpack.c.b16 %v350, %v347
  %v522 = vpack.c.b16 %v351, %v348
  %v523 = vpack.c.b16 %v355, %v352
  %v524 = vpack.c.b16 %v356, %v353
  %v525 = vpack.c.b16 %v357, %v354
  %v526 = vpack.c.b16 %v361, %v358
  %v527 = vpack.c.b16 %v362, %v359
  %v528 = vpack.c.b16 %v363, %v360
  %v529 = vpack.c.b16 %v367, %v364
  %v530 = vpack.c.b16 %v368, %v365
  %v531 = vpack.c.b16 %v369, %v366
  %v532 = vpack.c.b16 %v373, %v370
  %v533 = vpack.c.b16 %v374, %v371
  %v534 = vpack.c.b16 %v375, %v372
  %v535 = vpack.c.b16 %v379, %v376
  %v536 = vpack.c.b16 %v380, %v377
  %v537 = vpack.c.b16 %v381, %v378
  %v538 = vpack.c.b16 %v385, %v382
  %v539 = vpack.c.b16 %v386, %v383
  %v540 = vpack.c.b16 %v387, %v384
  %v541 = vpack.c.b16 %v391, %v388
  %v542 = vpack.c.b16 %v392, %v389
  %v543 = vpack.c.b16 %v393, %v390
  %v544 = vpack.c.b16 %v397, %v394
  %v545 = vpack.c.b16 %v398, %v395
  %v546 = vpack.c.b16 %v399, %v396
  %v547 = vpack.c.b16 %v403, %v400
  %v548 = vpack.c.b16 %v404, %v401
  %v549 = vpack.c.b16 %v405, %v402
  %v550 = vpack.c.b16 %v409, %v406
  %v551 = vpack.c.b16 %v410, %v407
  %v552 = vpack.c.b16 %v411, %v408
  %v553 = vpack.c.b16 %v415, %v412
  %v554 = vpack.c.b16 %v416, %v413
  %v555 = vpack.c.b16 %v417, %v414
  %v556 = vpack.c.b16 %v421, %v418
  %v557 = vpack.c.b16 %v422, %v419
  %v558 = vpack.c.b16 %v423, %v420
  %v559 = vpack.c.b16 %v427, %v424
  %v560 = vpack.c.b16 %v428, %v425
  %v561 = vpack.c.b16 %v429, %v426
  %v562 = vpack.c.b16 %v433, %v430
  %v563 = vpack.c.b16 %v434, %v431
  %v564 = vpack.c.b16 %v435, %v432
  %v565 = vpack.c.b16 %v439, %v436
  %v566 = vpack.c.b16 %v440, %v437
  %v567 = vpack.c.b16 %v441, %v438
  %v568 = vpack.c.b16 %v445, %v442
  %v569 = vpack.c.b16 %v446, %v443
  %v570 = vpack.c.b16 %v447, %v444
  %v571 = vpack.c.b16 %v451, %v448
  %v572 = vpack.c.b16 %v452, %v449
  %v573 = vpack.c.b16 %v453, %v450
  %v574 = vpack.c.b16 %v457, %v454
  %v575 = vpack.c.b16 %v458, %v455
  %v576 = vpack.c.b16 %v459, %v456
  %v577 = vpack.c.b16 %v463, %v460
  %v578 = vpack.c.b16 %v464, %v461
  %v579 = vpack.c.b16 %v465, %v462
  %v580 = vpack.c.b16 %v469, %v466
  %v581 = vpack.c.b16 %v470, %v467
  %v582 = vpack.c.b16 %v471, %v468
  %v583 = vpack.c.b16 %v475, %v472
  %v584 = vpack.c.b16 %v476, %v473
  %v585 = vpack.c.b16 %v477, %v474
  %v586 = vpack.c.b16 %v481, %v478
  %v587 = vpack.c.b16 %v482, %v479
  %v588 = vpack.c.b16 %v483, %v480
  %v589 = vpack.c.b16 %v487, %v484
  %v590 = vpack.c.b16 %v488, %v485
  %v591 = vpack.c.b16 %v489, %v486
  %v592 = vpack.c.b16 %v493, %v490
  %v593 = vpack.c.b16 %v494, %v491
  %v594 = vpack.c.b16 %v495, %v492
  %v595 = vpack.c.b16 %v499, %v496
  %v596 = vpack.c.b16 %v500, %v497
  %v597 = vpack.c.b16 %v501, %v498
  %v698 = vunpack.c.l.b16 %v146
  %v699 = vunpack.c.l.b16 %v147
  %v700 = vunpack.c.l.b16 %v148
  %v701 = vunpack.c.l.b16 %v149
  %v702 = vunpack.c.l.b16 %v150
  %v703 = vunpack.c.l.b16 %v151
  %v704 = vunpack.c.l.b16 %v152
  %v705 = vunpack.c.l.b16 %v153
  %v706 = vunpack.c.l.b16 %v154
  %v707 = vunpack.c.l.b16 %v155
  %v708 = vunpack.c.l.b16 %v156
  %v709 = vunpack.c.l.b16 %v157
  %v710 = vunpack.c.l.b16 %v158
  %v711 = vunpack.c.l.b16 %v159
  %v712 = vunpack.c.l.b16 %v160
  %v713 = vunpack.c.l.b16 %v161
  %v714 = vunpack.c.l.b16 %v162
  %v715 = vunpack.c.l.b16 %v163
  %v716 = vunpack.c.l.b16 %v164
  %v717 = vunpack.c.l.b16 %v165
  %v718 = vunpack.c.l.b16 %v166
  %v719 = vunpack.c.l.b16 %v167
  %v720 = vunpack.c.l.b16 %v168
  %v721 = vunpack.c.l.b16 %v169
  %v722 = vunpack.c.l.b16 %v170
  %v723 = vunpack.c.l.b16 %v171
  %v724 = vunpack.c.l.b16 %v172
  %v725 = vunpack.c.l.b16 %v173
  %v726 = vunpack.c.l.b16 %v174
  %v727 = vunpack.c.l.b16 %v175
  %v728 = vunpack.c.l.b16 %v176
  %v729 = vunpack.c.l.b16 %v177
  %v730 = vunpack.c.l.b16 %v178
  %v731 = vunpack.c.l.b16 %v179
  %v732 = vunpack.c.l.b16 %v180
  %v733 = vunpack.c.l.b16 %v181
  %v734 = vpack.c.b16 %v699, %v698
  %v735 = vpack.c.b16 %v701, %v700
  %v736 = vpack.c.b16 %v703, %v702
  %v737 = vpack.c.b16 %v705, %v704
  %v738 = vpack.c.b16 %v707, %v706
  %v739 = vpack.c.b16 %v709, %v708
  %v740 = vpack.c.b16 %v711, %v710
  %v741 = vpack.c.b16 %v713, %v712
  %v742 = vpack.c.b16 %v715, %v714
  %v743 = vpack.c.b16 %v717, %v716
  %v744 = vpack.c.b16 %v719, %v718
  %v745 = vpack.c.b16 %v721, %v720
  %v746 = vpack.c.b16 %v723, %v722
  %v747 = vpack.c.b16 %v725, %v724
  %v748 = vpack.c.b16 %v727, %v726
  %v749 = vpack.c.b16 %v729, %v728
  %v750 = vpack.c.b16 %v731, %v730
  %v751 = vpack.c.b16 %v733, %v732
  %vm770 = vcmask 261120
  %v772 = vsel %vm770, %v504, 0
  %v775 = vsel %vm770, %v507, 0
  %v778 = vsel %vm770, %v510, 0
  %v781 = vsel %vm770, %v513, 0
  %v784 = vsel %vm770, %v516, 0
  %v787 = vsel %vm770, %v519, 0
  %v790 = vsel %vm770, %v522, 0
  %v793 = vsel %vm770, %v525, 0
  %v796 = vsel %vm770, %v528, 0
  %v799 = vsel %vm770, %v531, 0
  %v802 = vsel %vm770, %v534, 0
  %v805 = vsel %vm770, %v537, 0
  %v808 = vsel %vm770, %v540, 0
  %v811 = vsel %vm770, %v543, 0
  %v814 = vsel %vm770, %v546, 0
  %v817 = vsel %vm770, %v549, 0
  %v820 = vsel %vm770, %v552, 0
  %v823 = vsel %vm770, %v555, 0
  %v826 = vsel %vm770, %v558, 0
  %v829 = vsel %vm770, %v561, 0
  %v832 = vsel %vm770, %v564, 0
  %v835 = vsel %vm770, %v567, 0
  %v838 = vsel %vm770, %v570, 0
  %v841 = vsel %vm770, %v573, 0
  %v844 = vsel %vm770, %v576, 0
  %v847 = vsel %vm770, %v579, 0
  %v850 = vsel %vm770, %v582, 0
  %v853 = vsel %vm770, %v585, 0
  %v856 = vsel %vm770, %v588, 0
  %v859 = vsel %vm770, %v591, 0
  %v862 = vsel %vm770, %v594, 0
  %v865 = vsel %vm770, %v597, 0
  %867 = vmatpush.bf16.msra.mxu0 %v741
  %868 = vmatpush.bf16.msra.mxu0 %v740
  %869 = vmatpush.bf16.msra.mxu0 %v739
  %870 = vmatpush.bf16.msra.mxu0 %v738
  %871 = vmatpush.bf16.msra.mxu0 %v737
  %872 = vmatpush.bf16.msra.mxu0 %v736
  %873 = vmatpush.bf16.msra.mxu0 %v735
  %874 = vmatpush.bf16.msra.mxu0 %v734
  %875 = vmatmul.bf16.gmra.mxu0 %v502
  %v876 = vpop.f32.mrf.mxu0
  %v877 = vadd.f32 0.0, %v876
  %v878 = vpop.f32.mrf.mxu0
  %v879 = vadd.f32 0.0, %v878
  %880 = vmatmul.bf16.gmra.mxu0 %v505
  %v881 = vpop.f32.mrf.mxu0
  %v882 = vadd.f32 0.0, %v881
  %v883 = vpop.f32.mrf.mxu0
  %v884 = vadd.f32 0.0, %v883
  %885 = vmatmul.bf16.gmra.mxu0 %v508
  %v886 = vpop.f32.mrf.mxu0
  %v887 = vadd.f32 0.0, %v886
  %v888 = vpop.f32.mrf.mxu0
  %v889 = vadd.f32 0.0, %v888
  %890 = vmatmul.bf16.gmra.mxu0 %v511
  %v891 = vpop.f32.mrf.mxu0
  %v892 = vadd.f32 0.0, %v891
  %v893 = vpop.f32.mrf.mxu0
  %v894 = vadd.f32 0.0, %v893
  %895 = vmatmul.bf16.gmra.mxu0 %v514
  %v896 = vpop.f32.mrf.mxu0
  %v897 = vadd.f32 0.0, %v896
  %v898 = vpop.f32.mrf.mxu0
  %v899 = vadd.f32 0.0, %v898
  %900 = vmatmul.bf16.gmra.mxu0 %v517
  %v901 = vpop.f32.mrf.mxu0
  %v902 = vadd.f32 0.0, %v901
  %v903 = vpop.f32.mrf.mxu0
  %v904 = vadd.f32 0.0, %v903
  %905 = vmatmul.bf16.gmra.mxu0 %v520
  %v906 = vpop.f32.mrf.mxu0
  %v907 = vadd.f32 0.0, %v906
  %v908 = vpop.f32.mrf.mxu0
  %v909 = vadd.f32 0.0, %v908
  %910 = vmatmul.bf16.gmra.mxu0 %v523
  %v911 = vpop.f32.mrf.mxu0
  %v912 = vadd.f32 0.0, %v911
  %v913 = vpop.f32.mrf.mxu0
  %v914 = vadd.f32 0.0, %v913
  %915 = vmatmul.bf16.gmra.mxu0 %v526
  %v916 = vpop.f32.mrf.mxu0
  %v917 = vadd.f32 0.0, %v916
  %v918 = vpop.f32.mrf.mxu0
  %v919 = vadd.f32 0.0, %v918
  %920 = vmatmul.bf16.gmra.mxu0 %v529
  %v921 = vpop.f32.mrf.mxu0
  %v922 = vadd.f32 0.0, %v921
  %v923 = vpop.f32.mrf.mxu0
  %v924 = vadd.f32 0.0, %v923
  %925 = vmatmul.bf16.gmra.mxu0 %v532
  %v926 = vpop.f32.mrf.mxu0
  %v927 = vadd.f32 0.0, %v926
  %v928 = vpop.f32.mrf.mxu0
  %v929 = vadd.f32 0.0, %v928
  %930 = vmatmul.bf16.gmra.mxu0 %v535
  %v931 = vpop.f32.mrf.mxu0
  %v932 = vadd.f32 0.0, %v931
  %v933 = vpop.f32.mrf.mxu0
  %v934 = vadd.f32 0.0, %v933
  %935 = vmatmul.bf16.gmra.mxu0 %v538
  %v936 = vpop.f32.mrf.mxu0
  %v937 = vadd.f32 0.0, %v936
  %v938 = vpop.f32.mrf.mxu0
  %v939 = vadd.f32 0.0, %v938
  %940 = vmatmul.bf16.gmra.mxu0 %v541
  %v941 = vpop.f32.mrf.mxu0
  %v942 = vadd.f32 0.0, %v941
  %v943 = vpop.f32.mrf.mxu0
  %v944 = vadd.f32 0.0, %v943
  %945 = vmatmul.bf16.gmra.mxu0 %v544
  %v946 = vpop.f32.mrf.mxu0
  %v947 = vadd.f32 0.0, %v946
  %v948 = vpop.f32.mrf.mxu0
  %v949 = vadd.f32 0.0, %v948
  %950 = vmatmul.bf16.gmra.mxu0 %v547
  %v951 = vpop.f32.mrf.mxu0
  %v952 = vadd.f32 0.0, %v951
  %v953 = vpop.f32.mrf.mxu0
  %v954 = vadd.f32 0.0, %v953
  %955 = vmatmul.bf16.gmra.mxu0 %v550
  %v956 = vpop.f32.mrf.mxu0
  %v957 = vadd.f32 0.0, %v956
  %v958 = vpop.f32.mrf.mxu0
  %v959 = vadd.f32 0.0, %v958
  %960 = vmatmul.bf16.gmra.mxu0 %v553
  %v961 = vpop.f32.mrf.mxu0
  %v962 = vadd.f32 0.0, %v961
  %v963 = vpop.f32.mrf.mxu0
  %v964 = vadd.f32 0.0, %v963
  %965 = vmatmul.bf16.gmra.mxu0 %v556
  %v966 = vpop.f32.mrf.mxu0
  %v967 = vadd.f32 0.0, %v966
  %v968 = vpop.f32.mrf.mxu0
  %v969 = vadd.f32 0.0, %v968
  %970 = vmatmul.bf16.gmra.mxu0 %v559
  %v971 = vpop.f32.mrf.mxu0
  %v972 = vadd.f32 0.0, %v971
  %v973 = vpop.f32.mrf.mxu0
  %v974 = vadd.f32 0.0, %v973
  %975 = vmatmul.bf16.gmra.mxu0 %v562
  %v976 = vpop.f32.mrf.mxu0
  %v977 = vadd.f32 0.0, %v976
  %v978 = vpop.f32.mrf.mxu0
  %v979 = vadd.f32 0.0, %v978
  %980 = vmatmul.bf16.gmra.mxu0 %v565
  %v981 = vpop.f32.mrf.mxu0
  %v982 = vadd.f32 0.0, %v981
  %v983 = vpop.f32.mrf.mxu0
  %v984 = vadd.f32 0.0, %v983
  %985 = vmatmul.bf16.gmra.mxu0 %v568
  %v986 = vpop.f32.mrf.mxu0
  %v987 = vadd.f32 0.0, %v986
  %v988 = vpop.f32.mrf.mxu0
  %v989 = vadd.f32 0.0, %v988
  %990 = vmatmul.bf16.gmra.mxu0 %v571
  %v991 = vpop.f32.mrf.mxu0
  %v992 = vadd.f32 0.0, %v991
  %v993 = vpop.f32.mrf.mxu0
  %v994 = vadd.f32 0.0, %v993
  %995 = vmatmul.bf16.gmra.mxu0 %v574
  %v996 = vpop.f32.mrf.mxu0
  %v997 = vadd.f32 0.0, %v996
  %v998 = vpop.f32.mrf.mxu0
  %v999 = vadd.f32 0.0, %v998
  %1000 = vmatmul.bf16.gmra.mxu0 %v577
  %v1001 = vpop.f32.mrf.mxu0
  %v1002 = vadd.f32 0.0, %v1001
  %v1003 = vpop.f32.mrf.mxu0
  %v1004 = vadd.f32 0.0, %v1003
  %1005 = vmatmul.bf16.gmra.mxu0 %v580
  %v1006 = vpop.f32.mrf.mxu0
  %v1007 = vadd.f32 0.0, %v1006
  %v1008 = vpop.f32.mrf.mxu0
  %v1009 = vadd.f32 0.0, %v1008
  %1010 = vmatmul.bf16.gmra.mxu0 %v583
  %v1011 = vpop.f32.mrf.mxu0
  %v1012 = vadd.f32 0.0, %v1011
  %v1013 = vpop.f32.mrf.mxu0
  %v1014 = vadd.f32 0.0, %v1013
  %1015 = vmatmul.bf16.gmra.mxu0 %v586
  %v1016 = vpop.f32.mrf.mxu0
  %v1017 = vadd.f32 0.0, %v1016
  %v1018 = vpop.f32.mrf.mxu0
  %v1019 = vadd.f32 0.0, %v1018
  %1020 = vmatmul.bf16.gmra.mxu0 %v589
  %v1021 = vpop.f32.mrf.mxu0
  %v1022 = vadd.f32 0.0, %v1021
  %v1023 = vpop.f32.mrf.mxu0
  %v1024 = vadd.f32 0.0, %v1023
  %1025 = vmatmul.bf16.gmra.mxu0 %v592
  %v1026 = vpop.f32.mrf.mxu0
  %v1027 = vadd.f32 0.0, %v1026
  %v1028 = vpop.f32.mrf.mxu0
  %v1029 = vadd.f32 0.0, %v1028
  %1030 = vmatmul.bf16.gmra.mxu0 %v595
  %v1031 = vpop.f32.mrf.mxu0
  %v1032 = vadd.f32 0.0, %v1031
  %v1033 = vpop.f32.mrf.mxu0
  %v1034 = vadd.f32 0.0, %v1033
  %1035 = vdwg.mxu0
  %1036 = vmatpush.bf16.msra.mxu0 %v749
  %1037 = vmatpush.bf16.msra.mxu0 %v748
  %1038 = vmatpush.bf16.msra.mxu0 %v747
  %1039 = vmatpush.bf16.msra.mxu0 %v746
  %1040 = vmatpush.bf16.msra.mxu0 %v745
  %1041 = vmatpush.bf16.msra.mxu0 %v744
  %1042 = vmatpush.bf16.msra.mxu0 %v743
  %1043 = vmatpush.bf16.msra.mxu0 %v742
  %1044 = vmatmul.bf16.gmra.mxu0 %v503
  %v1045 = vpop.f32.mrf.mxu0
  %v1046 = vadd.f32 %v877, %v1045
  %v1047 = vpop.f32.mrf.mxu0
  %v1048 = vadd.f32 %v879, %v1047
  %1049 = vmatmul.bf16.gmra.mxu0 %v506
  %v1050 = vpop.f32.mrf.mxu0
  %v1051 = vadd.f32 %v882, %v1050
  %v1052 = vpop.f32.mrf.mxu0
  %v1053 = vadd.f32 %v884, %v1052
  %1054 = vmatmul.bf16.gmra.mxu0 %v509
  %v1055 = vpop.f32.mrf.mxu0
  %v1056 = vadd.f32 %v887, %v1055
  %v1057 = vpop.f32.mrf.mxu0
  %v1058 = vadd.f32 %v889, %v1057
  %1059 = vmatmul.bf16.gmra.mxu0 %v512
  %v1060 = vpop.f32.mrf.mxu0
  %v1061 = vadd.f32 %v892, %v1060
  %v1062 = vpop.f32.mrf.mxu0
  %v1063 = vadd.f32 %v894, %v1062
  %1064 = vmatmul.bf16.gmra.mxu0 %v515
  %v1065 = vpop.f32.mrf.mxu0
  %v1066 = vadd.f32 %v897, %v1065
  %v1067 = vpop.f32.mrf.mxu0
  %v1068 = vadd.f32 %v899, %v1067
  %1069 = vmatmul.bf16.gmra.mxu0 %v518
  %v1070 = vpop.f32.mrf.mxu0
  %v1071 = vadd.f32 %v902, %v1070
  %v1072 = vpop.f32.mrf.mxu0
  %v1073 = vadd.f32 %v904, %v1072
  %1074 = vmatmul.bf16.gmra.mxu0 %v521
  %v1075 = vpop.f32.mrf.mxu0
  %v1076 = vadd.f32 %v907, %v1075
  %v1077 = vpop.f32.mrf.mxu0
  %v1078 = vadd.f32 %v909, %v1077
  %1079 = vmatmul.bf16.gmra.mxu0 %v524
  %v1080 = vpop.f32.mrf.mxu0
  %v1081 = vadd.f32 %v912, %v1080
  %v1082 = vpop.f32.mrf.mxu0
  %v1083 = vadd.f32 %v914, %v1082
  %1084 = vmatmul.bf16.gmra.mxu0 %v527
  %v1085 = vpop.f32.mrf.mxu0
  %v1086 = vadd.f32 %v917, %v1085
  %v1087 = vpop.f32.mrf.mxu0
  %v1088 = vadd.f32 %v919, %v1087
  %1089 = vmatmul.bf16.gmra.mxu0 %v530
  %v1090 = vpop.f32.mrf.mxu0
  %v1091 = vadd.f32 %v922, %v1090
  %v1092 = vpop.f32.mrf.mxu0
  %v1093 = vadd.f32 %v924, %v1092
  %1094 = vmatmul.bf16.gmra.mxu0 %v533
  %v1095 = vpop.f32.mrf.mxu0
  %v1096 = vadd.f32 %v927, %v1095
  %v1097 = vpop.f32.mrf.mxu0
  %v1098 = vadd.f32 %v929, %v1097
  %1099 = vmatmul.bf16.gmra.mxu0 %v536
  %v1100 = vpop.f32.mrf.mxu0
  %v1101 = vadd.f32 %v932, %v1100
  %v1102 = vpop.f32.mrf.mxu0
  %v1103 = vadd.f32 %v934, %v1102
  %1104 = vmatmul.bf16.gmra.mxu0 %v539
  %v1105 = vpop.f32.mrf.mxu0
  %v1106 = vadd.f32 %v937, %v1105
  %v1107 = vpop.f32.mrf.mxu0
  %v1108 = vadd.f32 %v939, %v1107
  %1109 = vmatmul.bf16.gmra.mxu0 %v542
  %v1110 = vpop.f32.mrf.mxu0
  %v1111 = vadd.f32 %v942, %v1110
  %v1112 = vpop.f32.mrf.mxu0
  %v1113 = vadd.f32 %v944, %v1112
  %1114 = vmatmul.bf16.gmra.mxu0 %v545
  %v1115 = vpop.f32.mrf.mxu0
  %v1116 = vadd.f32 %v947, %v1115
  %v1117 = vpop.f32.mrf.mxu0
  %v1118 = vadd.f32 %v949, %v1117
  %1119 = vmatmul.bf16.gmra.mxu0 %v548
  %v1120 = vpop.f32.mrf.mxu0
  %v1121 = vadd.f32 %v952, %v1120
  %v1122 = vpop.f32.mrf.mxu0
  %v1123 = vadd.f32 %v954, %v1122
  %1124 = vmatmul.bf16.gmra.mxu0 %v551
  %v1125 = vpop.f32.mrf.mxu0
  %v1126 = vadd.f32 %v957, %v1125
  %v1127 = vpop.f32.mrf.mxu0
  %v1128 = vadd.f32 %v959, %v1127
  %1129 = vmatmul.bf16.gmra.mxu0 %v554
  %v1130 = vpop.f32.mrf.mxu0
  %v1131 = vadd.f32 %v962, %v1130
  %v1132 = vpop.f32.mrf.mxu0
  %v1133 = vadd.f32 %v964, %v1132
  %1134 = vmatmul.bf16.gmra.mxu0 %v557
  %v1135 = vpop.f32.mrf.mxu0
  %v1136 = vadd.f32 %v967, %v1135
  %v1137 = vpop.f32.mrf.mxu0
  %v1138 = vadd.f32 %v969, %v1137
  %1139 = vmatmul.bf16.gmra.mxu0 %v560
  %v1140 = vpop.f32.mrf.mxu0
  %v1141 = vadd.f32 %v972, %v1140
  %v1142 = vpop.f32.mrf.mxu0
  %v1143 = vadd.f32 %v974, %v1142
  %1144 = vmatmul.bf16.gmra.mxu0 %v563
  %v1145 = vpop.f32.mrf.mxu0
  %v1146 = vadd.f32 %v977, %v1145
  %v1147 = vpop.f32.mrf.mxu0
  %v1148 = vadd.f32 %v979, %v1147
  %1149 = vmatmul.bf16.gmra.mxu0 %v566
  %v1150 = vpop.f32.mrf.mxu0
  %v1151 = vadd.f32 %v982, %v1150
  %v1152 = vpop.f32.mrf.mxu0
  %v1153 = vadd.f32 %v984, %v1152
  %1154 = vmatmul.bf16.gmra.mxu0 %v569
  %v1155 = vpop.f32.mrf.mxu0
  %v1156 = vadd.f32 %v987, %v1155
  %v1157 = vpop.f32.mrf.mxu0
  %v1158 = vadd.f32 %v989, %v1157
  %1159 = vmatmul.bf16.gmra.mxu0 %v572
  %v1160 = vpop.f32.mrf.mxu0
  %v1161 = vadd.f32 %v992, %v1160
  %v1162 = vpop.f32.mrf.mxu0
  %v1163 = vadd.f32 %v994, %v1162
  %1164 = vmatmul.bf16.gmra.mxu0 %v575
  %v1165 = vpop.f32.mrf.mxu0
  %v1166 = vadd.f32 %v997, %v1165
  %v1167 = vpop.f32.mrf.mxu0
  %v1168 = vadd.f32 %v999, %v1167
  %1169 = vmatmul.bf16.gmra.mxu0 %v578
  %v1170 = vpop.f32.mrf.mxu0
  %v1171 = vadd.f32 %v1002, %v1170
  %v1172 = vpop.f32.mrf.mxu0
  %v1173 = vadd.f32 %v1004, %v1172
  %1174 = vmatmul.bf16.gmra.mxu0 %v581
  %v1175 = vpop.f32.mrf.mxu0
  %v1176 = vadd.f32 %v1007, %v1175
  %v1177 = vpop.f32.mrf.mxu0
  %v1178 = vadd.f32 %v1009, %v1177
  %1179 = vmatmul.bf16.gmra.mxu0 %v584
  %v1180 = vpop.f32.mrf.mxu0
  %v1181 = vadd.f32 %v1012, %v1180
  %v1182 = vpop.f32.mrf.mxu0
  %v1183 = vadd.f32 %v1014, %v1182
  %1184 = vmatmul.bf16.gmra.mxu0 %v587
  %v1185 = vpop.f32.mrf.mxu0
  %v1186 = vadd.f32 %v1017, %v1185
  %v1187 = vpop.f32.mrf.mxu0
  %v1188 = vadd.f32 %v1019, %v1187
  %1189 = vmatmul.bf16.gmra.mxu0 %v590
  %v1190 = vpop.f32.mrf.mxu0
  %v1191 = vadd.f32 %v1022, %v1190
  %v1192 = vpop.f32.mrf.mxu0
  %v1193 = vadd.f32 %v1024, %v1192
  %1194 = vmatmul.bf16.gmra.mxu0 %v593
  %v1195 = vpop.f32.mrf.mxu0
  %v1196 = vadd.f32 %v1027, %v1195
  %v1197 = vpop.f32.mrf.mxu0
  %v1198 = vadd.f32 %v1029, %v1197
  %1199 = vmatmul.bf16.gmra.mxu0 %v596
  %v1200 = vpop.f32.mrf.mxu0
  %v1201 = vadd.f32 %v1032, %v1200
  %v1202 = vpop.f32.mrf.mxu0
  %v1203 = vadd.f32 %v1034, %v1202
  %1204 = vdwg.mxu0
  %1205 = vmatpush.bf16.msra.mxu0 0
  %1206 = vmatpush.bf16.msra.mxu0 0
  %1207 = vmatpush.bf16.msra.mxu0 0
  %1208 = vmatpush.bf16.msra.mxu0 0
  %1209 = vmatpush.bf16.msra.mxu0 0
  %1210 = vmatpush.bf16.msra.mxu0 0
  %1211 = vmatpush.bf16.msra.mxu0 %v751
  %1212 = vmatpush.bf16.msra.mxu0 %v750
  %1213 = vmatmul.bf16.gmra.mxu0 %v772
  %v1214 = vpop.f32.mrf.mxu0
  %v1215 = vadd.f32 %v1046, %v1214
  %v1216 = vpop.f32.mrf.mxu0
  %v1217 = vadd.f32 %v1048, %v1216
  %1218 = vmatmul.bf16.gmra.mxu0 %v775
  %v1219 = vpop.f32.mrf.mxu0
  %v1220 = vadd.f32 %v1051, %v1219
  %v1221 = vpop.f32.mrf.mxu0
  %v1222 = vadd.f32 %v1053, %v1221
  %1223 = vmatmul.bf16.gmra.mxu0 %v778
  %v1224 = vpop.f32.mrf.mxu0
  %v1225 = vadd.f32 %v1056, %v1224
  %v1226 = vpop.f32.mrf.mxu0
  %v1227 = vadd.f32 %v1058, %v1226
  %1228 = vmatmul.bf16.gmra.mxu0 %v781
  %v1229 = vpop.f32.mrf.mxu0
  %v1230 = vadd.f32 %v1061, %v1229
  %v1231 = vpop.f32.mrf.mxu0
  %v1232 = vadd.f32 %v1063, %v1231
  %1233 = vmatmul.bf16.gmra.mxu0 %v784
  %v1234 = vpop.f32.mrf.mxu0
  %v1235 = vadd.f32 %v1066, %v1234
  %v1236 = vpop.f32.mrf.mxu0
  %v1237 = vadd.f32 %v1068, %v1236
  %1238 = vmatmul.bf16.gmra.mxu0 %v787
  %v1239 = vpop.f32.mrf.mxu0
  %v1240 = vadd.f32 %v1071, %v1239
  %v1241 = vpop.f32.mrf.mxu0
  %v1242 = vadd.f32 %v1073, %v1241
  %1243 = vmatmul.bf16.gmra.mxu0 %v790
  %v1244 = vpop.f32.mrf.mxu0
  %v1245 = vadd.f32 %v1076, %v1244
  %v1246 = vpop.f32.mrf.mxu0
  %v1247 = vadd.f32 %v1078, %v1246
  %1248 = vmatmul.bf16.gmra.mxu0 %v793
  %v1249 = vpop.f32.mrf.mxu0
  %v1250 = vadd.f32 %v1081, %v1249
  %v1251 = vpop.f32.mrf.mxu0
  %v1252 = vadd.f32 %v1083, %v1251
  %1253 = vmatmul.bf16.gmra.mxu0 %v796
  %v1254 = vpop.f32.mrf.mxu0
  %v1255 = vadd.f32 %v1086, %v1254
  %v1256 = vpop.f32.mrf.mxu0
  %v1257 = vadd.f32 %v1088, %v1256
  %1258 = vmatmul.bf16.gmra.mxu0 %v799
  %v1259 = vpop.f32.mrf.mxu0
  %v1260 = vadd.f32 %v1091, %v1259
  %v1261 = vpop.f32.mrf.mxu0
  %v1262 = vadd.f32 %v1093, %v1261
  %1263 = vmatmul.bf16.gmra.mxu0 %v802
  %v1264 = vpop.f32.mrf.mxu0
  %v1265 = vadd.f32 %v1096, %v1264
  %v1266 = vpop.f32.mrf.mxu0
  %v1267 = vadd.f32 %v1098, %v1266
  %1268 = vmatmul.bf16.gmra.mxu0 %v805
  %v1269 = vpop.f32.mrf.mxu0
  %v1270 = vadd.f32 %v1101, %v1269
  %v1271 = vpop.f32.mrf.mxu0
  %v1272 = vadd.f32 %v1103, %v1271
  %1273 = vmatmul.bf16.gmra.mxu0 %v808
  %v1274 = vpop.f32.mrf.mxu0
  %v1275 = vadd.f32 %v1106, %v1274
  %v1276 = vpop.f32.mrf.mxu0
  %v1277 = vadd.f32 %v1108, %v1276
  %1278 = vmatmul.bf16.gmra.mxu0 %v811
  %v1279 = vpop.f32.mrf.mxu0
  %v1280 = vadd.f32 %v1111, %v1279
  %v1281 = vpop.f32.mrf.mxu0
  %v1282 = vadd.f32 %v1113, %v1281
  %1283 = vmatmul.bf16.gmra.mxu0 %v814
  %v1284 = vpop.f32.mrf.mxu0
  %v1285 = vadd.f32 %v1116, %v1284
  %v1286 = vpop.f32.mrf.mxu0
  %v1287 = vadd.f32 %v1118, %v1286
  %1288 = vmatmul.bf16.gmra.mxu0 %v817
  %v1289 = vpop.f32.mrf.mxu0
  %v1290 = vadd.f32 %v1121, %v1289
  %v1291 = vpop.f32.mrf.mxu0
  %v1292 = vadd.f32 %v1123, %v1291
  %1293 = vmatmul.bf16.gmra.mxu0 %v820
  %v1294 = vpop.f32.mrf.mxu0
  %v1295 = vadd.f32 %v1126, %v1294
  %v1296 = vpop.f32.mrf.mxu0
  %v1297 = vadd.f32 %v1128, %v1296
  %1298 = vmatmul.bf16.gmra.mxu0 %v823
  %v1299 = vpop.f32.mrf.mxu0
  %v1300 = vadd.f32 %v1131, %v1299
  %v1301 = vpop.f32.mrf.mxu0
  %v1302 = vadd.f32 %v1133, %v1301
  %1303 = vmatmul.bf16.gmra.mxu0 %v826
  %v1304 = vpop.f32.mrf.mxu0
  %v1305 = vadd.f32 %v1136, %v1304
  %v1306 = vpop.f32.mrf.mxu0
  %v1307 = vadd.f32 %v1138, %v1306
  %1308 = vmatmul.bf16.gmra.mxu0 %v829
  %v1309 = vpop.f32.mrf.mxu0
  %v1310 = vadd.f32 %v1141, %v1309
  %v1311 = vpop.f32.mrf.mxu0
  %v1312 = vadd.f32 %v1143, %v1311
  %1313 = vmatmul.bf16.gmra.mxu0 %v832
  %v1314 = vpop.f32.mrf.mxu0
  %v1315 = vadd.f32 %v1146, %v1314
  %v1316 = vpop.f32.mrf.mxu0
  %v1317 = vadd.f32 %v1148, %v1316
  %1318 = vmatmul.bf16.gmra.mxu0 %v835
  %v1319 = vpop.f32.mrf.mxu0
  %v1320 = vadd.f32 %v1151, %v1319
  %v1321 = vpop.f32.mrf.mxu0
  %v1322 = vadd.f32 %v1153, %v1321
  %1323 = vmatmul.bf16.gmra.mxu0 %v838
  %v1324 = vpop.f32.mrf.mxu0
  %v1325 = vadd.f32 %v1156, %v1324
  %v1326 = vpop.f32.mrf.mxu0
  %v1327 = vadd.f32 %v1158, %v1326
  %1328 = vmatmul.bf16.gmra.mxu0 %v841
  %v1329 = vpop.f32.mrf.mxu0
  %v1330 = vadd.f32 %v1161, %v1329
  %v1331 = vpop.f32.mrf.mxu0
  %v1332 = vadd.f32 %v1163, %v1331
  %1333 = vmatmul.bf16.gmra.mxu0 %v844
  %v1334 = vpop.f32.mrf.mxu0
  %v1335 = vadd.f32 %v1166, %v1334
  %v1336 = vpop.f32.mrf.mxu0
  %v1337 = vadd.f32 %v1168, %v1336
  %1338 = vmatmul.bf16.gmra.mxu0 %v847
  %v1339 = vpop.f32.mrf.mxu0
  %v1340 = vadd.f32 %v1171, %v1339
  %v1341 = vpop.f32.mrf.mxu0
  %v1342 = vadd.f32 %v1173, %v1341
  %1343 = vmatmul.bf16.gmra.mxu0 %v850
  %v1344 = vpop.f32.mrf.mxu0
  %v1345 = vadd.f32 %v1176, %v1344
  %v1346 = vpop.f32.mrf.mxu0
  %v1347 = vadd.f32 %v1178, %v1346
  %1348 = vmatmul.bf16.gmra.mxu0 %v853
  %v1349 = vpop.f32.mrf.mxu0
  %v1350 = vadd.f32 %v1181, %v1349
  %v1351 = vpop.f32.mrf.mxu0
  %v1352 = vadd.f32 %v1183, %v1351
  %1353 = vmatmul.bf16.gmra.mxu0 %v856
  %v1354 = vpop.f32.mrf.mxu0
  %v1355 = vadd.f32 %v1186, %v1354
  %v1356 = vpop.f32.mrf.mxu0
  %v1357 = vadd.f32 %v1188, %v1356
  %1358 = vmatmul.bf16.gmra.mxu0 %v859
  %v1359 = vpop.f32.mrf.mxu0
  %v1360 = vadd.f32 %v1191, %v1359
  %v1361 = vpop.f32.mrf.mxu0
  %v1362 = vadd.f32 %v1193, %v1361
  %1363 = vmatmul.bf16.gmra.mxu0 %v862
  %v1364 = vpop.f32.mrf.mxu0
  %v1365 = vadd.f32 %v1196, %v1364
  %v1366 = vpop.f32.mrf.mxu0
  %v1367 = vadd.f32 %v1198, %v1366
  %1368 = vmatmul.bf16.gmra.mxu0 %v865
  %v1369 = vpop.f32.mrf.mxu0
  %v1370 = vadd.f32 %v1201, %v1369
  %v1371 = vpop.f32.mrf.mxu0
  %v1372 = vadd.f32 %v1203, %v1371
  %1373 = vdwg.mxu0
  %v1374 = vadd.f32 %v1215, %v1217
  %v1375 = vadd.f32 %v1374, %v1220
  %v1376 = vadd.f32 %v1375, %v1222
  %v1377 = vadd.f32 %v1376, %v1225
  %v1378 = vadd.f32 %v1377, %v1227
  %v1379 = vadd.f32 %v1378, %v1230
  %v1380 = vadd.f32 %v1379, %v1232
  %v1381 = vadd.f32 %v1380, %v1235
  %v1382 = vadd.f32 %v1381, %v1237
  %v1383 = vadd.f32 %v1382, %v1240
  %v1384 = vadd.f32 %v1383, %v1242
  %v1385 = vadd.f32 %v1384, %v1245
  %v1386 = vadd.f32 %v1385, %v1247
  %v1387 = vadd.f32 %v1386, %v1250
  %v1388 = vadd.f32 %v1387, %v1252
  %v1389 = vadd.f32 %v1388, %v1255
  %v1390 = vadd.f32 %v1389, %v1257
  %v1391 = vadd.f32 %v1390, %v1260
  %v1392 = vadd.f32 %v1391, %v1262
  %v1393 = vadd.f32 %v1392, %v1265
  %v1394 = vadd.f32 %v1393, %v1267
  %v1395 = vadd.f32 %v1394, %v1270
  %v1396 = vadd.f32 %v1395, %v1272
  %v1397 = vadd.f32 %v1396, %v1275
  %v1398 = vadd.f32 %v1397, %v1277
  %v1399 = vadd.f32 %v1398, %v1280
  %v1400 = vadd.f32 %v1399, %v1282
  %v1401 = vadd.f32 %v1400, %v1285
  %v1402 = vadd.f32 %v1401, %v1287
  %v1403 = vadd.f32 %v1402, %v1290
  %v1404 = vadd.f32 %v1403, %v1292
  %v1405 = vadd.f32 %v1404, %v1295
  %v1406 = vadd.f32 %v1405, %v1297
  %v1407 = vadd.f32 %v1406, %v1300
  %v1408 = vadd.f32 %v1407, %v1302
  %v1409 = vadd.f32 %v1408, %v1305
  %v1410 = vadd.f32 %v1409, %v1307
  %v1411 = vadd.f32 %v1410, %v1310
  %v1412 = vadd.f32 %v1411, %v1312
  %v1413 = vadd.f32 %v1412, %v1315
  %v1414 = vadd.f32 %v1413, %v1317
  %v1415 = vadd.f32 %v1414, %v1320
  %v1416 = vadd.f32 %v1415, %v1322
  %v1417 = vadd.f32 %v1416, %v1325
  %v1418 = vadd.f32 %v1417, %v1327
  %v1419 = vadd.f32 %v1418, %v1330
  %v1420 = vadd.f32 %v1419, %v1332
  %v1421 = vadd.f32 %v1420, %v1335
  %v1422 = vadd.f32 %v1421, %v1337
  %v1423 = vadd.f32 %v1422, %v1340
  %v1424 = vadd.f32 %v1423, %v1342
  %v1425 = vadd.f32 %v1424, %v1345
  %v1426 = vadd.f32 %v1425, %v1347
  %v1427 = vadd.f32 %v1426, %v1350
  %v1428 = vadd.f32 %v1427, %v1352
  %v1429 = vadd.f32 %v1428, %v1355
  %v1430 = vadd.f32 %v1429, %v1357
  %v1431 = vadd.f32 %v1430, %v1360
  %v1432 = vadd.f32 %v1431, %v1362
  %v1433 = vadd.f32 %v1432, %v1365
  %v1434 = vadd.f32 %v1433, %v1367
  %v1435 = vadd.f32 %v1434, %v1370
  %v1436 = vadd.f32 %v1435, %v1372
  %v1437 = vrot.slane %v1436, 4
  %v1438 = vadd.f32 %v1436, %v1437
  %v1439 = vrot.slane %v1438, 2
  %v1440 = vadd.f32 %v1438, %v1439
  %v1441 = vrot.slane %v1440, 1
  %v1442 = vadd.f32 %v1440, %v1441
  %v1443 = vmul.f32 %v1215, %v1215
  %v1444 = vmul.f32 %v1217, %v1217
  %v1445 = vmul.f32 %v1220, %v1220
  %v1446 = vmul.f32 %v1222, %v1222
  %v1447 = vmul.f32 %v1225, %v1225
  %v1448 = vmul.f32 %v1227, %v1227
  %v1449 = vmul.f32 %v1230, %v1230
  %v1450 = vmul.f32 %v1232, %v1232
  %v1451 = vmul.f32 %v1235, %v1235
  %v1452 = vmul.f32 %v1237, %v1237
  %v1453 = vmul.f32 %v1240, %v1240
  %v1454 = vmul.f32 %v1242, %v1242
  %v1455 = vmul.f32 %v1245, %v1245
  %v1456 = vmul.f32 %v1247, %v1247
  %v1457 = vmul.f32 %v1250, %v1250
  %v1458 = vmul.f32 %v1252, %v1252
  %v1459 = vmul.f32 %v1255, %v1255
  %v1460 = vmul.f32 %v1257, %v1257
  %v1461 = vmul.f32 %v1260, %v1260
  %v1462 = vmul.f32 %v1262, %v1262
  %v1463 = vmul.f32 %v1265, %v1265
  %v1464 = vmul.f32 %v1267, %v1267
  %v1465 = vmul.f32 %v1270, %v1270
  %v1466 = vmul.f32 %v1272, %v1272
  %v1467 = vmul.f32 %v1275, %v1275
  %v1468 = vmul.f32 %v1277, %v1277
  %v1469 = vmul.f32 %v1280, %v1280
  %v1470 = vmul.f32 %v1282, %v1282
  %v1471 = vmul.f32 %v1285, %v1285
  %v1472 = vmul.f32 %v1287, %v1287
  %v1473 = vmul.f32 %v1290, %v1290
  %v1474 = vmul.f32 %v1292, %v1292
  %v1475 = vmul.f32 %v1295, %v1295
  %v1476 = vmul.f32 %v1297, %v1297
  %v1477 = vmul.f32 %v1300, %v1300
  %v1478 = vmul.f32 %v1302, %v1302
  %v1479 = vmul.f32 %v1305, %v1305
  %v1480 = vmul.f32 %v1307, %v1307
  %v1481 = vmul.f32 %v1310, %v1310
  %v1482 = vmul.f32 %v1312, %v1312
  %v1483 = vmul.f32 %v1315, %v1315
  %v1484 = vmul.f32 %v1317, %v1317
  %v1485 = vmul.f32 %v1320, %v1320
  %v1486 = vmul.f32 %v1322, %v1322
  %v1487 = vmul.f32 %v1325, %v1325
  %v1488 = vmul.f32 %v1327, %v1327
  %v1489 = vmul.f32 %v1330, %v1330
  %v1490 = vmul.f32 %v1332, %v1332
  %v1491 = vmul.f32 %v1335, %v1335
  %v1492 = vmul.f32 %v1337, %v1337
  %v1493 = vmul.f32 %v1340, %v1340
  %v1494 = vmul.f32 %v1342, %v1342
  %v1495 = vmul.f32 %v1345, %v1345
  %v1496 = vmul.f32 %v1347, %v1347
  %v1497 = vmul.f32 %v1350, %v1350
  %v1498 = vmul.f32 %v1352, %v1352
  %v1499 = vmul.f32 %v1355, %v1355
  %v1500 = vmul.f32 %v1357, %v1357
  %v1501 = vmul.f32 %v1360, %v1360
  %v1502 = vmul.f32 %v1362, %v1362
  %v1503 = vmul.f32 %v1365, %v1365
  %v1504 = vmul.f32 %v1367, %v1367
  %v1505 = vmul.f32 %v1370, %v1370
  %v1506 = vmul.f32 %v1372, %v1372
  %v1507 = vadd.f32 %v1443, %v1444
  %v1508 = vadd.f32 %v1507, %v1445
  %v1509 = vadd.f32 %v1508, %v1446
  %v1510 = vadd.f32 %v1509, %v1447
  %v1511 = vadd.f32 %v1510, %v1448
  %v1512 = vadd.f32 %v1511, %v1449
  %v1513 = vadd.f32 %v1512, %v1450
  %v1514 = vadd.f32 %v1513, %v1451
  %v1515 = vadd.f32 %v1514, %v1452
  %v1516 = vadd.f32 %v1515, %v1453
  %v1517 = vadd.f32 %v1516, %v1454
  %v1518 = vadd.f32 %v1517, %v1455
  %v1519 = vadd.f32 %v1518, %v1456
  %v1520 = vadd.f32 %v1519, %v1457
  %v1521 = vadd.f32 %v1520, %v1458
  %v1522 = vadd.f32 %v1521, %v1459
  %v1523 = vadd.f32 %v1522, %v1460
  %v1524 = vadd.f32 %v1523, %v1461
  %v1525 = vadd.f32 %v1524, %v1462
  %v1526 = vadd.f32 %v1525, %v1463
  %v1527 = vadd.f32 %v1526, %v1464
  %v1528 = vadd.f32 %v1527, %v1465
  %v1529 = vadd.f32 %v1528, %v1466
  %v1530 = vadd.f32 %v1529, %v1467
  %v1531 = vadd.f32 %v1530, %v1468
  %v1532 = vadd.f32 %v1531, %v1469
  %v1533 = vadd.f32 %v1532, %v1470
  %v1534 = vadd.f32 %v1533, %v1471
  %v1535 = vadd.f32 %v1534, %v1472
  %v1536 = vadd.f32 %v1535, %v1473
  %v1537 = vadd.f32 %v1536, %v1474
  %v1538 = vadd.f32 %v1537, %v1475
  %v1539 = vadd.f32 %v1538, %v1476
  %v1540 = vadd.f32 %v1539, %v1477
  %v1541 = vadd.f32 %v1540, %v1478
  %v1542 = vadd.f32 %v1541, %v1479
  %v1543 = vadd.f32 %v1542, %v1480
  %v1544 = vadd.f32 %v1543, %v1481
  %v1545 = vadd.f32 %v1544, %v1482
  %v1546 = vadd.f32 %v1545, %v1483
  %v1547 = vadd.f32 %v1546, %v1484
  %v1548 = vadd.f32 %v1547, %v1485
  %v1549 = vadd.f32 %v1548, %v1486
  %v1550 = vadd.f32 %v1549, %v1487
  %v1551 = vadd.f32 %v1550, %v1488
  %v1552 = vadd.f32 %v1551, %v1489
  %v1553 = vadd.f32 %v1552, %v1490
  %v1554 = vadd.f32 %v1553, %v1491
  %v1555 = vadd.f32 %v1554, %v1492
  %v1556 = vadd.f32 %v1555, %v1493
  %v1557 = vadd.f32 %v1556, %v1494
  %v1558 = vadd.f32 %v1557, %v1495
  %v1559 = vadd.f32 %v1558, %v1496
  %v1560 = vadd.f32 %v1559, %v1497
  %v1561 = vadd.f32 %v1560, %v1498
  %v1562 = vadd.f32 %v1561, %v1499
  %v1563 = vadd.f32 %v1562, %v1500
  %v1564 = vadd.f32 %v1563, %v1501
  %v1565 = vadd.f32 %v1564, %v1502
  %v1566 = vadd.f32 %v1565, %v1503
  %v1567 = vadd.f32 %v1566, %v1504
  %v1568 = vadd.f32 %v1567, %v1505
  %v1569 = vadd.f32 %v1568, %v1506
  %v1570 = vrot.slane %v1569, 4
  %v1571 = vadd.f32 %v1569, %v1570
  %v1572 = vrot.slane %v1571, 2
  %v1573 = vadd.f32 %v1571, %v1572
  %v1574 = vrot.slane %v1573, 1
  %v1575 = vadd.f32 %v1573, %v1574
  %1577 = vrot.lane.b32.xlu0 %v1442, 96
  %v1578 = vpop.permute.xlu0 %1577
  %v1580 = vadd.f32 %v1442, %v1578
  %1582 = vrot.lane.b32.xlu0 %v1575, 96
  %v1583 = vpop.permute.xlu0 %1582
  %v1585 = vadd.f32 %v1575, %v1583
  %1586 = vrot.lane.b32.xlu0 %v1442, 64
  %v1587 = vpop.permute.xlu0 %1586
  %v1589 = vadd.f32 %v1580, %v1587
  %1590 = vrot.lane.b32.xlu0 %v1575, 64
  %v1591 = vpop.permute.xlu0 %1590
  %v1593 = vadd.f32 %v1585, %v1591
  %1594 = vrot.lane.b32.xlu0 %v1442, 32
  %v1595 = vpop.permute.xlu0 %1594
  %v1597 = vadd.f32 %v1589, %v1595
  %1598 = vrot.lane.b32.xlu0 %v1575, 32
  %v1599 = vpop.permute.xlu0 %1598
  %v1601 = vadd.f32 %v1593, %v1599
  %v1602 = vmul.f32 %v1597, 0.00048828125
  %v1603 = vmul.f32 %v1601, 0.00048828125
  %v1604 = vmul.f32 %v1602, %v1602
  %v1605 = vsub.f32 %v1603, %v1604
  %v1606 = vmax.f32 %v1605, 0.0
  %v1607 = vld [vmem:[%s2] sm:$0x1]
  %v1608 = vadd.f32 %v1606, 1e-05
  %v1609 = vrsqrt.pop %v1608
  %v1610 = vmul.f32 %v1609, %v1608
  %v1611 = vmul.f32 %v1610, %v1609
  %v1612 = vmul.f32 0.5, %v1611
  %v1613 = vsub.f32 1.5, %v1612
  %v1614 = vmul.f32 %v1609, %v1613
  %vm1615 = vweird.f32 %v1608
  %vm1616 = vweird.f32 %v1609
  %vm1617 = vmor %vm1615, %vm1616
  %v1618 = vsel %vm1617, %v1609, %v1614
  %v1619 = vmul.f32 %v1607, %v1618
  %v1620 = vld [vmem:[%s3] sm:$0x1]
  %v1621 = vmul.f32 %v1602, %v1619
  %v1622 = vsub.f32 %v1620, %v1621
  %v1624 = vperm.slane %v1619, 0
  %1625 = vrot.lane.b32.xlu0 %v1624, 32
  %v1626 = vpop.permute.xlu0 %1625
  %1628 = vrot.lane.b32.xlu0 %v1624, 64
  %v1629 = vpop.permute.xlu0 %1628
  %1631 = vrot.lane.b32.xlu0 %v1624, 96
  %v1632 = vpop.permute.xlu0 %1631
  %v1634 = vsel %vm770, %v1619, %v1626
  %vm1635 = vcmask 523264
  %v1636 = vsel %vm1635, %v1634, %v1629
  %vm1637 = vcmask 785408
  %v1638 = vsel %vm1637, %v1636, %v1632
  %v1640 = vperm.slane %v1622, 0
  %1641 = vrot.lane.b32.xlu0 %v1640, 32
  %v1642 = vpop.permute.xlu0 %1641
  %1644 = vrot.lane.b32.xlu0 %v1640, 64
  %v1645 = vpop.permute.xlu0 %1644
  %1647 = vrot.lane.b32.xlu0 %v1640, 96
  %v1648 = vpop.permute.xlu0 %1647
  %v1650 = vsel %vm770, %v1622, %v1642
  %v1651 = vsel %vm1635, %v1650, %v1645
  %v1652 = vsel %vm1637, %v1651, %v1648
  %v1653 = vperm.slane %v1638, 0
  %v1654 = vmul.f32 %v1215, %v1653
  %v1655 = vmul.f32 %v1217, %v1653
  %v1656 = vmul.f32 %v1220, %v1653
  %v1657 = vmul.f32 %v1222, %v1653
  %v1658 = vmul.f32 %v1225, %v1653
  %v1659 = vmul.f32 %v1227, %v1653
  %v1660 = vmul.f32 %v1230, %v1653
  %v1661 = vmul.f32 %v1232, %v1653
  %v1662 = vmul.f32 %v1235, %v1653
  %v1663 = vmul.f32 %v1237, %v1653
  %v1664 = vmul.f32 %v1240, %v1653
  %v1665 = vmul.f32 %v1242, %v1653
  %v1666 = vmul.f32 %v1245, %v1653
  %v1667 = vmul.f32 %v1247, %v1653
  %v1668 = vmul.f32 %v1250, %v1653
  %v1669 = vmul.f32 %v1252, %v1653
  %v1670 = vmul.f32 %v1255, %v1653
  %v1671 = vmul.f32 %v1257, %v1653
  %v1672 = vmul.f32 %v1260, %v1653
  %v1673 = vmul.f32 %v1262, %v1653
  %v1674 = vmul.f32 %v1265, %v1653
  %v1675 = vmul.f32 %v1267, %v1653
  %v1676 = vmul.f32 %v1270, %v1653
  %v1677 = vmul.f32 %v1272, %v1653
  %v1678 = vmul.f32 %v1275, %v1653
  %v1679 = vmul.f32 %v1277, %v1653
  %v1680 = vmul.f32 %v1280, %v1653
  %v1681 = vmul.f32 %v1282, %v1653
  %v1682 = vmul.f32 %v1285, %v1653
  %v1683 = vmul.f32 %v1287, %v1653
  %v1684 = vmul.f32 %v1290, %v1653
  %v1685 = vmul.f32 %v1292, %v1653
  %v1686 = vmul.f32 %v1295, %v1653
  %v1687 = vmul.f32 %v1297, %v1653
  %v1688 = vmul.f32 %v1300, %v1653
  %v1689 = vmul.f32 %v1302, %v1653
  %v1690 = vmul.f32 %v1305, %v1653
  %v1691 = vmul.f32 %v1307, %v1653
  %v1692 = vmul.f32 %v1310, %v1653
  %v1693 = vmul.f32 %v1312, %v1653
  %v1694 = vmul.f32 %v1315, %v1653
  %v1695 = vmul.f32 %v1317, %v1653
  %v1696 = vmul.f32 %v1320, %v1653
  %v1697 = vmul.f32 %v1322, %v1653
  %v1698 = vmul.f32 %v1325, %v1653
  %v1699 = vmul.f32 %v1327, %v1653
  %v1700 = vmul.f32 %v1330, %v1653
  %v1701 = vmul.f32 %v1332, %v1653
  %v1702 = vmul.f32 %v1335, %v1653
  %v1703 = vmul.f32 %v1337, %v1653
  %v1704 = vmul.f32 %v1340, %v1653
  %v1705 = vmul.f32 %v1342, %v1653
  %v1706 = vmul.f32 %v1345, %v1653
  %v1707 = vmul.f32 %v1347, %v1653
  %v1708 = vmul.f32 %v1350, %v1653
  %v1709 = vmul.f32 %v1352, %v1653
  %v1710 = vmul.f32 %v1355, %v1653
  %v1711 = vmul.f32 %v1357, %v1653
  %v1712 = vmul.f32 %v1360, %v1653
  %v1713 = vmul.f32 %v1362, %v1653
  %v1714 = vmul.f32 %v1365, %v1653
  %v1715 = vmul.f32 %v1367, %v1653
  %v1716 = vmul.f32 %v1370, %v1653
  %v1717 = vmul.f32 %v1372, %v1653
  %v1718 = vperm.slane %v1652, 0
  %v1719 = vadd.f32 %v1654, %v1718
  %v1720 = vadd.f32 %v1655, %v1718
  %v1721 = vadd.f32 %v1656, %v1718
  %v1722 = vadd.f32 %v1657, %v1718
  %v1723 = vadd.f32 %v1658, %v1718
  %v1724 = vadd.f32 %v1659, %v1718
  %v1725 = vadd.f32 %v1660, %v1718
  %v1726 = vadd.f32 %v1661, %v1718
  %v1727 = vadd.f32 %v1662, %v1718
  %v1728 = vadd.f32 %v1663, %v1718
  %v1729 = vadd.f32 %v1664, %v1718
  %v1730 = vadd.f32 %v1665, %v1718
  %v1731 = vadd.f32 %v1666, %v1718
  %v1732 = vadd.f32 %v1667, %v1718
  %v1733 = vadd.f32 %v1668, %v1718
  %v1734 = vadd.f32 %v1669, %v1718
  %v1735 = vadd.f32 %v1670, %v1718
  %v1736 = vadd.f32 %v1671, %v1718
  %v1737 = vadd.f32 %v1672, %v1718
  %v1738 = vadd.f32 %v1673, %v1718
  %v1739 = vadd.f32 %v1674, %v1718
  %v1740 = vadd.f32 %v1675, %v1718
  %v1741 = vadd.f32 %v1676, %v1718
  %v1742 = vadd.f32 %v1677, %v1718
  %v1743 = vadd.f32 %v1678, %v1718
  %v1744 = vadd.f32 %v1679, %v1718
  %v1745 = vadd.f32 %v1680, %v1718
  %v1746 = vadd.f32 %v1681, %v1718
  %v1747 = vadd.f32 %v1682, %v1718
  %v1748 = vadd.f32 %v1683, %v1718
  %v1749 = vadd.f32 %v1684, %v1718
  %v1750 = vadd.f32 %v1685, %v1718
  %v1751 = vadd.f32 %v1686, %v1718
  %v1752 = vadd.f32 %v1687, %v1718
  %v1753 = vadd.f32 %v1688, %v1718
  %v1754 = vadd.f32 %v1689, %v1718
  %v1755 = vadd.f32 %v1690, %v1718
  %v1756 = vadd.f32 %v1691, %v1718
  %v1757 = vadd.f32 %v1692, %v1718
  %v1758 = vadd.f32 %v1693, %v1718
  %v1759 = vadd.f32 %v1694, %v1718
  %v1760 = vadd.f32 %v1695, %v1718
  %v1761 = vadd.f32 %v1696, %v1718
  %v1762 = vadd.f32 %v1697, %v1718
  %v1763 = vadd.f32 %v1698, %v1718
  %v1764 = vadd.f32 %v1699, %v1718
  %v1765 = vadd.f32 %v1700, %v1718
  %v1766 = vadd.f32 %v1701, %v1718
  %v1767 = vadd.f32 %v1702, %v1718
  %v1768 = vadd.f32 %v1703, %v1718
  %v1769 = vadd.f32 %v1704, %v1718
  %v1770 = vadd.f32 %v1705, %v1718
  %v1771 = vadd.f32 %v1706, %v1718
  %v1772 = vadd.f32 %v1707, %v1718
  %v1773 = vadd.f32 %v1708, %v1718
  %v1774 = vadd.f32 %v1709, %v1718
  %v1775 = vadd.f32 %v1710, %v1718
  %v1776 = vadd.f32 %v1711, %v1718
  %v1777 = vadd.f32 %v1712, %v1718
  %v1778 = vadd.f32 %v1713, %v1718
  %v1779 = vadd.f32 %v1714, %v1718
  %v1780 = vadd.f32 %v1715, %v1718
  %v1781 = vadd.f32 %v1716, %v1718
  %v1782 = vadd.f32 %v1717, %v1718
  %vm1783 = vcmp.ge.f32.partialorder %v1719, 0.0
  %vm1784 = vcmp.ge.f32.partialorder %v1720, 0.0
  %vm1785 = vcmp.ge.f32.partialorder %v1721, 0.0
  %vm1786 = vcmp.ge.f32.partialorder %v1722, 0.0
  %vm1787 = vcmp.ge.f32.partialorder %v1723, 0.0
  %vm1788 = vcmp.ge.f32.partialorder %v1724, 0.0
  %vm1789 = vcmp.ge.f32.partialorder %v1725, 0.0
  %vm1790 = vcmp.ge.f32.partialorder %v1726, 0.0
  %vm1791 = vcmp.ge.f32.partialorder %v1727, 0.0
  %vm1792 = vcmp.ge.f32.partialorder %v1728, 0.0
  %vm1793 = vcmp.ge.f32.partialorder %v1729, 0.0
  %vm1794 = vcmp.ge.f32.partialorder %v1730, 0.0
  %vm1795 = vcmp.ge.f32.partialorder %v1731, 0.0
  %vm1796 = vcmp.ge.f32.partialorder %v1732, 0.0
  %vm1797 = vcmp.ge.f32.partialorder %v1733, 0.0
  %vm1798 = vcmp.ge.f32.partialorder %v1734, 0.0
  %vm1799 = vcmp.ge.f32.partialorder %v1735, 0.0
  %vm1800 = vcmp.ge.f32.partialorder %v1736, 0.0
  %vm1801 = vcmp.ge.f32.partialorder %v1737, 0.0
  %vm1802 = vcmp.ge.f32.partialorder %v1738, 0.0
  %vm1803 = vcmp.ge.f32.partialorder %v1739, 0.0
  %vm1804 = vcmp.ge.f32.partialorder %v1740, 0.0
  %vm1805 = vcmp.ge.f32.partialorder %v1741, 0.0
  %vm1806 = vcmp.ge.f32.partialorder %v1742, 0.0
  %vm1807 = vcmp.ge.f32.partialorder %v1743, 0.0
  %vm1808 = vcmp.ge.f32.partialorder %v1744, 0.0
  %vm1809 = vcmp.ge.f32.partialorder %v1745, 0.0
  %vm1810 = vcmp.ge.f32.partialorder %v1746, 0.0
  %vm1811 = vcmp.ge.f32.partialorder %v1747, 0.0
  %vm1812 = vcmp.ge.f32.partialorder %v1748, 0.0
  %vm1813 = vcmp.ge.f32.partialorder %v1749, 0.0
  %vm1814 = vcmp.ge.f32.partialorder %v1750, 0.0
  %vm1815 = vcmp.ge.f32.partialorder %v1751, 0.0
  %vm1816 = vcmp.ge.f32.partialorder %v1752, 0.0
  %vm1817 = vcmp.ge.f32.partialorder %v1753, 0.0
  %vm1818 = vcmp.ge.f32.partialorder %v1754, 0.0
  %vm1819 = vcmp.ge.f32.partialorder %v1755, 0.0
  %vm1820 = vcmp.ge.f32.partialorder %v1756, 0.0
  %vm1821 = vcmp.ge.f32.partialorder %v1757, 0.0
  %vm1822 = vcmp.ge.f32.partialorder %v1758, 0.0
  %vm1823 = vcmp.ge.f32.partialorder %v1759, 0.0
  %vm1824 = vcmp.ge.f32.partialorder %v1760, 0.0
  %vm1825 = vcmp.ge.f32.partialorder %v1761, 0.0
  %vm1826 = vcmp.ge.f32.partialorder %v1762, 0.0
  %vm1827 = vcmp.ge.f32.partialorder %v1763, 0.0
  %vm1828 = vcmp.ge.f32.partialorder %v1764, 0.0
  %vm1829 = vcmp.ge.f32.partialorder %v1765, 0.0
  %vm1830 = vcmp.ge.f32.partialorder %v1766, 0.0
  %vm1831 = vcmp.ge.f32.partialorder %v1767, 0.0
  %vm1832 = vcmp.ge.f32.partialorder %v1768, 0.0
  %vm1833 = vcmp.ge.f32.partialorder %v1769, 0.0
  %vm1834 = vcmp.ge.f32.partialorder %v1770, 0.0
  %vm1835 = vcmp.ge.f32.partialorder %v1771, 0.0
  %vm1836 = vcmp.ge.f32.partialorder %v1772, 0.0
  %vm1837 = vcmp.ge.f32.partialorder %v1773, 0.0
  %vm1838 = vcmp.ge.f32.partialorder %v1774, 0.0
  %vm1839 = vcmp.ge.f32.partialorder %v1775, 0.0
  %vm1840 = vcmp.ge.f32.partialorder %v1776, 0.0
  %vm1841 = vcmp.ge.f32.partialorder %v1777, 0.0
  %vm1842 = vcmp.ge.f32.partialorder %v1778, 0.0
  %vm1843 = vcmp.ge.f32.partialorder %v1779, 0.0
  %vm1844 = vcmp.ge.f32.partialorder %v1780, 0.0
  %vm1845 = vcmp.ge.f32.partialorder %v1781, 0.0
  %vm1846 = vcmp.ge.f32.partialorder %v1782, 0.0
  %v1847 = vmul.f32 %v1719, 0.2
  %v1848 = vmul.f32 %v1720, 0.2
  %v1849 = vmul.f32 %v1721, 0.2
  %v1850 = vmul.f32 %v1722, 0.2
  %v1851 = vmul.f32 %v1723, 0.2
  %v1852 = vmul.f32 %v1724, 0.2
  %v1853 = vmul.f32 %v1725, 0.2
  %v1854 = vmul.f32 %v1726, 0.2
  %v1855 = vmul.f32 %v1727, 0.2
  %v1856 = vmul.f32 %v1728, 0.2
  %v1857 = vmul.f32 %v1729, 0.2
  %v1858 = vmul.f32 %v1730, 0.2
  %v1859 = vmul.f32 %v1731, 0.2
  %v1860 = vmul.f32 %v1732, 0.2
  %v1861 = vmul.f32 %v1733, 0.2
  %v1862 = vmul.f32 %v1734, 0.2
  %v1863 = vmul.f32 %v1735, 0.2
  %v1864 = vmul.f32 %v1736, 0.2
  %v1865 = vmul.f32 %v1737, 0.2
  %v1866 = vmul.f32 %v1738, 0.2
  %v1867 = vmul.f32 %v1739, 0.2
  %v1868 = vmul.f32 %v1740, 0.2
  %v1869 = vmul.f32 %v1741, 0.2
  %v1870 = vmul.f32 %v1742, 0.2
  %v1871 = vmul.f32 %v1743, 0.2
  %v1872 = vmul.f32 %v1744, 0.2
  %v1873 = vmul.f32 %v1745, 0.2
  %v1874 = vmul.f32 %v1746, 0.2
  %v1875 = vmul.f32 %v1747, 0.2
  %v1876 = vmul.f32 %v1748, 0.2
  %v1877 = vmul.f32 %v1749, 0.2
  %v1878 = vmul.f32 %v1750, 0.2
  %v1879 = vmul.f32 %v1751, 0.2
  %v1880 = vmul.f32 %v1752, 0.2
  %v1881 = vmul.f32 %v1753, 0.2
  %v1882 = vmul.f32 %v1754, 0.2
  %v1883 = vmul.f32 %v1755, 0.2
  %v1884 = vmul.f32 %v1756, 0.2
  %v1885 = vmul.f32 %v1757, 0.2
  %v1886 = vmul.f32 %v1758, 0.2
  %v1887 = vmul.f32 %v1759, 0.2
  %v1888 = vmul.f32 %v1760, 0.2
  %v1889 = vmul.f32 %v1761, 0.2
  %v1890 = vmul.f32 %v1762, 0.2
  %v1891 = vmul.f32 %v1763, 0.2
  %v1892 = vmul.f32 %v1764, 0.2
  %v1893 = vmul.f32 %v1765, 0.2
  %v1894 = vmul.f32 %v1766, 0.2
  %v1895 = vmul.f32 %v1767, 0.2
  %v1896 = vmul.f32 %v1768, 0.2
  %v1897 = vmul.f32 %v1769, 0.2
  %v1898 = vmul.f32 %v1770, 0.2
  %v1899 = vmul.f32 %v1771, 0.2
  %v1900 = vmul.f32 %v1772, 0.2
  %v1901 = vmul.f32 %v1773, 0.2
  %v1902 = vmul.f32 %v1774, 0.2
  %v1903 = vmul.f32 %v1775, 0.2
  %v1904 = vmul.f32 %v1776, 0.2
  %v1905 = vmul.f32 %v1777, 0.2
  %v1906 = vmul.f32 %v1778, 0.2
  %v1907 = vmul.f32 %v1779, 0.2
  %v1908 = vmul.f32 %v1780, 0.2
  %v1909 = vmul.f32 %v1781, 0.2
  %v1910 = vmul.f32 %v1782, 0.2
  %v1911 = vsel %vm1783, %v1719, %v1847
  %v1912 = vsel %vm1784, %v1720, %v1848
  %v1913 = vsel %vm1785, %v1721, %v1849
  %v1914 = vsel %vm1786, %v1722, %v1850
  %v1915 = vsel %vm1787, %v1723, %v1851
  %v1916 = vsel %vm1788, %v1724, %v1852
  %v1917 = vsel %vm1789, %v1725, %v1853
  %v1918 = vsel %vm1790, %v1726, %v1854
  %v1919 = vsel %vm1791, %v1727, %v1855
  %v1920 = vsel %vm1792, %v1728, %v1856
  %v1921 = vsel %vm1793, %v1729, %v1857
  %v1922 = vsel %vm1794, %v1730, %v1858
  %v1923 = vsel %vm1795, %v1731, %v1859
  %v1924 = vsel %vm1796, %v1732, %v1860
  %v1925 = vsel %vm1797, %v1733, %v1861
  %v1926 = vsel %vm1798, %v1734, %v1862
  %v1927 = vsel %vm1799, %v1735, %v1863
  %v1928 = vsel %vm1800, %v1736, %v1864
  %v1929 = vsel %vm1801, %v1737, %v1865
  %v1930 = vsel %vm1802, %v1738, %v1866
  %v1931 = vsel %vm1803, %v1739, %v1867
  %v1932 = vsel %vm1804, %v1740, %v1868
  %v1933 = vsel %vm1805, %v1741, %v1869
  %v1934 = vsel %vm1806, %v1742, %v1870
  %v1935 = vsel %vm1807, %v1743, %v1871
  %v1936 = vsel %vm1808, %v1744, %v1872
  %v1937 = vsel %vm1809, %v1745, %v1873
  %v1938 = vsel %vm1810, %v1746, %v1874
  %v1939 = vsel %vm1811, %v1747, %v1875
  %v1940 = vsel %vm1812, %v1748, %v1876
  %v1941 = vsel %vm1813, %v1749, %v1877
  %v1942 = vsel %vm1814, %v1750, %v1878
  %v1943 = vsel %vm1815, %v1751, %v1879
  %v1944 = vsel %vm1816, %v1752, %v1880
  %v1945 = vsel %vm1817, %v1753, %v1881
  %v1946 = vsel %vm1818, %v1754, %v1882
  %v1947 = vsel %vm1819, %v1755, %v1883
  %v1948 = vsel %vm1820, %v1756, %v1884
  %v1949 = vsel %vm1821, %v1757, %v1885
  %v1950 = vsel %vm1822, %v1758, %v1886
  %v1951 = vsel %vm1823, %v1759, %v1887
  %v1952 = vsel %vm1824, %v1760, %v1888
  %v1953 = vsel %vm1825, %v1761, %v1889
  %v1954 = vsel %vm1826, %v1762, %v1890
  %v1955 = vsel %vm1827, %v1763, %v1891
  %v1956 = vsel %vm1828, %v1764, %v1892
  %v1957 = vsel %vm1829, %v1765, %v1893
  %v1958 = vsel %vm1830, %v1766, %v1894
  %v1959 = vsel %vm1831, %v1767, %v1895
  %v1960 = vsel %vm1832, %v1768, %v1896
  %v1961 = vsel %vm1833, %v1769, %v1897
  %v1962 = vsel %vm1834, %v1770, %v1898
  %v1963 = vsel %vm1835, %v1771, %v1899
  %v1964 = vsel %vm1836, %v1772, %v1900
  %v1965 = vsel %vm1837, %v1773, %v1901
  %v1966 = vsel %vm1838, %v1774, %v1902
  %v1967 = vsel %vm1839, %v1775, %v1903
  %v1968 = vsel %vm1840, %v1776, %v1904
  %v1969 = vsel %vm1841, %v1777, %v1905
  %v1970 = vsel %vm1842, %v1778, %v1906
  %v1971 = vsel %vm1843, %v1779, %v1907
  %v1972 = vsel %vm1844, %v1780, %v1908
  %v1973 = vsel %vm1845, %v1781, %v1909
  %v1974 = vsel %vm1846, %v1782, %v1910
  %v1975 = vpack.c.bf16 %v1911, %v1911
  %v1976 = vpack.c.bf16 %v1912, %v1912
  %v1977 = vpack.c.bf16 %v1913, %v1913
  %v1978 = vpack.c.bf16 %v1914, %v1914
  %v1979 = vpack.c.bf16 %v1915, %v1915
  %v1980 = vpack.c.bf16 %v1916, %v1916
  %v1981 = vpack.c.bf16 %v1917, %v1917
  %v1982 = vpack.c.bf16 %v1918, %v1918
  %v1983 = vpack.c.bf16 %v1919, %v1919
  %v1984 = vpack.c.bf16 %v1920, %v1920
  %v1985 = vpack.c.bf16 %v1921, %v1921
  %v1986 = vpack.c.bf16 %v1922, %v1922
  %v1987 = vpack.c.bf16 %v1923, %v1923
  %v1988 = vpack.c.bf16 %v1924, %v1924
  %v1989 = vpack.c.bf16 %v1925, %v1925
  %v1990 = vpack.c.bf16 %v1926, %v1926
  %v1991 = vpack.c.bf16 %v1927, %v1927
  %v1992 = vpack.c.bf16 %v1928, %v1928
  %v1993 = vpack.c.bf16 %v1929, %v1929
  %v1994 = vpack.c.bf16 %v1930, %v1930
  %v1995 = vpack.c.bf16 %v1931, %v1931
  %v1996 = vpack.c.bf16 %v1932, %v1932
  %v1997 = vpack.c.bf16 %v1933, %v1933
  %v1998 = vpack.c.bf16 %v1934, %v1934
  %v1999 = vpack.c.bf16 %v1935, %v1935
  %v2000 = vpack.c.bf16 %v1936, %v1936
  %v2001 = vpack.c.bf16 %v1937, %v1937
  %v2002 = vpack.c.bf16 %v1938, %v1938
  %v2003 = vpack.c.bf16 %v1939, %v1939
  %v2004 = vpack.c.bf16 %v1940, %v1940
  %v2005 = vpack.c.bf16 %v1941, %v1941
  %v2006 = vpack.c.bf16 %v1942, %v1942
  %v2007 = vpack.c.bf16 %v1943, %v1943
  %v2008 = vpack.c.bf16 %v1944, %v1944
  %v2009 = vpack.c.bf16 %v1945, %v1945
  %v2010 = vpack.c.bf16 %v1946, %v1946
  %v2011 = vpack.c.bf16 %v1947, %v1947
  %v2012 = vpack.c.bf16 %v1948, %v1948
  %v2013 = vpack.c.bf16 %v1949, %v1949
  %v2014 = vpack.c.bf16 %v1950, %v1950
  %v2015 = vpack.c.bf16 %v1951, %v1951
  %v2016 = vpack.c.bf16 %v1952, %v1952
  %v2017 = vpack.c.bf16 %v1953, %v1953
  %v2018 = vpack.c.bf16 %v1954, %v1954
  %v2019 = vpack.c.bf16 %v1955, %v1955
  %v2020 = vpack.c.bf16 %v1956, %v1956
  %v2021 = vpack.c.bf16 %v1957, %v1957
  %v2022 = vpack.c.bf16 %v1958, %v1958
  %v2023 = vpack.c.bf16 %v1959, %v1959
  %v2024 = vpack.c.bf16 %v1960, %v1960
  %v2025 = vpack.c.bf16 %v1961, %v1961
  %v2026 = vpack.c.bf16 %v1962, %v1962
  %v2027 = vpack.c.bf16 %v1963, %v1963
  %v2028 = vpack.c.bf16 %v1964, %v1964
  %v2029 = vpack.c.bf16 %v1965, %v1965
  %v2030 = vpack.c.bf16 %v1966, %v1966
  %v2031 = vpack.c.bf16 %v1967, %v1967
  %v2032 = vpack.c.bf16 %v1968, %v1968
  %v2033 = vpack.c.bf16 %v1969, %v1969
  %v2034 = vpack.c.bf16 %v1970, %v1970
  %v2035 = vpack.c.bf16 %v1971, %v1971
  %v2036 = vpack.c.bf16 %v1972, %v1972
  %v2037 = vpack.c.bf16 %v1973, %v1973
  %v2038 = vpack.c.bf16 %v1974, %v1974
  %2039 = vst [vmem:[%s4] sm:$0xf] %v1975
  %2040 = vst [vmem:[%s4 + $0x4] sm:$0xf] %v1976
  %2041 = vst [vmem:[%s4 + $0x8] sm:$0xf] %v1977
  %2042 = vst [vmem:[%s4 + $0xc] sm:$0xf] %v1978
  %2043 = vst [vmem:[%s4 + $0x10] sm:$0xf] %v1979
  %2044 = vst [vmem:[%s4 + $0x14] sm:$0xf] %v1980
  %2045 = vst [vmem:[%s4 + $0x18] sm:$0xf] %v1981
  %2046 = vst [vmem:[%s4 + $0x1c] sm:$0xf] %v1982
  %2047 = vst [vmem:[%s4 + $0x20] sm:$0xf] %v1983
  %2048 = vst [vmem:[%s4 + $0x24] sm:$0xf] %v1984
  %2049 = vst [vmem:[%s4 + $0x28] sm:$0xf] %v1985
  %2050 = vst [vmem:[%s4 + $0x2c] sm:$0xf] %v1986
  %2051 = vst [vmem:[%s4 + $0x30] sm:$0xf] %v1987
  %2052 = vst [vmem:[%s4 + $0x34] sm:$0xf] %v1988
  %2053 = vst [vmem:[%s4 + $0x38] sm:$0xf] %v1989
  %2054 = vst [vmem:[%s4 + $0x3c] sm:$0xf] %v1990
  %2055 = vst [vmem:[%s4 + $0x40] sm:$0xf] %v1991
  %2056 = vst [vmem:[%s4 + $0x44] sm:$0xf] %v1992
  %2057 = vst [vmem:[%s4 + $0x48] sm:$0xf] %v1993
  %2058 = vst [vmem:[%s4 + $0x4c] sm:$0xf] %v1994
  %2059 = vst [vmem:[%s4 + $0x50] sm:$0xf] %v1995
  %2060 = vst [vmem:[%s4 + $0x54] sm:$0xf] %v1996
  %2061 = vst [vmem:[%s4 + $0x58] sm:$0xf] %v1997
  %2062 = vst [vmem:[%s4 + $0x5c] sm:$0xf] %v1998
  %2063 = vst [vmem:[%s4 + $0x60] sm:$0xf] %v1999
  %2064 = vst [vmem:[%s4 + $0x64] sm:$0xf] %v2000
  %2065 = vst [vmem:[%s4 + $0x68] sm:$0xf] %v2001
  %2066 = vst [vmem:[%s4 + $0x6c] sm:$0xf] %v2002
  %2067 = vst [vmem:[%s4 + $0x70] sm:$0xf] %v2003
  %2068 = vst [vmem:[%s4 + $0x74] sm:$0xf] %v2004
  %2069 = vst [vmem:[%s4 + $0x78] sm:$0xf] %v2005
  %2070 = vst [vmem:[%s4 + $0x7c] sm:$0xf] %v2006
  %2071 = vst [vmem:[%s4 + $0x80] sm:$0xf] %v2007
  %2072 = vst [vmem:[%s4 + $0x84] sm:$0xf] %v2008
  %2073 = vst [vmem:[%s4 + $0x88] sm:$0xf] %v2009
  %2074 = vst [vmem:[%s4 + $0x8c] sm:$0xf] %v2010
  %2075 = vst [vmem:[%s4 + $0x90] sm:$0xf] %v2011
  %2076 = vst [vmem:[%s4 + $0x94] sm:$0xf] %v2012
  %2077 = vst [vmem:[%s4 + $0x98] sm:$0xf] %v2013
  %2078 = vst [vmem:[%s4 + $0x9c] sm:$0xf] %v2014
  %2079 = vst [vmem:[%s4 + $0xa0] sm:$0xf] %v2015
  %2080 = vst [vmem:[%s4 + $0xa4] sm:$0xf] %v2016
  %2081 = vst [vmem:[%s4 + $0xa8] sm:$0xf] %v2017
  %2082 = vst [vmem:[%s4 + $0xac] sm:$0xf] %v2018
  %2083 = vst [vmem:[%s4 + $0xb0] sm:$0xf] %v2019
  %2084 = vst [vmem:[%s4 + $0xb4] sm:$0xf] %v2020
  %2085 = vst [vmem:[%s4 + $0xb8] sm:$0xf] %v2021
  %2086 = vst [vmem:[%s4 + $0xbc] sm:$0xf] %v2022
  %2087 = vst [vmem:[%s4 + $0xc0] sm:$0xf] %v2023
  %2088 = vst [vmem:[%s4 + $0xc4] sm:$0xf] %v2024
  %2089 = vst [vmem:[%s4 + $0xc8] sm:$0xf] %v2025
  %2090 = vst [vmem:[%s4 + $0xcc] sm:$0xf] %v2026
  %2091 = vst [vmem:[%s4 + $0xd0] sm:$0xf] %v2027
  %2092 = vst [vmem:[%s4 + $0xd4] sm:$0xf] %v2028
  %2093 = vst [vmem:[%s4 + $0xd8] sm:$0xf] %v2029
  %2094 = vst [vmem:[%s4 + $0xdc] sm:$0xf] %v2030
  %2095 = vst [vmem:[%s4 + $0xe0] sm:$0xf] %v2031
  %2096 = vst [vmem:[%s4 + $0xe4] sm:$0xf] %v2032
  %2097 = vst [vmem:[%s4 + $0xe8] sm:$0xf] %v2033
  %2098 = vst [vmem:[%s4 + $0xec] sm:$0xf] %v2034
  %2099 = vst [vmem:[%s4 + $0xf0] sm:$0xf] %v2035
  %2100 = vst [vmem:[%s4 + $0xf4] sm:$0xf] %v2036
  %2101 = vst [vmem:[%s4 + $0xf8] sm:$0xf] %v2037
  %2102 = vst [vmem:[%s4 + $0xfc] sm:$0xf] %v2038
  // Predicated region
  $region18: #{cnet_g1_forward.8} parent=0 // pred_check
    _
  $region19: #{cnet_g1_forward.8} parent=0 // pred_check_branch
    %2104 = sbr.rel (0) target = $region21
  $region20: #{cnet_g1_forward.8} parent=0 // pred_region
    _
  $region21: #{cnet_g1_forward.8} parent=0 // pred_fallthru
    _
  // Predicated region
  $region22: #{cnet_g1_forward.8} parent=0 // pred_check
    _
  $region23: #{cnet_g1_forward.8} parent=0 // pred_check_branch
    %2106 = sbr.rel (0) target = $region25
  $region24: #{cnet_g1_forward.8} parent=0 // pred_region
    _
  $region25: #{cnet_g1_forward.8} parent=0 // pred_fallthru
    _

// kernel: cnet_g1_forward.9
$region0: #{cnet_g1_forward.9}
  #allocation0 [shape = 'u32[]', space=smem, size = 0x4, offset = 0x4, fixed_abs, tag = 'smem constant byte address 0x4 - core index']
  #allocation1 [shape = 'u32[72,128]{1,0:T(1,128)}', space=vmem, size = 0x9000, scoped, tag = 'internal scratch']
  %s0 = inlined_call_operand.vmem [shape: bf16[2048,288], index: 0, kind: input, shape index: {}]
  %s1 = inlined_call_operand.vmem [shape: bf16[288,128], index: 1, kind: input, shape index: {}]
  %s2 = inlined_call_operand.vmem [shape: bf16[2048,128], index: 2, kind: output, shape index: {}]
  %s3 = sld [smem:[#allocation0]]
  $region41: #{cnet_g1_forward.9} parent=0
    _
  %s5 = ssub.s32 1, %s3
  %s6 = scalar_select 0, %s5, %s3
  loop: start=0, step=1, limit=6
  $region2: #{cnet_g1_forward.9} parent=0 // loop_pre_header
    _
  $region3: #{cnet_g1_forward.9} parent=0 // loop_header
    %s8 = sphi 0, %s12
    %p9 = scmp.ge.s32.totalorder %s8, 6
    %s18 = sphi 0, %s20
    %s21 = sphi 0, %s18
    %s22 = sphi 0, %s21
    %s38 = sphi 0, %s22
    %s42 = sphi 0, %s42
    %s44 = sphi 0, %s42
    %s45 = sphi 0, %s44
    %s59 = sphi 0, %s45
    %s65 = sphi 0, %s67
    %s68 = sphi 0, %s65
    %s69 = sphi 0, %s68
    %s85 = sphi 0, %s69
  $region4: #{cnet_g1_forward.9} parent=0 // loop_header_branch
    %11 = sbr.rel (%p9) target = $region8
  $region5: #{cnet_g1_forward.9} parent=0 // loop_body
    %s13 = ssub.s32 %s8, 1
    %s14 = ssub.s32 %s8, 2
    %s15 = sadd.s32 %s8, 1
    %s16 = ssub.s32 %s8, %s15
    %p17 = scmp.eq.s32.totalorder %s16, 0
    %s19 = sadd.s32 %s18, 1
    %s20 = scalar_select %p17, %s18, %s19
    %p23 = pneg %p17
    %p24 = scmp.eq.s32.totalorder %s8, 3
    %p25 = por %p23, %p24
    %p26 = scmp.ne.s32.totalorder %s18, %s21
    %p27 = scmp.eq.s32.totalorder %s8, 0
    %p28 = por %p26, %p27
    %p29 = scmp.ne.s32.totalorder %s18, %s21
    %p30 = scmp.eq.s32.totalorder %s13, 3
    %p31 = por %p29, %p30
    %p32 = scmp.ne.s32.totalorder %s21, %s22
    %p33 = scmp.eq.s32.totalorder %s13, 0
    %p34 = por %p32, %p33
    %p35 = scmp.ne.s32.totalorder %s21, %s22
    %p36 = scmp.eq.s32.totalorder %s14, 3
    %p37 = por %p35, %p36
    %p39 = scmp.ne.s32.totalorder %s22, %s38
    %p40 = scmp.eq.s32.totalorder %s14, 0
    %p41 = por %p39, %p40
    %s43 = sadd.s32 %s42, 1
    %p46 = scmp.eq.s32.totalorder %s8, 3
    %p47 = scmp.ne.s32.totalorder %s42, %s44
    %p48 = scmp.eq.s32.totalorder %s8, 0
    %p49 = por %p47, %p48
    %p50 = scmp.ne.s32.totalorder %s42, %s44
    %p51 = scmp.eq.s32.totalorder %s13, 3
    %p52 = por %p50, %p51
    %p53 = scmp.ne.s32.totalorder %s44, %s45
    %p54 = scmp.eq.s32.totalorder %s13, 0
    %p55 = por %p53, %p54
    %p56 = scmp.ne.s32.totalorder %s44, %s45
    %p57 = scmp.eq.s32.totalorder %s14, 3
    %p58 = por %p56, %p57
    %p60 = scmp.ne.s32.totalorder %s45, %s59
    %p61 = scmp.eq.s32.totalorder %s14, 0
    %p62 = por %p60, %p61
    %s63 = ssub.s32 %s8, %s15
    %p64 = scmp.eq.s32.totalorder %s63, 0
    %s66 = sadd.s32 %s65, 1
    %s67 = scalar_select %p64, %s65, %s66
    %p70 = pneg %p64
    %p71 = scmp.eq.s32.totalorder %s8, 3
    %p72 = por %p70, %p71
    %p73 = scmp.ne.s32.totalorder %s65, %s68
    %p74 = scmp.eq.s32.totalorder %s8, 0
    %p75 = por %p73, %p74
    %p76 = scmp.ne.s32.totalorder %s65, %s68
    %p77 = scmp.eq.s32.totalorder %s13, 3
    %p78 = por %p76, %p77
    %p79 = scmp.ne.s32.totalorder %s68, %s69
    %p80 = scmp.eq.s32.totalorder %s13, 0
    %p81 = por %p79, %p80
    %p82 = scmp.ne.s32.totalorder %s68, %s69
    %p83 = scmp.eq.s32.totalorder %s14, 3
    %p84 = por %p82, %p83
    %p86 = scmp.ne.s32.totalorder %s69, %s85
    %p87 = scmp.eq.s32.totalorder %s14, 0
    %p88 = por %p86, %p87
    %p89 = scmp.le.s32.totalorder 1, %s8
    %p90 = scmp.lt.s32.totalorder %s8, 5
    %p91 = pnand %p89, %p90
    %p92 = pneg %p91
    // Predicated region
    $region9: #{cnet_g1_forward.9} parent=5 // pred_check
      _
    $region10: #{cnet_g1_forward.9} parent=5 // pred_check_branch
      %94 = sbr.rel (%p91) target = $region12
    $region11: #{cnet_g1_forward.9} parent=5 // pred_region
      %s95 = ssub.s32 %s8, 1
      // Predicated region
      $region13: #{cnet_g1_forward.9} parent=11 // pred_check
        %p96 = pneg %p55
      $region14: #{cnet_g1_forward.9} parent=11 // pred_check_branch
        %98 = sbr.rel (%p96) target = $region16
      $region15: #{cnet_g1_forward.9} parent=11 // pred_region
        _
      $region16: #{cnet_g1_forward.9} parent=11 // pred_fallthru
        _
    $region12: #{cnet_g1_forward.9} parent=5 // pred_fallthru
      _
    %p99 = scmp.lt.s32.totalorder %s8, 4
    // Predicated region
    $region17: #{cnet_g1_forward.9} parent=5 // pred_check
      %p100 = pneg %p99
    $region18: #{cnet_g1_forward.9} parent=5 // pred_check_branch
      %102 = sbr.rel (%p100) target = $region20
    $region19: #{cnet_g1_forward.9} parent=5 // pred_region
      // Predicated region
      $region21: #{cnet_g1_forward.9} parent=19 // pred_check
        %p103 = pneg %p28
      $region22: #{cnet_g1_forward.9} parent=19 // pred_check_branch
        %105 = sbr.rel (%p103) target = $region24
      $region23: #{cnet_g1_forward.9} parent=19 // pred_region
        %s106 = smul.u32 64, %s8
        %p107 = scmp.lt.s32.totalorder %s106, 255
        %s108 = scalar_select %p107, %s106, 255
        %s109 = smul.addr %s108, 3
        %s110 = smul.addr %s109, 4
        %s111 = scalar_lea.vmem %s0, %s110
        %s112 = smul.u32 64, %s8
      $region24: #{cnet_g1_forward.9} parent=19 // pred_fallthru
        _
    $region20: #{cnet_g1_forward.9} parent=5 // pred_fallthru
      _
    %p113 = scmp.le.s32.totalorder 1, %s8
    %p114 = scmp.lt.s32.totalorder %s8, 5
    %p115 = pnand %p113, %p114
    %p116 = pneg %p115
    // Predicated region
    $region25: #{cnet_g1_forward.9} parent=5 // pred_check
      _
    $region26: #{cnet_g1_forward.9} parent=5 // pred_check_branch
      %118 = sbr.rel (%p115) target = $region28
    $region27: #{cnet_g1_forward.9} parent=5 // pred_region
      %s119 = ssub.s32 %s8, 1
      %s120 = smul.u32 64, %s13
      %p121 = scmp.lt.s32.totalorder %s120, 255
      %s122 = scalar_select %p121, %s120, 255
      %s123 = smul.addr %s122, 3
      %s124 = smul.addr %s123, 4
      %s125 = scalar_lea.vmem %s0, %s124
      %p126 = pneg %p34
      %p127 = pneg %p31
      %p128 = pneg %p55
      %p129 = pneg %p52
      %p130 = pneg %p81
      %p131 = pneg %p78
      %s132 = smul.u32 64, %s13
      %p133 = scmp.lt.s32.totalorder %s132, 255
      %s134 = scalar_select %p133, %s132, 255
      %s135 = smul.addr %s134, 4
      %s136 = scalar_lea.vmem %s2, %s135
      %s137 = smul.u32 64, %s13
      %p138 = scmp.lt.s32.totalorder %s137, 255
      %s139 = scalar_select %p138, %s137, 255
      %s140 = smul.addr %s139, 3
      %s141 = smul.addr %s140, 4
      %s142 = scalar_lea.vmem %s0, %s141
      %s143 = smul.u32 64, %s13
      %s144 = smul.u32 64, %s13
      %p145 = scmp.lt.s32.totalorder %s144, 255
      %s146 = scalar_select %p145, %s144, 255
      %s147 = smul.addr %s146, 4
      %s148 = scalar_lea.vmem %s2, %s147
      %s149 = smul.u32 64, %s13
      %v151 = vld [vmem:[%s142] sm:$0xff]
      %v152 = vld [vmem:[%s142 + $0x8] sm:$0xf]
      %v153 = vld [vmem:[%s142 + $0xc] sm:$0xff]
      %v154 = vld [vmem:[%s142 + $0x14] sm:$0xf]
      %v155 = vld [vmem:[%s142 + $0x18] sm:$0xff]
      %v156 = vld [vmem:[%s142 + $0x20] sm:$0xf]
      %v157 = vld [vmem:[%s142 + $0x24] sm:$0xff]
      %v158 = vld [vmem:[%s142 + $0x2c] sm:$0xf]
      %v159 = vld [vmem:[%s142 + $0x30] sm:$0xff]
      %v160 = vld [vmem:[%s142 + $0x38] sm:$0xf]
      %v161 = vld [vmem:[%s142 + $0x3c] sm:$0xff]
      %v162 = vld [vmem:[%s142 + $0x44] sm:$0xf]
      %v163 = vld [vmem:[%s142 + $0x48] sm:$0xff]
      %v164 = vld [vmem:[%s142 + $0x50] sm:$0xf]
      %v165 = vld [vmem:[%s142 + $0x54] sm:$0xff]
      %v166 = vld [vmem:[%s142 + $0x5c] sm:$0xf]
      %v167 = vld [vmem:[%s142 + $0x60] sm:$0xff]
      %v168 = vld [vmem:[%s142 + $0x68] sm:$0xf]
      %v169 = vld [vmem:[%s142 + $0x6c] sm:$0xff]
      %v170 = vld [vmem:[%s142 + $0x74] sm:$0xf]
      %v171 = vld [vmem:[%s142 + $0x78] sm:$0xff]
      %v172 = vld [vmem:[%s142 + $0x80] sm:$0xf]
      %v173 = vld [vmem:[%s142 + $0x84] sm:$0xff]
      %v174 = vld [vmem:[%s142 + $0x8c] sm:$0xf]
      %v175 = vld [vmem:[%s142 + $0x90] sm:$0xff]
      %v176 = vld [vmem:[%s142 + $0x98] sm:$0xf]
      %v177 = vld [vmem:[%s142 + $0x9c] sm:$0xff]
      %v178 = vld [vmem:[%s142 + $0xa4] sm:$0xf]
      %v179 = vld [vmem:[%s142 + $0xa8] sm:$0xff]
      %v180 = vld [vmem:[%s142 + $0xb0] sm:$0xf]
      %v181 = vld [vmem:[%s142 + $0xb4] sm:$0xff]
      %v182 = vld [vmem:[%s142 + $0xbc] sm:$0xf]
      %v183 = vld [vmem:[%s142 + $0xc0] sm:$0xff]
      %v184 = vld [vmem:[%s142 + $0xc8] sm:$0xf]
      %v185 = vld [vmem:[%s142 + $0xcc] sm:$0xff]
      %v186 = vld [vmem:[%s142 + $0xd4] sm:$0xf]
      %v187 = vld [vmem:[%s142 + $0xd8] sm:$0xff]
      %v188 = vld [vmem:[%s142 + $0xe0] sm:$0xf]
      %v189 = vld [vmem:[%s142 + $0xe4] sm:$0xff]
      %v190 = vld [vmem:[%s142 + $0xec] sm:$0xf]
      %v191 = vld [vmem:[%s142 + $0xf0] sm:$0xff]
      %v192 = vld [vmem:[%s142 + $0xf8] sm:$0xf]
      %v193 = vld [vmem:[%s142 + $0xfc] sm:$0xff]
      %v194 = vld [vmem:[%s142 + $0x104] sm:$0xf]
      %v195 = vld [vmem:[%s142 + $0x108] sm:$0xff]
      %v196 = vld [vmem:[%s142 + $0x110] sm:$0xf]
      %v197 = vld [vmem:[%s142 + $0x114] sm:$0xff]
      %v198 = vld [vmem:[%s142 + $0x11c] sm:$0xf]
      %v199 = vld [vmem:[%s142 + $0x120] sm:$0xff]
      %v200 = vld [vmem:[%s142 + $0x128] sm:$0xf]
      %v201 = vld [vmem:[%s142 + $0x12c] sm:$0xff]
      %v202 = vld [vmem:[%s142 + $0x134] sm:$0xf]
      %v203 = vld [vmem:[%s142 + $0x138] sm:$0xff]
      %v204 = vld [vmem:[%s142 + $0x140] sm:$0xf]
      %v205 = vld [vmem:[%s142 + $0x144] sm:$0xff]
      %v206 = vld [vmem:[%s142 + $0x14c] sm:$0xf]
      %v207 = vld [vmem:[%s142 + $0x150] sm:$0xff]
      %v208 = vld [vmem:[%s142 + $0x158] sm:$0xf]
      %v209 = vld [vmem:[%s142 + $0x15c] sm:$0xff]
      %v210 = vld [vmem:[%s142 + $0x164] sm:$0xf]
      %v211 = vld [vmem:[%s142 + $0x168] sm:$0xff]
      %v212 = vld [vmem:[%s142 + $0x170] sm:$0xf]
      %v213 = vld [vmem:[%s142 + $0x174] sm:$0xff]
      %v214 = vld [vmem:[%s142 + $0x17c] sm:$0xf]
      %v215 = vld [vmem:[%s142 + $0x180] sm:$0xff]
      %v216 = vld [vmem:[%s142 + $0x188] sm:$0xf]
      %v217 = vld [vmem:[%s142 + $0x18c] sm:$0xff]
      %v218 = vld [vmem:[%s142 + $0x194] sm:$0xf]
      %v219 = vld [vmem:[%s142 + $0x198] sm:$0xff]
      %v220 = vld [vmem:[%s142 + $0x1a0] sm:$0xf]
      %v221 = vld [vmem:[%s142 + $0x1a4] sm:$0xff]
      %v222 = vld [vmem:[%s142 + $0x1ac] sm:$0xf]
      %v223 = vld [vmem:[%s142 + $0x1b0] sm:$0xff]
      %v224 = vld [vmem:[%s142 + $0x1b8] sm:$0xf]
      %v225 = vld [vmem:[%s142 + $0x1bc] sm:$0xff]
      %v226 = vld [vmem:[%s142 + $0x1c4] sm:$0xf]
      %v227 = vld [vmem:[%s142 + $0x1c8] sm:$0xff]
      %v228 = vld [vmem:[%s142 + $0x1d0] sm:$0xf]
      %v229 = vld [vmem:[%s142 + $0x1d4] sm:$0xff]
      %v230 = vld [vmem:[%s142 + $0x1dc] sm:$0xf]
      %v231 = vld [vmem:[%s142 + $0x1e0] sm:$0xff]
      %v232 = vld [vmem:[%s142 + $0x1e8] sm:$0xf]
      %v233 = vld [vmem:[%s142 + $0x1ec] sm:$0xff]
      %v234 = vld [vmem:[%s142 + $0x1f4] sm:$0xf]
      %v235 = vld [vmem:[%s142 + $0x1f8] sm:$0xff]
      %v236 = vld [vmem:[%s142 + $0x200] sm:$0xf]
      %v237 = vld [vmem:[%s142 + $0x204] sm:$0xff]
      %v238 = vld [vmem:[%s142 + $0x20c] sm:$0xf]
      %v239 = vld [vmem:[%s142 + $0x210] sm:$0xff]
      %v240 = vld [vmem:[%s142 + $0x218] sm:$0xf]
      %v241 = vld [vmem:[%s142 + $0x21c] sm:$0xff]
      %v242 = vld [vmem:[%s142 + $0x224] sm:$0xf]
      %v243 = vld [vmem:[%s142 + $0x228] sm:$0xff]
      %v244 = vld [vmem:[%s142 + $0x230] sm:$0xf]
      %v245 = vld [vmem:[%s142 + $0x234] sm:$0xff]
      %v246 = vld [vmem:[%s142 + $0x23c] sm:$0xf]
      %v247 = vld [vmem:[%s142 + $0x240] sm:$0xff]
      %v248 = vld [vmem:[%s142 + $0x248] sm:$0xf]
      %v249 = vld [vmem:[%s142 + $0x24c] sm:$0xff]
      %v250 = vld [vmem:[%s142 + $0x254] sm:$0xf]
      %v251 = vld [vmem:[%s142 + $0x258] sm:$0xff]
      %v252 = vld [vmem:[%s142 + $0x260] sm:$0xf]
      %v253 = vld [vmem:[%s142 + $0x264] sm:$0xff]
      %v254 = vld [vmem:[%s142 + $0x26c] sm:$0xf]
      %v255 = vld [vmem:[%s142 + $0x270] sm:$0xff]
      %v256 = vld [vmem:[%s142 + $0x278] sm:$0xf]
      %v257 = vld [vmem:[%s142 + $0x27c] sm:$0xff]
      %v258 = vld [vmem:[%s142 + $0x284] sm:$0xf]
      %v259 = vld [vmem:[%s142 + $0x288] sm:$0xff]
      %v260 = vld [vmem:[%s142 + $0x290] sm:$0xf]
      %v261 = vld [vmem:[%s142 + $0x294] sm:$0xff]
      %v262 = vld [vmem:[%s142 + $0x29c] sm:$0xf]
      %v263 = vld [vmem:[%s142 + $0x2a0] sm:$0xff]
      %v264 = vld [vmem:[%s142 + $0x2a8] sm:$0xf]
      %v265 = vld [vmem:[%s142 + $0x2ac] sm:$0xff]
      %v266 = vld [vmem:[%s142 + $0x2b4] sm:$0xf]
      %v267 = vld [vmem:[%s142 + $0x2b8] sm:$0xff]
      %v268 = vld [vmem:[%s142 + $0x2c0] sm:$0xf]
      %v269 = vld [vmem:[%s142 + $0x2c4] sm:$0xff]
      %v270 = vld [vmem:[%s142 + $0x2cc] sm:$0xf]
      %v271 = vld [vmem:[%s142 + $0x2d0] sm:$0xff]
      %v272 = vld [vmem:[%s142 + $0x2d8] sm:$0xf]
      %v273 = vld [vmem:[%s142 + $0x2dc] sm:$0xff]
      %v274 = vld [vmem:[%s142 + $0x2e4] sm:$0xf]
      %v275 = vld [vmem:[%s142 + $0x2e8] sm:$0xff]
      %v276 = vld [vmem:[%s142 + $0x2f0] sm:$0xf]
      %v277 = vld [vmem:[%s142 + $0x2f4] sm:$0xff]
      %v278 = vld [vmem:[%s142 + $0x2fc] sm:$0xf]
      %v279 = vld [vmem:[%s1] sm:$0xf]
      %v280 = vld [vmem:[%s1 + $0x4] sm:$0xf]
      %v281 = vld [vmem:[%s1 + $0x8] sm:$0xf]
      %v282 = vld [vmem:[%s1 + $0xc] sm:$0xf]
      %v283 = vld [vmem:[%s1 + $0x10] sm:$0xf]
      %v284 = vld [vmem:[%s1 + $0x14] sm:$0xf]
      %v285 = vld [vmem:[%s1 + $0x18] sm:$0xf]
      %v286 = vld [vmem:[%s1 + $0x1c] sm:$0xf]
      %v287 = vld [vmem:[%s1 + $0x20] sm:$0xf]
      %v288 = vld [vmem:[%s1 + $0x24] sm:$0xf]
      %v289 = vld [vmem:[%s1 + $0x28] sm:$0xf]
      %v290 = vld [vmem:[%s1 + $0x2c] sm:$0xf]
      %v291 = vld [vmem:[%s1 + $0x30] sm:$0xf]
      %v292 = vld [vmem:[%s1 + $0x34] sm:$0xf]
      %v293 = vld [vmem:[%s1 + $0x38] sm:$0xf]
      %v294 = vld [vmem:[%s1 + $0x3c] sm:$0xf]
      %v295 = vld [vmem:[%s1 + $0x40] sm:$0xf]
      %v296 = vld [vmem:[%s1 + $0x44] sm:$0xf]
      %v297 = vld [vmem:[%s1 + $0x48] sm:$0xf]
      %v298 = vld [vmem:[%s1 + $0x4c] sm:$0xf]
      %v299 = vld [vmem:[%s1 + $0x50] sm:$0xf]
      %v300 = vld [vmem:[%s1 + $0x54] sm:$0xf]
      %v301 = vld [vmem:[%s1 + $0x58] sm:$0xf]
      %v302 = vld [vmem:[%s1 + $0x5c] sm:$0xf]
      %v303 = vld [vmem:[%s1 + $0x60] sm:$0xf]
      %v304 = vld [vmem:[%s1 + $0x64] sm:$0xf]
      %v305 = vld [vmem:[%s1 + $0x68] sm:$0xf]
      %v306 = vld [vmem:[%s1 + $0x6c] sm:$0xf]
      %v307 = vld [vmem:[%s1 + $0x70] sm:$0xf]
      %v308 = vld [vmem:[%s1 + $0x74] sm:$0xf]
      %v309 = vld [vmem:[%s1 + $0x78] sm:$0xf]
      %v310 = vld [vmem:[%s1 + $0x7c] sm:$0xf]
      %v311 = vld [vmem:[%s1 + $0x80] sm:$0xf]
      %v312 = vld [vmem:[%s1 + $0x84] sm:$0xf]
      %v313 = vld [vmem:[%s1 + $0x88] sm:$0xf]
      %v314 = vld [vmem:[%s1 + $0x8c] sm:$0xf]
      %v443 = vunpack.c.l.b16 %v151
      %v444 = vunpack.c.h.b16 %v151
      %v445 = vunpack.c.l.b16 %v152
      %v446 = vunpack.c.l.b16 %v153
      %v447 = vunpack.c.h.b16 %v153
      %v448 = vunpack.c.l.b16 %v154
      %v449 = vunpack.c.l.b16 %v155
      %v450 = vunpack.c.h.b16 %v155
      %v451 = vunpack.c.l.b16 %v156
      %v452 = vunpack.c.l.b16 %v157
      %v453 = vunpack.c.h.b16 %v157
      %v454 = vunpack.c.l.b16 %v158
      %v455 = vunpack.c.l.b16 %v159
      %v456 = vunpack.c.h.b16 %v159
      %v457 = vunpack.c.l.b16 %v160
      %v458 = vunpack.c.l.b16 %v161
      %v459 = vunpack.c.h.b16 %v161
      %v460 = vunpack.c.l.b16 %v162
      %v461 = vunpack.c.l.b16 %v163
      %v462 = vunpack.c.h.b16 %v163
      %v463 = vunpack.c.l.b16 %v164
      %v464 = vunpack.c.l.b16 %v165
      %v465 = vunpack.c.h.b16 %v165
      %v466 = vunpack.c.l.b16 %v166
      %v467 = vunpack.c.l.b16 %v167
      %v468 = vunpack.c.h.b16 %v167
      %v469 = vunpack.c.l.b16 %v168
      %v470 = vunpack.c.l.b16 %v169
      %v471 = vunpack.c.h.b16 %v169
      %v472 = vunpack.c.l.b16 %v170
      %v473 = vunpack.c.l.b16 %v171
      %v474 = vunpack.c.h.b16 %v171
      %v475 = vunpack.c.l.b16 %v172
      %v476 = vunpack.c.l.b16 %v173
      %v477 = vunpack.c.h.b16 %v173
      %v478 = vunpack.c.l.b16 %v174
      %v479 = vunpack.c.l.b16 %v175
      %v480 = vunpack.c.h.b16 %v175
      %v481 = vunpack.c.l.b16 %v176
      %v482 = vunpack.c.l.b16 %v177
      %v483 = vunpack.c.h.b16 %v177
      %v484 = vunpack.c.l.b16 %v178
      %v485 = vunpack.c.l.b16 %v179
      %v486 = vunpack.c.h.b16 %v179
      %v487 = vunpack.c.l.b16 %v180
      %v488 = vunpack.c.l.b16 %v181
      %v489 = vunpack.c.h.b16 %v181
      %v490 = vunpack.c.l.b16 %v182
      %v491 = vunpack.c.l.b16 %v183
      %v492 = vunpack.c.h.b16 %v183
      %v493 = vunpack.c.l.b16 %v184
      %v494 = vunpack.c.l.b16 %v185
      %v495 = vunpack.c.h.b16 %v185
      %v496 = vunpack.c.l.b16 %v186
      %v497 = vunpack.c.l.b16 %v187
      %v498 = vunpack.c.h.b16 %v187
      %v499 = vunpack.c.l.b16 %v188
      %v500 = vunpack.c.l.b16 %v189
      %v501 = vunpack.c.h.b16 %v189
      %v502 = vunpack.c.l.b16 %v190
      %v503 = vunpack.c.l.b16 %v191
      %v504 = vunpack.c.h.b16 %v191
      %v505 = vunpack.c.l.b16 %v192
      %v506 = vunpack.c.l.b16 %v193
      %v507 = vunpack.c.h.b16 %v193
      %v508 = vunpack.c.l.b16 %v194
      %v509 = vunpack.c.l.b16 %v195
      %v510 = vunpack.c.h.b16 %v195
      %v511 = vunpack.c.l.b16 %v196
      %v512 = vunpack.c.l.b16 %v197
      %v513 = vunpack.c.h.b16 %v197
      %v514 = vunpack.c.l.b16 %v198
      %v515 = vunpack.c.l.b16 %v199
      %v516 = vunpack.c.h.b16 %v199
      %v517 = vunpack.c.l.b16 %v200
      %v518 = vunpack.c.l.b16 %v201
      %v519 = vunpack.c.h.b16 %v201
      %v520 = vunpack.c.l.b16 %v202
      %v521 = vunpack.c.l.b16 %v203
      %v522 = vunpack.c.h.b16 %v203
      %v523 = vunpack.c.l.b16 %v204
      %v524 = vunpack.c.l.b16 %v205
      %v525 = vunpack.c.h.b16 %v205
      %v526 = vunpack.c.l.b16 %v206
      %v527 = vunpack.c.l.b16 %v207
      %v528 = vunpack.c.h.b16 %v207
      %v529 = vunpack.c.l.b16 %v208
      %v530 = vunpack.c.l.b16 %v209
      %v531 = vunpack.c.h.b16 %v209
      %v532 = vunpack.c.l.b16 %v210
      %v533 = vunpack.c.l.b16 %v211
      %v534 = vunpack.c.h.b16 %v211
      %v535 = vunpack.c.l.b16 %v212
      %v536 = vunpack.c.l.b16 %v213
      %v537 = vunpack.c.h.b16 %v213
      %v538 = vunpack.c.l.b16 %v214
      %v539 = vunpack.c.l.b16 %v215
      %v540 = vunpack.c.h.b16 %v215
      %v541 = vunpack.c.l.b16 %v216
      %v542 = vunpack.c.l.b16 %v217
      %v543 = vunpack.c.h.b16 %v217
      %v544 = vunpack.c.l.b16 %v218
      %v545 = vunpack.c.l.b16 %v219
      %v546 = vunpack.c.h.b16 %v219
      %v547 = vunpack.c.l.b16 %v220
      %v548 = vunpack.c.l.b16 %v221
      %v549 = vunpack.c.h.b16 %v221
      %v550 = vunpack.c.l.b16 %v222
      %v551 = vunpack.c.l.b16 %v223
      %v552 = vunpack.c.h.b16 %v223
      %v553 = vunpack.c.l.b16 %v224
      %v554 = vunpack.c.l.b16 %v225
      %v555 = vunpack.c.h.b16 %v225
      %v556 = vunpack.c.l.b16 %v226
      %v557 = vunpack.c.l.b16 %v227
      %v558 = vunpack.c.h.b16 %v227
      %v559 = vunpack.c.l.b16 %v228
      %v560 = vunpack.c.l.b16 %v229
      %v561 = vunpack.c.h.b16 %v229
      %v562 = vunpack.c.l.b16 %v230
      %v563 = vunpack.c.l.b16 %v231
      %v564 = vunpack.c.h.b16 %v231
      %v565 = vunpack.c.l.b16 %v232
      %v566 = vunpack.c.l.b16 %v233
      %v567 = vunpack.c.h.b16 %v233
      %v568 = vunpack.c.l.b16 %v234
      %v569 = vunpack.c.l.b16 %v235
      %v570 = vunpack.c.h.b16 %v235
      %v571 = vunpack.c.l.b16 %v236
      %v572 = vunpack.c.l.b16 %v237
      %v573 = vunpack.c.h.b16 %v237
      %v574 = vunpack.c.l.b16 %v238
      %v575 = vunpack.c.l.b16 %v239
      %v576 = vunpack.c.h.b16 %v239
      %v577 = vunpack.c.l.b16 %v240
      %v578 = vunpack.c.l.b16 %v241
      %v579 = vunpack.c.h.b16 %v241
      %v580 = vunpack.c.l.b16 %v242
      %v581 = vunpack.c.l.b16 %v243
      %v582 = vunpack.c.h.b16 %v243
      %v583 = vunpack.c.l.b16 %v244
      %v584 = vunpack.c.l.b16 %v245
      %v585 = vunpack.c.h.b16 %v245
      %v586 = vunpack.c.l.b16 %v246
      %v587 = vunpack.c.l.b16 %v247
      %v588 = vunpack.c.h.b16 %v247
      %v589 = vunpack.c.l.b16 %v248
      %v590 = vunpack.c.l.b16 %v249
      %v591 = vunpack.c.h.b16 %v249
      %v592 = vunpack.c.l.b16 %v250
      %v593 = vunpack.c.l.b16 %v251
      %v594 = vunpack.c.h.b16 %v251
      %v595 = vunpack.c.l.b16 %v252
      %v596 = vunpack.c.l.b16 %v253
      %v597 = vunpack.c.h.b16 %v253
      %v598 = vunpack.c.l.b16 %v254
      %v599 = vunpack.c.l.b16 %v255
      %v600 = vunpack.c.h.b16 %v255
      %v601 = vunpack.c.l.b16 %v256
      %v602 = vunpack.c.l.b16 %v257
      %v603 = vunpack.c.h.b16 %v257
      %v604 = vunpack.c.l.b16 %v258
      %v605 = vunpack.c.l.b16 %v259
      %v606 = vunpack.c.h.b16 %v259
      %v607 = vunpack.c.l.b16 %v260
      %v608 = vunpack.c.l.b16 %v261
      %v609 = vunpack.c.h.b16 %v261
      %v610 = vunpack.c.l.b16 %v262
      %v611 = vunpack.c.l.b16 %v263
      %v612 = vunpack.c.h.b16 %v263
      %v613 = vunpack.c.l.b16 %v264
      %v614 = vunpack.c.l.b16 %v265
      %v615 = vunpack.c.h.b16 %v265
      %v616 = vunpack.c.l.b16 %v266
      %v617 = vunpack.c.l.b16 %v267
      %v618 = vunpack.c.h.b16 %v267
      %v619 = vunpack.c.l.b16 %v268
      %v620 = vunpack.c.l.b16 %v269
      %v621 = vunpack.c.h.b16 %v269
      %v622 = vunpack.c.l.b16 %v270
      %v623 = vunpack.c.l.b16 %v271
      %v624 = vunpack.c.h.b16 %v271
      %v625 = vunpack.c.l.b16 %v272
      %v626 = vunpack.c.l.b16 %v273
      %v627 = vunpack.c.h.b16 %v273
      %v628 = vunpack.c.l.b16 %v274
      %v629 = vunpack.c.l.b16 %v275
      %v630 = vunpack.c.h.b16 %v275
      %v631 = vunpack.c.l.b16 %v276
      %v632 = vunpack.c.l.b16 %v277
      %v633 = vunpack.c.h.b16 %v277
      %v634 = vunpack.c.l.b16 %v278
      %v635 = vpack.c.b16 %v446, %v443
      %v636 = vpack.c.b16 %v447, %v444
      %v637 = vpack.c.b16 %v448, %v445
      %v638 = vpack.c.b16 %v452, %v449
      %v639 = vpack.c.b16 %v453, %v450
      %v640 = vpack.c.b16 %v454, %v451
      %v641 = vpack.c.b16 %v458, %v455
      %v642 = vpack.c.b16 %v459, %v456
      %v643 = vpack.c.b16 %v460, %v457
      %v644 = vpack.c.b16 %v464, %v461
      %v645 = vpack.c.b16 %v465, %v462
      %v646 = vpack.c.b16 %v466, %v463
      %v647 = vpack.c.b16 %v470, %v467
      %v648 = vpack.c.b16 %v471, %v468
      %v649 = vpack.c.b16 %v472, %v469
      %v650 = vpack.c.b16 %v476, %v473
      %v651 = vpack.c.b16 %v477, %v474
      %v652 = vpack.c.b16 %v478, %v475
      %v653 = vpack.c.b16 %v482, %v479
      %v654 = vpack.c.b16 %v483, %v480
      %v655 = vpack.c.b16 %v484, %v481
      %v656 = vpack.c.b16 %v488, %v485
      %v657 = vpack.c.b16 %v489, %v486
      %v658 = vpack.c.b16 %v490, %v487
      %v659 = vpack.c.b16 %v494, %v491
      %v660 = vpack.c.b16 %v495, %v492
      %v661 = vpack.c.b16 %v496, %v493
      %v662 = vpack.c.b16 %v500, %v497
      %v663 = vpack.c.b16 %v501, %v498
      %v664 = vpack.c.b16 %v502, %v499
      %v665 = vpack.c.b16 %v506, %v503
      %v666 = vpack.c.b16 %v507, %v504
      %v667 = vpack.c.b16 %v508, %v505
      %v668 = vpack.c.b16 %v512, %v509
      %v669 = vpack.c.b16 %v513, %v510
      %v670 = vpack.c.b16 %v514, %v511
      %v671 = vpack.c.b16 %v518, %v515
      %v672 = vpack.c.b16 %v519, %v516
      %v673 = vpack.c.b16 %v520, %v517
      %v674 = vpack.c.b16 %v524, %v521
      %v675 = vpack.c.b16 %v525, %v522
      %v676 = vpack.c.b16 %v526, %v523
      %v677 = vpack.c.b16 %v530, %v527
      %v678 = vpack.c.b16 %v531, %v528
      %v679 = vpack.c.b16 %v532, %v529
      %v680 = vpack.c.b16 %v536, %v533
      %v681 = vpack.c.b16 %v537, %v534
      %v682 = vpack.c.b16 %v538, %v535
      %v683 = vpack.c.b16 %v542, %v539
      %v684 = vpack.c.b16 %v543, %v540
      %v685 = vpack.c.b16 %v544, %v541
      %v686 = vpack.c.b16 %v548, %v545
      %v687 = vpack.c.b16 %v549, %v546
      %v688 = vpack.c.b16 %v550, %v547
      %v689 = vpack.c.b16 %v554, %v551
      %v690 = vpack.c.b16 %v555, %v552
      %v691 = vpack.c.b16 %v556, %v553
      %v692 = vpack.c.b16 %v560, %v557
      %v693 = vpack.c.b16 %v561, %v558
      %v694 = vpack.c.b16 %v562, %v559
      %v695 = vpack.c.b16 %v566, %v563
      %v696 = vpack.c.b16 %v567, %v564
      %v697 = vpack.c.b16 %v568, %v565
      %v698 = vpack.c.b16 %v572, %v569
      %v699 = vpack.c.b16 %v573, %v570
      %v700 = vpack.c.b16 %v574, %v571
      %v701 = vpack.c.b16 %v578, %v575
      %v702 = vpack.c.b16 %v579, %v576
      %v703 = vpack.c.b16 %v580, %v577
      %v704 = vpack.c.b16 %v584, %v581
      %v705 = vpack.c.b16 %v585, %v582
      %v706 = vpack.c.b16 %v586, %v583
      %v707 = vpack.c.b16 %v590, %v587
      %v708 = vpack.c.b16 %v591, %v588
      %v709 = vpack.c.b16 %v592, %v589
      %v710 = vpack.c.b16 %v596, %v593
      %v711 = vpack.c.b16 %v597, %v594
      %v712 = vpack.c.b16 %v598, %v595
      %v713 = vpack.c.b16 %v602, %v599
      %v714 = vpack.c.b16 %v603, %v600
      %v715 = vpack.c.b16 %v604, %v601
      %v716 = vpack.c.b16 %v608, %v605
      %v717 = vpack.c.b16 %v609, %v606
      %v718 = vpack.c.b16 %v610, %v607
      %v719 = vpack.c.b16 %v614, %v611
      %v720 = vpack.c.b16 %v615, %v612
      %v721 = vpack.c.b16 %v616, %v613
      %v722 = vpack.c.b16 %v620, %v617
      %v723 = vpack.c.b16 %v621, %v618
      %v724 = vpack.c.b16 %v622, %v619
      %v725 = vpack.c.b16 %v626, %v623
      %v726 = vpack.c.b16 %v627, %v624
      %v727 = vpack.c.b16 %v628, %v625
      %v728 = vpack.c.b16 %v632, %v629
      %v729 = vpack.c.b16 %v633, %v630
      %v730 = vpack.c.b16 %v634, %v631
      %v831 = vunpack.c.l.b16 %v279
      %v832 = vunpack.c.l.b16 %v280
      %v833 = vunpack.c.l.b16 %v281
      %v834 = vunpack.c.l.b16 %v282
      %v835 = vunpack.c.l.b16 %v283
      %v836 = vunpack.c.l.b16 %v284
      %v837 = vunpack.c.l.b16 %v285
      %v838 = vunpack.c.l.b16 %v286
      %v839 = vunpack.c.l.b16 %v287
      %v840 = vunpack.c.l.b16 %v288
      %v841 = vunpack.c.l.b16 %v289
      %v842 = vunpack.c.l.b16 %v290
      %v843 = vunpack.c.l.b16 %v291
      %v844 = vunpack.c.l.b16 %v292
      %v845 = vunpack.c.l.b16 %v293
      %v846 = vunpack.c.l.b16 %v294
      %v847 = vunpack.c.l.b16 %v295
      %v848 = vunpack.c.l.b16 %v296
      %v849 = vunpack.c.l.b16 %v297
      %v850 = vunpack.c.l.b16 %v298
      %v851 = vunpack.c.l.b16 %v299
      %v852 = vunpack.c.l.b16 %v300
      %v853 = vunpack.c.l.b16 %v301
      %v854 = vunpack.c.l.b16 %v302
      %v855 = vunpack.c.l.b16 %v303
      %v856 = vunpack.c.l.b16 %v304
      %v857 = vunpack.c.l.b16 %v305
      %v858 = vunpack.c.l.b16 %v306
      %v859 = vunpack.c.l.b16 %v307
      %v860 = vunpack.c.l.b16 %v308
      %v861 = vunpack.c.l.b16 %v309
      %v862 = vunpack.c.l.b16 %v310
      %v863 = vunpack.c.l.b16 %v311
      %v864 = vunpack.c.l.b16 %v312
      %v865 = vunpack.c.l.b16 %v313
      %v866 = vunpack.c.l.b16 %v314
      %v867 = vpack.c.b16 %v832, %v831
      %v868 = vpack.c.b16 %v834, %v833
      %v869 = vpack.c.b16 %v836, %v835
      %v870 = vpack.c.b16 %v838, %v837
      %v871 = vpack.c.b16 %v840, %v839
      %v872 = vpack.c.b16 %v842, %v841
      %v873 = vpack.c.b16 %v844, %v843
      %v874 = vpack.c.b16 %v846, %v845
      %v875 = vpack.c.b16 %v848, %v847
      %v876 = vpack.c.b16 %v850, %v849
      %v877 = vpack.c.b16 %v852, %v851
      %v878 = vpack.c.b16 %v854, %v853
      %v879 = vpack.c.b16 %v856, %v855
      %v880 = vpack.c.b16 %v858, %v857
      %v881 = vpack.c.b16 %v860, %v859
      %v882 = vpack.c.b16 %v862, %v861
      %v883 = vpack.c.b16 %v864, %v863
      %v884 = vpack.c.b16 %v866, %v865
      %vm903 = vcmask 261120
      %v905 = vsel %vm903, %v637, 0
      %v908 = vsel %vm903, %v640, 0
      %v911 = vsel %vm903, %v643, 0
      %v914 = vsel %vm903, %v646, 0
      %v917 = vsel %vm903, %v649, 0
      %v920 = vsel %vm903, %v652, 0
      %v923 = vsel %vm903, %v655, 0
      %v926 = vsel %vm903, %v658, 0
      %v929 = vsel %vm903, %v661, 0
      %v932 = vsel %vm903, %v664, 0
      %v935 = vsel %vm903, %v667, 0
      %v938 = vsel %vm903, %v670, 0
      %v941 = vsel %vm903, %v673, 0
      %v944 = vsel %vm903, %v676, 0
      %v947 = vsel %vm903, %v679, 0
      %v950 = vsel %vm903, %v682, 0
      %v953 = vsel %vm903, %v685, 0
      %v956 = vsel %vm903, %v688, 0
      %v959 = vsel %vm903, %v691, 0
      %v962 = vsel %vm903, %v694, 0
      %v965 = vsel %vm903, %v697, 0
      %v968 = vsel %vm903, %v700, 0
      %v971 = vsel %vm903, %v703, 0
      %v974 = vsel %vm903, %v706, 0
      %v977 = vsel %vm903, %v709, 0
      %v980 = vsel %vm903, %v712, 0
      %v983 = vsel %vm903, %v715, 0
      %v986 = vsel %vm903, %v718, 0
      %v989 = vsel %vm903, %v721, 0
      %v992 = vsel %vm903, %v724, 0
      %v995 = vsel %vm903, %v727, 0
      %v998 = vsel %vm903, %v730, 0
      %1000 = vmatpush.bf16.msra.mxu0 %v874
      %1001 = vmatpush.bf16.msra.mxu0 %v873
      %1002 = vmatpush.bf16.msra.mxu0 %v872
      %1003 = vmatpush.bf16.msra.mxu0 %v871
      %1004 = vmatpush.bf16.msra.mxu0 %v870
      %1005 = vmatpush.bf16.msra.mxu0 %v869
      %1006 = vmatpush.bf16.msra.mxu0 %v868
      %1007 = vmatpush.bf16.msra.mxu0 %v867
      %1008 = vmatmul.bf16.gmra.mxu0 %v635
      %v1009 = vpop.f32.mrf.mxu0
      %v1010 = vadd.f32 0.0, %v1009
      %v1011 = vpop.f32.mrf.mxu0
      %v1012 = vadd.f32 0.0, %v1011
      %1013 = vmatmul.bf16.gmra.mxu0 %v638
      %v1014 = vpop.f32.mrf.mxu0
      %v1015 = vadd.f32 0.0, %v1014
      %v1016 = vpop.f32.mrf.mxu0
      %v1017 = vadd.f32 0.0, %v1016
      %1018 = vmatmul.bf16.gmra.mxu0 %v641
      %v1019 = vpop.f32.mrf.mxu0
      %v1020 = vadd.f32 0.0, %v1019
      %v1021 = vpop.f32.mrf.mxu0
      %v1022 = vadd.f32 0.0, %v1021
      %1023 = vmatmul.bf16.gmra.mxu0 %v644
      %v1024 = vpop.f32.mrf.mxu0
      %v1025 = vadd.f32 0.0, %v1024
      %v1026 = vpop.f32.mrf.mxu0
      %v1027 = vadd.f32 0.0, %v1026
      %1028 = vmatmul.bf16.gmra.mxu0 %v647
      %v1029 = vpop.f32.mrf.mxu0
      %v1030 = vadd.f32 0.0, %v1029
      %v1031 = vpop.f32.mrf.mxu0
      %v1032 = vadd.f32 0.0, %v1031
      %1033 = vmatmul.bf16.gmra.mxu0 %v650
      %v1034 = vpop.f32.mrf.mxu0
      %v1035 = vadd.f32 0.0, %v1034
      %v1036 = vpop.f32.mrf.mxu0
      %v1037 = vadd.f32 0.0, %v1036
      %1038 = vmatmul.bf16.gmra.mxu0 %v653
      %v1039 = vpop.f32.mrf.mxu0
      %v1040 = vadd.f32 0.0, %v1039
      %v1041 = vpop.f32.mrf.mxu0
      %v1042 = vadd.f32 0.0, %v1041
      %1043 = vmatmul.bf16.gmra.mxu0 %v656
      %v1044 = vpop.f32.mrf.mxu0
      %v1045 = vadd.f32 0.0, %v1044
      %v1046 = vpop.f32.mrf.mxu0
      %v1047 = vadd.f32 0.0, %v1046
      %1048 = vmatmul.bf16.gmra.mxu0 %v659
      %v1049 = vpop.f32.mrf.mxu0
      %v1050 = vadd.f32 0.0, %v1049
      %v1051 = vpop.f32.mrf.mxu0
      %v1052 = vadd.f32 0.0, %v1051
      %1053 = vmatmul.bf16.gmra.mxu0 %v662
      %v1054 = vpop.f32.mrf.mxu0
      %v1055 = vadd.f32 0.0, %v1054
      %v1056 = vpop.f32.mrf.mxu0
      %v1057 = vadd.f32 0.0, %v1056
      %1058 = vmatmul.bf16.gmra.mxu0 %v665
      %v1059 = vpop.f32.mrf.mxu0
      %v1060 = vadd.f32 0.0, %v1059
      %v1061 = vpop.f32.mrf.mxu0
      %v1062 = vadd.f32 0.0, %v1061
      %1063 = vmatmul.bf16.gmra.mxu0 %v668
      %v1064 = vpop.f32.mrf.mxu0
      %v1065 = vadd.f32 0.0, %v1064
      %v1066 = vpop.f32.mrf.mxu0
      %v1067 = vadd.f32 0.0, %v1066
      %1068 = vmatmul.bf16.gmra.mxu0 %v671
      %v1069 = vpop.f32.mrf.mxu0
      %v1070 = vadd.f32 0.0, %v1069
      %v1071 = vpop.f32.mrf.mxu0
      %v1072 = vadd.f32 0.0, %v1071
      %1073 = vmatmul.bf16.gmra.mxu0 %v674
      %v1074 = vpop.f32.mrf.mxu0
      %v1075 = vadd.f32 0.0, %v1074
      %v1076 = vpop.f32.mrf.mxu0
      %v1077 = vadd.f32 0.0, %v1076
      %1078 = vmatmul.bf16.gmra.mxu0 %v677
      %v1079 = vpop.f32.mrf.mxu0
      %v1080 = vadd.f32 0.0, %v1079
      %v1081 = vpop.f32.mrf.mxu0
      %v1082 = vadd.f32 0.0, %v1081
      %1083 = vmatmul.bf16.gmra.mxu0 %v680
      %v1084 = vpop.f32.mrf.mxu0
      %v1085 = vadd.f32 0.0, %v1084
      %v1086 = vpop.f32.mrf.mxu0
      %v1087 = vadd.f32 0.0, %v1086
      %1088 = vmatmul.bf16.gmra.mxu0 %v683
      %v1089 = vpop.f32.mrf.mxu0
      %v1090 = vadd.f32 0.0, %v1089
      %v1091 = vpop.f32.mrf.mxu0
      %v1092 = vadd.f32 0.0, %v1091
      %1093 = vmatmul.bf16.gmra.mxu0 %v686
      %v1094 = vpop.f32.mrf.mxu0
      %v1095 = vadd.f32 0.0, %v1094
      %v1096 = vpop.f32.mrf.mxu0
      %v1097 = vadd.f32 0.0, %v1096
      %1098 = vmatmul.bf16.gmra.mxu0 %v689
      %v1099 = vpop.f32.mrf.mxu0
      %v1100 = vadd.f32 0.0, %v1099
      %v1101 = vpop.f32.mrf.mxu0
      %v1102 = vadd.f32 0.0, %v1101
      %1103 = vmatmul.bf16.gmra.mxu0 %v692
      %v1104 = vpop.f32.mrf.mxu0
      %v1105 = vadd.f32 0.0, %v1104
      %v1106 = vpop.f32.mrf.mxu0
      %v1107 = vadd.f32 0.0, %v1106
      %1108 = vmatmul.bf16.gmra.mxu0 %v695
      %v1109 = vpop.f32.mrf.mxu0
      %v1110 = vadd.f32 0.0, %v1109
      %v1111 = vpop.f32.mrf.mxu0
      %v1112 = vadd.f32 0.0, %v1111
      %1113 = vmatmul.bf16.gmra.mxu0 %v698
      %v1114 = vpop.f32.mrf.mxu0
      %v1115 = vadd.f32 0.0, %v1114
      %v1116 = vpop.f32.mrf.mxu0
      %v1117 = vadd.f32 0.0, %v1116
      %1118 = vmatmul.bf16.gmra.mxu0 %v701
      %v1119 = vpop.f32.mrf.mxu0
      %v1120 = vadd.f32 0.0, %v1119
      %v1121 = vpop.f32.mrf.mxu0
      %v1122 = vadd.f32 0.0, %v1121
      %1123 = vmatmul.bf16.gmra.mxu0 %v704
      %v1124 = vpop.f32.mrf.mxu0
      %v1125 = vadd.f32 0.0, %v1124
      %v1126 = vpop.f32.mrf.mxu0
      %v1127 = vadd.f32 0.0, %v1126
      %1128 = vmatmul.bf16.gmra.mxu0 %v707
      %v1129 = vpop.f32.mrf.mxu0
      %v1130 = vadd.f32 0.0, %v1129
      %v1131 = vpop.f32.mrf.mxu0
      %v1132 = vadd.f32 0.0, %v1131
      %1133 = vmatmul.bf16.gmra.mxu0 %v710
      %v1134 = vpop.f32.mrf.mxu0
      %v1135 = vadd.f32 0.0, %v1134
      %v1136 = vpop.f32.mrf.mxu0
      %v1137 = vadd.f32 0.0, %v1136
      %1138 = vmatmul.bf16.gmra.mxu0 %v713
      %v1139 = vpop.f32.mrf.mxu0
      %v1140 = vadd.f32 0.0, %v1139
      %v1141 = vpop.f32.mrf.mxu0
      %v1142 = vadd.f32 0.0, %v1141
      %1143 = vmatmul.bf16.gmra.mxu0 %v716
      %v1144 = vpop.f32.mrf.mxu0
      %v1145 = vadd.f32 0.0, %v1144
      %v1146 = vpop.f32.mrf.mxu0
      %v1147 = vadd.f32 0.0, %v1146
      %1148 = vmatmul.bf16.gmra.mxu0 %v719
      %v1149 = vpop.f32.mrf.mxu0
      %v1150 = vadd.f32 0.0, %v1149
      %v1151 = vpop.f32.mrf.mxu0
      %v1152 = vadd.f32 0.0, %v1151
      %1153 = vmatmul.bf16.gmra.mxu0 %v722
      %v1154 = vpop.f32.mrf.mxu0
      %v1155 = vadd.f32 0.0, %v1154
      %v1156 = vpop.f32.mrf.mxu0
      %v1157 = vadd.f32 0.0, %v1156
      %1158 = vmatmul.bf16.gmra.mxu0 %v725
      %v1159 = vpop.f32.mrf.mxu0
      %v1160 = vadd.f32 0.0, %v1159
      %v1161 = vpop.f32.mrf.mxu0
      %v1162 = vadd.f32 0.0, %v1161
      %1163 = vmatmul.bf16.gmra.mxu0 %v728
      %v1164 = vpop.f32.mrf.mxu0
      %v1165 = vadd.f32 0.0, %v1164
      %v1166 = vpop.f32.mrf.mxu0
      %v1167 = vadd.f32 0.0, %v1166
      %1168 = vdwg.mxu0
      %1169 = vmatpush.bf16.msra.mxu0 %v882
      %1170 = vmatpush.bf16.msra.mxu0 %v881
      %1171 = vmatpush.bf16.msra.mxu0 %v880
      %1172 = vmatpush.bf16.msra.mxu0 %v879
      %1173 = vmatpush.bf16.msra.mxu0 %v878
      %1174 = vmatpush.bf16.msra.mxu0 %v877
      %1175 = vmatpush.bf16.msra.mxu0 %v876
      %1176 = vmatpush.bf16.msra.mxu0 %v875
      %1177 = vmatmul.bf16.gmra.mxu0 %v636
      %v1178 = vpop.f32.mrf.mxu0
      %v1179 = vadd.f32 %v1010, %v1178
      %v1180 = vpop.f32.mrf.mxu0
      %v1181 = vadd.f32 %v1012, %v1180
      %1182 = vmatmul.bf16.gmra.mxu0 %v639
      %v1183 = vpop.f32.mrf.mxu0
      %v1184 = vadd.f32 %v1015, %v1183
      %v1185 = vpop.f32.mrf.mxu0
      %v1186 = vadd.f32 %v1017, %v1185
      %1187 = vmatmul.bf16.gmra.mxu0 %v642
      %v1188 = vpop.f32.mrf.mxu0
      %v1189 = vadd.f32 %v1020, %v1188
      %v1190 = vpop.f32.mrf.mxu0
      %v1191 = vadd.f32 %v1022, %v1190
      %1192 = vmatmul.bf16.gmra.mxu0 %v645
      %v1193 = vpop.f32.mrf.mxu0
      %v1194 = vadd.f32 %v1025, %v1193
      %v1195 = vpop.f32.mrf.mxu0
      %v1196 = vadd.f32 %v1027, %v1195
      %1197 = vmatmul.bf16.gmra.mxu0 %v648
      %v1198 = vpop.f32.mrf.mxu0
      %v1199 = vadd.f32 %v1030, %v1198
      %v1200 = vpop.f32.mrf.mxu0
      %v1201 = vadd.f32 %v1032, %v1200
      %1202 = vmatmul.bf16.gmra.mxu0 %v651
      %v1203 = vpop.f32.mrf.mxu0
      %v1204 = vadd.f32 %v1035, %v1203
      %v1205 = vpop.f32.mrf.mxu0
      %v1206 = vadd.f32 %v1037, %v1205
      %1207 = vmatmul.bf16.gmra.mxu0 %v654
      %v1208 = vpop.f32.mrf.mxu0
      %v1209 = vadd.f32 %v1040, %v1208
      %v1210 = vpop.f32.mrf.mxu0
      %v1211 = vadd.f32 %v1042, %v1210
      %1212 = vmatmul.bf16.gmra.mxu0 %v657
      %v1213 = vpop.f32.mrf.mxu0
      %v1214 = vadd.f32 %v1045, %v1213
      %v1215 = vpop.f32.mrf.mxu0
      %v1216 = vadd.f32 %v1047, %v1215
      %1217 = vmatmul.bf16.gmra.mxu0 %v660
      %v1218 = vpop.f32.mrf.mxu0
      %v1219 = vadd.f32 %v1050, %v1218
      %v1220 = vpop.f32.mrf.mxu0
      %v1221 = vadd.f32 %v1052, %v1220
      %1222 = vmatmul.bf16.gmra.mxu0 %v663
      %v1223 = vpop.f32.mrf.mxu0
      %v1224 = vadd.f32 %v1055, %v1223
      %v1225 = vpop.f32.mrf.mxu0
      %v1226 = vadd.f32 %v1057, %v1225
      %1227 = vmatmul.bf16.gmra.mxu0 %v666
      %v1228 = vpop.f32.mrf.mxu0
      %v1229 = vadd.f32 %v1060, %v1228
      %v1230 = vpop.f32.mrf.mxu0
      %v1231 = vadd.f32 %v1062, %v1230
      %1232 = vmatmul.bf16.gmra.mxu0 %v669
      %v1233 = vpop.f32.mrf.mxu0
      %v1234 = vadd.f32 %v1065, %v1233
      %v1235 = vpop.f32.mrf.mxu0
      %v1236 = vadd.f32 %v1067, %v1235
      %1237 = vmatmul.bf16.gmra.mxu0 %v672
      %v1238 = vpop.f32.mrf.mxu0
      %v1239 = vadd.f32 %v1070, %v1238
      %v1240 = vpop.f32.mrf.mxu0
      %v1241 = vadd.f32 %v1072, %v1240
      %1242 = vmatmul.bf16.gmra.mxu0 %v675
      %v1243 = vpop.f32.mrf.mxu0
      %v1244 = vadd.f32 %v1075, %v1243
      %v1245 = vpop.f32.mrf.mxu0
      %v1246 = vadd.f32 %v1077, %v1245
      %1247 = vmatmul.bf16.gmra.mxu0 %v678
      %v1248 = vpop.f32.mrf.mxu0
      %v1249 = vadd.f32 %v1080, %v1248
      %v1250 = vpop.f32.mrf.mxu0
      %v1251 = vadd.f32 %v1082, %v1250
      %1252 = vmatmul.bf16.gmra.mxu0 %v681
      %v1253 = vpop.f32.mrf.mxu0
      %v1254 = vadd.f32 %v1085, %v1253
      %v1255 = vpop.f32.mrf.mxu0
      %v1256 = vadd.f32 %v1087, %v1255
      %1257 = vmatmul.bf16.gmra.mxu0 %v684
      %v1258 = vpop.f32.mrf.mxu0
      %v1259 = vadd.f32 %v1090, %v1258
      %v1260 = vpop.f32.mrf.mxu0
      %v1261 = vadd.f32 %v1092, %v1260
      %1262 = vmatmul.bf16.gmra.mxu0 %v687
      %v1263 = vpop.f32.mrf.mxu0
      %v1264 = vadd.f32 %v1095, %v1263
      %v1265 = vpop.f32.mrf.mxu0
      %v1266 = vadd.f32 %v1097, %v1265
      %1267 = vmatmul.bf16.gmra.mxu0 %v690
      %v1268 = vpop.f32.mrf.mxu0
      %v1269 = vadd.f32 %v1100, %v1268
      %v1270 = vpop.f32.mrf.mxu0
      %v1271 = vadd.f32 %v1102, %v1270
      %1272 = vmatmul.bf16.gmra.mxu0 %v693
      %v1273 = vpop.f32.mrf.mxu0
      %v1274 = vadd.f32 %v1105, %v1273
      %v1275 = vpop.f32.mrf.mxu0
      %v1276 = vadd.f32 %v1107, %v1275
      %1277 = vmatmul.bf16.gmra.mxu0 %v696
      %v1278 = vpop.f32.mrf.mxu0
      %v1279 = vadd.f32 %v1110, %v1278
      %v1280 = vpop.f32.mrf.mxu0
      %v1281 = vadd.f32 %v1112, %v1280
      %1282 = vmatmul.bf16.gmra.mxu0 %v699
      %v1283 = vpop.f32.mrf.mxu0
      %v1284 = vadd.f32 %v1115, %v1283
      %v1285 = vpop.f32.mrf.mxu0
      %v1286 = vadd.f32 %v1117, %v1285
      %1287 = vmatmul.bf16.gmra.mxu0 %v702
      %v1288 = vpop.f32.mrf.mxu0
      %v1289 = vadd.f32 %v1120, %v1288
      %v1290 = vpop.f32.mrf.mxu0
      %v1291 = vadd.f32 %v1122, %v1290
      %1292 = vmatmul.bf16.gmra.mxu0 %v705
      %v1293 = vpop.f32.mrf.mxu0
      %v1294 = vadd.f32 %v1125, %v1293
      %v1295 = vpop.f32.mrf.mxu0
      %v1296 = vadd.f32 %v1127, %v1295
      %1297 = vmatmul.bf16.gmra.mxu0 %v708
      %v1298 = vpop.f32.mrf.mxu0
      %v1299 = vadd.f32 %v1130, %v1298
      %v1300 = vpop.f32.mrf.mxu0
      %v1301 = vadd.f32 %v1132, %v1300
      %1302 = vmatmul.bf16.gmra.mxu0 %v711
      %v1303 = vpop.f32.mrf.mxu0
      %v1304 = vadd.f32 %v1135, %v1303
      %v1305 = vpop.f32.mrf.mxu0
      %v1306 = vadd.f32 %v1137, %v1305
      %1307 = vmatmul.bf16.gmra.mxu0 %v714
      %v1308 = vpop.f32.mrf.mxu0
      %v1309 = vadd.f32 %v1140, %v1308
      %v1310 = vpop.f32.mrf.mxu0
      %v1311 = vadd.f32 %v1142, %v1310
      %1312 = vmatmul.bf16.gmra.mxu0 %v717
      %v1313 = vpop.f32.mrf.mxu0
      %v1314 = vadd.f32 %v1145, %v1313
      %v1315 = vpop.f32.mrf.mxu0
      %v1316 = vadd.f32 %v1147, %v1315
      %1317 = vmatmul.bf16.gmra.mxu0 %v720
      %v1318 = vpop.f32.mrf.mxu0
      %v1319 = vadd.f32 %v1150, %v1318
      %v1320 = vpop.f32.mrf.mxu0
      %v1321 = vadd.f32 %v1152, %v1320
      %1322 = vmatmul.bf16.gmra.mxu0 %v723
      %v1323 = vpop.f32.mrf.mxu0
      %v1324 = vadd.f32 %v1155, %v1323
      %v1325 = vpop.f32.mrf.mxu0
      %v1326 = vadd.f32 %v1157, %v1325
      %1327 = vmatmul.bf16.gmra.mxu0 %v726
      %v1328 = vpop.f32.mrf.mxu0
      %v1329 = vadd.f32 %v1160, %v1328
      %v1330 = vpop.f32.mrf.mxu0
      %v1331 = vadd.f32 %v1162, %v1330
      %1332 = vmatmul.bf16.gmra.mxu0 %v729
      %v1333 = vpop.f32.mrf.mxu0
      %v1334 = vadd.f32 %v1165, %v1333
      %v1335 = vpop.f32.mrf.mxu0
      %v1336 = vadd.f32 %v1167, %v1335
      %1337 = vdwg.mxu0
      %1338 = vmatpush.bf16.msra.mxu0 0
      %1339 = vmatpush.bf16.msra.mxu0 0
      %1340 = vmatpush.bf16.msra.mxu0 0
      %1341 = vmatpush.bf16.msra.mxu0 0
      %1342 = vmatpush.bf16.msra.mxu0 0
      %1343 = vmatpush.bf16.msra.mxu0 0
      %1344 = vmatpush.bf16.msra.mxu0 %v884
      %1345 = vmatpush.bf16.msra.mxu0 %v883
      %1346 = vmatmul.bf16.gmra.mxu0 %v905
      %v1347 = vpop.f32.mrf.mxu0
      %v1348 = vadd.f32 %v1179, %v1347
      %v1349 = vpop.f32.mrf.mxu0
      %v1350 = vadd.f32 %v1181, %v1349
      %1351 = vmatmul.bf16.gmra.mxu0 %v908
      %v1352 = vpop.f32.mrf.mxu0
      %v1353 = vadd.f32 %v1184, %v1352
      %v1354 = vpop.f32.mrf.mxu0
      %v1355 = vadd.f32 %v1186, %v1354
      %1356 = vmatmul.bf16.gmra.mxu0 %v911
      %v1357 = vpop.f32.mrf.mxu0
      %v1358 = vadd.f32 %v1189, %v1357
      %v1359 = vpop.f32.mrf.mxu0
      %v1360 = vadd.f32 %v1191, %v1359
      %1361 = vmatmul.bf16.gmra.mxu0 %v914
      %v1362 = vpop.f32.mrf.mxu0
      %v1363 = vadd.f32 %v1194, %v1362
      %v1364 = vpop.f32.mrf.mxu0
      %v1365 = vadd.f32 %v1196, %v1364
      %1366 = vmatmul.bf16.gmra.mxu0 %v917
      %v1367 = vpop.f32.mrf.mxu0
      %v1368 = vadd.f32 %v1199, %v1367
      %v1369 = vpop.f32.mrf.mxu0
      %v1370 = vadd.f32 %v1201, %v1369
      %1371 = vmatmul.bf16.gmra.mxu0 %v920
      %v1372 = vpop.f32.mrf.mxu0
      %v1373 = vadd.f32 %v1204, %v1372
      %v1374 = vpop.f32.mrf.mxu0
      %v1375 = vadd.f32 %v1206, %v1374
      %1376 = vmatmul.bf16.gmra.mxu0 %v923
      %v1377 = vpop.f32.mrf.mxu0
      %v1378 = vadd.f32 %v1209, %v1377
      %v1379 = vpop.f32.mrf.mxu0
      %v1380 = vadd.f32 %v1211, %v1379
      %1381 = vmatmul.bf16.gmra.mxu0 %v926
      %v1382 = vpop.f32.mrf.mxu0
      %v1383 = vadd.f32 %v1214, %v1382
      %v1384 = vpop.f32.mrf.mxu0
      %v1385 = vadd.f32 %v1216, %v1384
      %1386 = vmatmul.bf16.gmra.mxu0 %v929
      %v1387 = vpop.f32.mrf.mxu0
      %v1388 = vadd.f32 %v1219, %v1387
      %v1389 = vpop.f32.mrf.mxu0
      %v1390 = vadd.f32 %v1221, %v1389
      %1391 = vmatmul.bf16.gmra.mxu0 %v932
      %v1392 = vpop.f32.mrf.mxu0
      %v1393 = vadd.f32 %v1224, %v1392
      %v1394 = vpop.f32.mrf.mxu0
      %v1395 = vadd.f32 %v1226, %v1394
      %1396 = vmatmul.bf16.gmra.mxu0 %v935
      %v1397 = vpop.f32.mrf.mxu0
      %v1398 = vadd.f32 %v1229, %v1397
      %v1399 = vpop.f32.mrf.mxu0
      %v1400 = vadd.f32 %v1231, %v1399
      %1401 = vmatmul.bf16.gmra.mxu0 %v938
      %v1402 = vpop.f32.mrf.mxu0
      %v1403 = vadd.f32 %v1234, %v1402
      %v1404 = vpop.f32.mrf.mxu0
      %v1405 = vadd.f32 %v1236, %v1404
      %1406 = vmatmul.bf16.gmra.mxu0 %v941
      %v1407 = vpop.f32.mrf.mxu0
      %v1408 = vadd.f32 %v1239, %v1407
      %v1409 = vpop.f32.mrf.mxu0
      %v1410 = vadd.f32 %v1241, %v1409
      %1411 = vmatmul.bf16.gmra.mxu0 %v944
      %v1412 = vpop.f32.mrf.mxu0
      %v1413 = vadd.f32 %v1244, %v1412
      %v1414 = vpop.f32.mrf.mxu0
      %v1415 = vadd.f32 %v1246, %v1414
      %1416 = vmatmul.bf16.gmra.mxu0 %v947
      %v1417 = vpop.f32.mrf.mxu0
      %v1418 = vadd.f32 %v1249, %v1417
      %v1419 = vpop.f32.mrf.mxu0
      %v1420 = vadd.f32 %v1251, %v1419
      %1421 = vmatmul.bf16.gmra.mxu0 %v950
      %v1422 = vpop.f32.mrf.mxu0
      %v1423 = vadd.f32 %v1254, %v1422
      %v1424 = vpop.f32.mrf.mxu0
      %v1425 = vadd.f32 %v1256, %v1424
      %1426 = vmatmul.bf16.gmra.mxu0 %v953
      %v1427 = vpop.f32.mrf.mxu0
      %v1428 = vadd.f32 %v1259, %v1427
      %v1429 = vpop.f32.mrf.mxu0
      %v1430 = vadd.f32 %v1261, %v1429
      %1431 = vmatmul.bf16.gmra.mxu0 %v956
      %v1432 = vpop.f32.mrf.mxu0
      %v1433 = vadd.f32 %v1264, %v1432
      %v1434 = vpop.f32.mrf.mxu0
      %v1435 = vadd.f32 %v1266, %v1434
      %1436 = vmatmul.bf16.gmra.mxu0 %v959
      %v1437 = vpop.f32.mrf.mxu0
      %v1438 = vadd.f32 %v1269, %v1437
      %v1439 = vpop.f32.mrf.mxu0
      %v1440 = vadd.f32 %v1271, %v1439
      %1441 = vmatmul.bf16.gmra.mxu0 %v962
      %v1442 = vpop.f32.mrf.mxu0
      %v1443 = vadd.f32 %v1274, %v1442
      %v1444 = vpop.f32.mrf.mxu0
      %v1445 = vadd.f32 %v1276, %v1444
      %1446 = vmatmul.bf16.gmra.mxu0 %v965
      %v1447 = vpop.f32.mrf.mxu0
      %v1448 = vadd.f32 %v1279, %v1447
      %v1449 = vpop.f32.mrf.mxu0
      %v1450 = vadd.f32 %v1281, %v1449
      %1451 = vmatmul.bf16.gmra.mxu0 %v968
      %v1452 = vpop.f32.mrf.mxu0
      %v1453 = vadd.f32 %v1284, %v1452
      %v1454 = vpop.f32.mrf.mxu0
      %v1455 = vadd.f32 %v1286, %v1454
      %1456 = vmatmul.bf16.gmra.mxu0 %v971
      %v1457 = vpop.f32.mrf.mxu0
      %v1458 = vadd.f32 %v1289, %v1457
      %v1459 = vpop.f32.mrf.mxu0
      %v1460 = vadd.f32 %v1291, %v1459
      %1461 = vmatmul.bf16.gmra.mxu0 %v974
      %v1462 = vpop.f32.mrf.mxu0
      %v1463 = vadd.f32 %v1294, %v1462
      %v1464 = vpop.f32.mrf.mxu0
      %v1465 = vadd.f32 %v1296, %v1464
      %1466 = vmatmul.bf16.gmra.mxu0 %v977
      %v1467 = vpop.f32.mrf.mxu0
      %v1468 = vadd.f32 %v1299, %v1467
      %v1469 = vpop.f32.mrf.mxu0
      %v1470 = vadd.f32 %v1301, %v1469
      %1471 = vmatmul.bf16.gmra.mxu0 %v980
      %v1472 = vpop.f32.mrf.mxu0
      %v1473 = vadd.f32 %v1304, %v1472
      %v1474 = vpop.f32.mrf.mxu0
      %v1475 = vadd.f32 %v1306, %v1474
      %1476 = vmatmul.bf16.gmra.mxu0 %v983
      %v1477 = vpop.f32.mrf.mxu0
      %v1478 = vadd.f32 %v1309, %v1477
      %v1479 = vpop.f32.mrf.mxu0
      %v1480 = vadd.f32 %v1311, %v1479
      %1481 = vmatmul.bf16.gmra.mxu0 %v986
      %v1482 = vpop.f32.mrf.mxu0
      %v1483 = vadd.f32 %v1314, %v1482
      %v1484 = vpop.f32.mrf.mxu0
      %v1485 = vadd.f32 %v1316, %v1484
      %1486 = vmatmul.bf16.gmra.mxu0 %v989
      %v1487 = vpop.f32.mrf.mxu0
      %v1488 = vadd.f32 %v1319, %v1487
      %v1489 = vpop.f32.mrf.mxu0
      %v1490 = vadd.f32 %v1321, %v1489
      %1491 = vmatmul.bf16.gmra.mxu0 %v992
      %v1492 = vpop.f32.mrf.mxu0
      %v1493 = vadd.f32 %v1324, %v1492
      %v1494 = vpop.f32.mrf.mxu0
      %v1495 = vadd.f32 %v1326, %v1494
      %1496 = vmatmul.bf16.gmra.mxu0 %v995
      %v1497 = vpop.f32.mrf.mxu0
      %v1498 = vadd.f32 %v1329, %v1497
      %v1499 = vpop.f32.mrf.mxu0
      %v1500 = vadd.f32 %v1331, %v1499
      %1501 = vmatmul.bf16.gmra.mxu0 %v998
      %v1502 = vpop.f32.mrf.mxu0
      %v1503 = vadd.f32 %v1334, %v1502
      %v1504 = vpop.f32.mrf.mxu0
      %v1505 = vadd.f32 %v1336, %v1504
      %1506 = vdwg.mxu0
      %v1507 = vtanh.pop %v1348
      %v1508 = vtanh.pop %v1350
      %v1509 = vtanh.pop %v1353
      %v1510 = vtanh.pop %v1355
      %v1511 = vtanh.pop %v1358
      %v1512 = vtanh.pop %v1360
      %v1513 = vtanh.pop %v1363
      %v1514 = vtanh.pop %v1365
      %v1515 = vtanh.pop %v1368
      %v1516 = vtanh.pop %v1370
      %v1517 = vtanh.pop %v1373
      %v1518 = vtanh.pop %v1375
      %v1519 = vtanh.pop %v1378
      %v1520 = vtanh.pop %v1380
      %v1521 = vtanh.pop %v1383
      %v1522 = vtanh.pop %v1385
      %v1523 = vtanh.pop %v1388
      %v1524 = vtanh.pop %v1390
      %v1525 = vtanh.pop %v1393
      %v1526 = vtanh.pop %v1395
      %v1527 = vtanh.pop %v1398
      %v1528 = vtanh.pop %v1400
      %v1529 = vtanh.pop %v1403
      %v1530 = vtanh.pop %v1405
      %v1531 = vtanh.pop %v1408
      %v1532 = vtanh.pop %v1410
      %v1533 = vtanh.pop %v1413
      %v1534 = vtanh.pop %v1415
      %v1535 = vtanh.pop %v1418
      %v1536 = vtanh.pop %v1420
      %v1537 = vtanh.pop %v1423
      %v1538 = vtanh.pop %v1425
      %v1539 = vtanh.pop %v1428
      %v1540 = vtanh.pop %v1430
      %v1541 = vtanh.pop %v1433
      %v1542 = vtanh.pop %v1435
      %v1543 = vtanh.pop %v1438
      %v1544 = vtanh.pop %v1440
      %v1545 = vtanh.pop %v1443
      %v1546 = vtanh.pop %v1445
      %v1547 = vtanh.pop %v1448
      %v1548 = vtanh.pop %v1450
      %v1549 = vtanh.pop %v1453
      %v1550 = vtanh.pop %v1455
      %v1551 = vtanh.pop %v1458
      %v1552 = vtanh.pop %v1460
      %v1553 = vtanh.pop %v1463
      %v1554 = vtanh.pop %v1465
      %v1555 = vtanh.pop %v1468
      %v1556 = vtanh.pop %v1470
      %v1557 = vtanh.pop %v1473
      %v1558 = vtanh.pop %v1475
      %v1559 = vtanh.pop %v1478
      %v1560 = vtanh.pop %v1480
      %v1561 = vtanh.pop %v1483
      %v1562 = vtanh.pop %v1485
      %v1563 = vtanh.pop %v1488
      %v1564 = vtanh.pop %v1490
      %v1565 = vtanh.pop %v1493
      %v1566 = vtanh.pop %v1495
      %v1567 = vtanh.pop %v1498
      %v1568 = vtanh.pop %v1500
      %v1569 = vtanh.pop %v1503
      %v1570 = vtanh.pop %v1505
      %v1571 = vpack.c.bf16 %v1507, %v1507
      %v1572 = vpack.c.bf16 %v1508, %v1508
      %v1573 = vpack.c.bf16 %v1509, %v1509
      %v1574 = vpack.c.bf16 %v1510, %v1510
      %v1575 = vpack.c.bf16 %v1511, %v1511
      %v1576 = vpack.c.bf16 %v1512, %v1512
      %v1577 = vpack.c.bf16 %v1513, %v1513
      %v1578 = vpack.c.bf16 %v1514, %v1514
      %v1579 = vpack.c.bf16 %v1515, %v1515
      %v1580 = vpack.c.bf16 %v1516, %v1516
      %v1581 = vpack.c.bf16 %v1517, %v1517
      %v1582 = vpack.c.bf16 %v1518, %v1518
      %v1583 = vpack.c.bf16 %v1519, %v1519
      %v1584 = vpack.c.bf16 %v1520, %v1520
      %v1585 = vpack.c.bf16 %v1521, %v1521
      %v1586 = vpack.c.bf16 %v1522, %v1522
      %v1587 = vpack.c.bf16 %v1523, %v1523
      %v1588 = vpack.c.bf16 %v1524, %v1524
      %v1589 = vpack.c.bf16 %v1525, %v1525
      %v1590 = vpack.c.bf16 %v1526, %v1526
      %v1591 = vpack.c.bf16 %v1527, %v1527
      %v1592 = vpack.c.bf16 %v1528, %v1528
      %v1593 = vpack.c.bf16 %v1529, %v1529
      %v1594 = vpack.c.bf16 %v1530, %v1530
      %v1595 = vpack.c.bf16 %v1531, %v1531
      %v1596 = vpack.c.bf16 %v1532, %v1532
      %v1597 = vpack.c.bf16 %v1533, %v1533
      %v1598 = vpack.c.bf16 %v1534, %v1534
      %v1599 = vpack.c.bf16 %v1535, %v1535
      %v1600 = vpack.c.bf16 %v1536, %v1536
      %v1601 = vpack.c.bf16 %v1537, %v1537
      %v1602 = vpack.c.bf16 %v1538, %v1538
      %v1603 = vpack.c.bf16 %v1539, %v1539
      %v1604 = vpack.c.bf16 %v1540, %v1540
      %v1605 = vpack.c.bf16 %v1541, %v1541
      %v1606 = vpack.c.bf16 %v1542, %v1542
      %v1607 = vpack.c.bf16 %v1543, %v1543
      %v1608 = vpack.c.bf16 %v1544, %v1544
      %v1609 = vpack.c.bf16 %v1545, %v1545
      %v1610 = vpack.c.bf16 %v1546, %v1546
      %v1611 = vpack.c.bf16 %v1547, %v1547
      %v1612 = vpack.c.bf16 %v1548, %v1548
      %v1613 = vpack.c.bf16 %v1549, %v1549
      %v1614 = vpack.c.bf16 %v1550, %v1550
      %v1615 = vpack.c.bf16 %v1551, %v1551
      %v1616 = vpack.c.bf16 %v1552, %v1552
      %v1617 = vpack.c.bf16 %v1553, %v1553
      %v1618 = vpack.c.bf16 %v1554, %v1554
      %v1619 = vpack.c.bf16 %v1555, %v1555
      %v1620 = vpack.c.bf16 %v1556, %v1556
      %v1621 = vpack.c.bf16 %v1557, %v1557
      %v1622 = vpack.c.bf16 %v1558, %v1558
      %v1623 = vpack.c.bf16 %v1559, %v1559
      %v1624 = vpack.c.bf16 %v1560, %v1560
      %v1625 = vpack.c.bf16 %v1561, %v1561
      %v1626 = vpack.c.bf16 %v1562, %v1562
      %v1627 = vpack.c.bf16 %v1563, %v1563
      %v1628 = vpack.c.bf16 %v1564, %v1564
      %v1629 = vpack.c.bf16 %v1565, %v1565
      %v1630 = vpack.c.bf16 %v1566, %v1566
      %v1631 = vpack.c.bf16 %v1567, %v1567
      %v1632 = vpack.c.bf16 %v1568, %v1568
      %v1633 = vpack.c.bf16 %v1569, %v1569
      %v1634 = vpack.c.bf16 %v1570, %v1570
      %1635 = vst [vmem:[%s148] sm:$0xf] %v1571
      %1636 = vst [vmem:[%s148 + $0x4] sm:$0xf] %v1572
      %1637 = vst [vmem:[%s148 + $0x8] sm:$0xf] %v1573
      %1638 = vst [vmem:[%s148 + $0xc] sm:$0xf] %v1574
      %1639 = vst [vmem:[%s148 + $0x10] sm:$0xf] %v1575
      %1640 = vst [vmem:[%s148 + $0x14] sm:$0xf] %v1576
      %1641 = vst [vmem:[%s148 + $0x18] sm:$0xf] %v1577
      %1642 = vst [vmem:[%s148 + $0x1c] sm:$0xf] %v1578
      %1643 = vst [vmem:[%s148 + $0x20] sm:$0xf] %v1579
      %1644 = vst [vmem:[%s148 + $0x24] sm:$0xf] %v1580
      %1645 = vst [vmem:[%s148 + $0x28] sm:$0xf] %v1581
      %1646 = vst [vmem:[%s148 + $0x2c] sm:$0xf] %v1582
      %1647 = vst [vmem:[%s148 + $0x30] sm:$0xf] %v1583
      %1648 = vst [vmem:[%s148 + $0x34] sm:$0xf] %v1584
      %1649 = vst [vmem:[%s148 + $0x38] sm:$0xf] %v1585
      %1650 = vst [vmem:[%s148 + $0x3c] sm:$0xf] %v1586
      %1651 = vst [vmem:[%s148 + $0x40] sm:$0xf] %v1587
      %1652 = vst [vmem:[%s148 + $0x44] sm:$0xf] %v1588
      %1653 = vst [vmem:[%s148 + $0x48] sm:$0xf] %v1589
      %1654 = vst [vmem:[%s148 + $0x4c] sm:$0xf] %v1590
      %1655 = vst [vmem:[%s148 + $0x50] sm:$0xf] %v1591
      %1656 = vst [vmem:[%s148 + $0x54] sm:$0xf] %v1592
      %1657 = vst [vmem:[%s148 + $0x58] sm:$0xf] %v1593
      %1658 = vst [vmem:[%s148 + $0x5c] sm:$0xf] %v1594
      %1659 = vst [vmem:[%s148 + $0x60] sm:$0xf] %v1595
      %1660 = vst [vmem:[%s148 + $0x64] sm:$0xf] %v1596
      %1661 = vst [vmem:[%s148 + $0x68] sm:$0xf] %v1597
      %1662 = vst [vmem:[%s148 + $0x6c] sm:$0xf] %v1598
      %1663 = vst [vmem:[%s148 + $0x70] sm:$0xf] %v1599
      %1664 = vst [vmem:[%s148 + $0x74] sm:$0xf] %v1600
      %1665 = vst [vmem:[%s148 + $0x78] sm:$0xf] %v1601
      %1666 = vst [vmem:[%s148 + $0x7c] sm:$0xf] %v1602
      %1667 = vst [vmem:[%s148 + $0x80] sm:$0xf] %v1603
      %1668 = vst [vmem:[%s148 + $0x84] sm:$0xf] %v1604
      %1669 = vst [vmem:[%s148 + $0x88] sm:$0xf] %v1605
      %1670 = vst [vmem:[%s148 + $0x8c] sm:$0xf] %v1606
      %1671 = vst [vmem:[%s148 + $0x90] sm:$0xf] %v1607
      %1672 = vst [vmem:[%s148 + $0x94] sm:$0xf] %v1608
      %1673 = vst [vmem:[%s148 + $0x98] sm:$0xf] %v1609
      %1674 = vst [vmem:[%s148 + $0x9c] sm:$0xf] %v1610
      %1675 = vst [vmem:[%s148 + $0xa0] sm:$0xf] %v1611
      %1676 = vst [vmem:[%s148 + $0xa4] sm:$0xf] %v1612
      %1677 = vst [vmem:[%s148 + $0xa8] sm:$0xf] %v1613
      %1678 = vst [vmem:[%s148 + $0xac] sm:$0xf] %v1614
      %1679 = vst [vmem:[%s148 + $0xb0] sm:$0xf] %v1615
      %1680 = vst [vmem:[%s148 + $0xb4] sm:$0xf] %v1616
      %1681 = vst [vmem:[%s148 + $0xb8] sm:$0xf] %v1617
      %1682 = vst [vmem:[%s148 + $0xbc] sm:$0xf] %v1618
      %1683 = vst [vmem:[%s148 + $0xc0] sm:$0xf] %v1619
      %1684 = vst [vmem:[%s148 + $0xc4] sm:$0xf] %v1620
      %1685 = vst [vmem:[%s148 + $0xc8] sm:$0xf] %v1621
      %1686 = vst [vmem:[%s148 + $0xcc] sm:$0xf] %v1622
      %1687 = vst [vmem:[%s148 + $0xd0] sm:$0xf] %v1623
      %1688 = vst [vmem:[%s148 + $0xd4] sm:$0xf] %v1624
      %1689 = vst [vmem:[%s148 + $0xd8] sm:$0xf] %v1625
      %1690 = vst [vmem:[%s148 + $0xdc] sm:$0xf] %v1626
      %1691 = vst [vmem:[%s148 + $0xe0] sm:$0xf] %v1627
      %1692 = vst [vmem:[%s148 + $0xe4] sm:$0xf] %v1628
      %1693 = vst [vmem:[%s148 + $0xe8] sm:$0xf] %v1629
      %1694 = vst [vmem:[%s148 + $0xec] sm:$0xf] %v1630
      %1695 = vst [vmem:[%s148 + $0xf0] sm:$0xf] %v1631
      %1696 = vst [vmem:[%s148 + $0xf4] sm:$0xf] %v1632
      %1697 = vst [vmem:[%s148 + $0xf8] sm:$0xf] %v1633
      %1698 = vst [vmem:[%s148 + $0xfc] sm:$0xf] %v1634
      %s1699 = smul.u32 64, %s13
      %p1700 = scmp.lt.s32.totalorder %s1699, 255
      %s1701 = scalar_select %p1700, %s1699, 255
      %s1702 = smul.addr %s1701, 4
      %s1703 = scalar_lea.vmem %s2, %s1702
      // Predicated region
      $region29: #{cnet_g1_forward.9} parent=27 // pred_check
        %p1704 = pneg %p78
      $region30: #{cnet_g1_forward.9} parent=27 // pred_check_branch
        %1706 = sbr.rel (%p1704) target = $region32
      $region31: #{cnet_g1_forward.9} parent=27 // pred_region
        %s1707 = smul.u32 64, %s13
      $region32: #{cnet_g1_forward.9} parent=27 // pred_fallthru
        _
    $region28: #{cnet_g1_forward.9} parent=5 // pred_fallthru
      _
    %p1708 = scmp.le.s32.totalorder 2, %s8
    // Predicated region
    $region33: #{cnet_g1_forward.9} parent=5 // pred_check
      %p1709 = pneg %p1708
    $region34: #{cnet_g1_forward.9} parent=5 // pred_check_branch
      %1711 = sbr.rel (%p1709) target = $region36
    $region35: #{cnet_g1_forward.9} parent=5 // pred_region
      %s1712 = ssub.s32 %s8, 2
      // Predicated region
      $region37: #{cnet_g1_forward.9} parent=35 // pred_check
        %p1713 = pneg %p84
      $region38: #{cnet_g1_forward.9} parent=35 // pred_check_branch
        %1715 = sbr.rel (%p1713) target = $region40
      $region39: #{cnet_g1_forward.9} parent=35 // pred_region
        %s1716 = smul.u32 64, %s14
        %p1717 = scmp.lt.s32.totalorder %s1716, 255
        %s1718 = scalar_select %p1717, %s1716, 255
        %s1719 = smul.addr %s1718, 4
        %s1720 = scalar_lea.vmem %s2, %s1719
      $region40: #{cnet_g1_forward.9} parent=35 // pred_fallthru
        _
    $region36: #{cnet_g1_forward.9} parent=5 // pred_fallthru
      _
  $region6: #{cnet_g1_forward.9} parent=0 // loop_footer
    %s12 = sadd.s32 1, %s8
  $region7: #{cnet_g1_forward.9} parent=0 // loop_footer_branch
    %7 = sbr.rel target = $region3
  $region8: #{cnet_g1_forward.9} parent=0 // loop_exit
    _

</llo_original>
